<compile_context>
chip_gen: v7x
topology: tpu7x:2x2x1
jax: 0.10.0
libtpu: 0.0.40
codegen_flags: <defaults>
</compile_context>

<pallas_src>
import functools
import math

import jax
import jax.numpy as jnp
from jax.experimental import pallas as pl
from jax.experimental.pallas import tpu as pltpu


# ----------------------------- fused Pallas kernel --------------------------

def _layernorm(x, g, b, eps=1e-12):
    mean = jnp.mean(x, axis=-1, keepdims=True)
    var = jnp.mean(jnp.square(x - mean), axis=-1, keepdims=True)
    return (x - mean) * jax.lax.rsqrt(var + eps) * g + b


def _gelu(x):
    # TODO(synk): HF BERT's default 'gelu' is the exact erf form; tanh approximation
    # (used here for guaranteed Mosaic lowering) differs at ~1e-3.
    c = math.sqrt(2.0 / math.pi)
    return 0.5 * x * (1.0 + jnp.tanh(c * (x + 0.044715 * x * x * x)))


def bert_fused_kernel(
    word_ref, pos_ref,                      # [B*S, H], [S, H]
    emb_g_ref, emb_b_ref,                   # [1, H], [1, H]
    wqkv_ref, bqkv_ref,                     # [L, H, 3H], [L, 3H]
    wao_ref, bao_ref,                       # [L, H, H], [L, H]
    ln1g_ref, ln1b_ref,                     # [L, H], [L, H]
    wi_ref, bi_ref,                         # [L, H, I], [L, I]
    wo2_ref, bo2_ref,                       # [L, I, H], [L, H]
    ln2g_ref, ln2b_ref,                     # [L, H], [L, H]
    poolw_ref, poolb_ref,                   # [H, H], [1, H]
    clsw_ref, clsb_ref,                     # [H, C], [1, C]
    o_ref,                                  # [B, C]
    *, B, S, n_heads, n_layers,
):
    H = word_ref.shape[1]
    dh = H // n_heads
    scale = 1.0 / math.sqrt(dh)

    # Embeddings: word + (pos + token_type[0]), broadcast over batch, then LayerNorm.
    pos_type = pos_ref[...]                                   # [S, H]
    emb = word_ref[...] + jnp.concatenate([pos_type] * B, axis=0)
    h = _layernorm(emb, emb_g_ref[...], emb_b_ref[...])       # [B*S, H]

    for l in range(n_layers):  # static unroll; all weights resident in VMEM
        # ---- fused QKV projection -------------------------------------------------
        qkv = jnp.dot(h, wqkv_ref[l], preferred_element_type=jnp.float32)
        qkv = qkv + bqkv_ref[pl.ds(l, 1), :]                  # [B*S, 3H]
        q = qkv[:, 0:H]
        k = qkv[:, H:2 * H]
        v = qkv[:, 2 * H:3 * H]

        # ---- multi-head self-attention (head split done on VMEM slices) -----------
        ctx_rows = []
        for b in range(B):
            r0 = b * S
            head_outs = []
            for hd in range(n_heads):
                c0 = hd * dh
                qh = q[r0:r0 + S, c0:c0 + dh]                 # [S, dh]
                kh = k[r0:r0 + S, c0:c0 + dh]
                vh = v[r0:r0 + S, c0:c0 + dh]
                s = jax.lax.dot_general(                      # q @ k^T  -> [S, S]
                    qh, kh, (((1,), (1,)), ((), ())),
                    preferred_element_type=jnp.float32) * scale
                s = s - jnp.max(s, axis=-1, keepdims=True)
                p = jnp.exp(s)
                p = p * pl.reciprocal(jnp.sum(p, axis=-1, keepdims=True), approx=True)
                head_outs.append(
                    jnp.dot(p, vh, preferred_element_type=jnp.float32))  # [S, dh]
            ctx_rows.append(jnp.concatenate(head_outs, axis=1))           # [S, H]
        ctx = jnp.concatenate(ctx_rows, axis=0)                           # [B*S, H]

        # ---- attention output projection + residual + LayerNorm -------------------
        attn = jnp.dot(ctx, wao_ref[l], preferred_element_type=jnp.float32)
        attn = attn + bao_ref[pl.ds(l, 1), :]
        h = _layernorm(h + attn, ln1g_ref[pl.ds(l, 1), :], ln1b_ref[pl.ds(l, 1), :])

        # ---- feed-forward (GELU) + residual + LayerNorm ----------------------------
        inter = jnp.dot(h, wi_ref[l], preferred_element_type=jnp.float32)
        inter = _gelu(inter + bi_ref[pl.ds(l, 1), :])
        ffn = jnp.dot(inter, wo2_ref[l], preferred_element_type=jnp.float32)
        ffn = ffn + bo2_ref[pl.ds(l, 1), :]
        h = _layernorm(h + ffn, ln2g_ref[pl.ds(l, 1), :], ln2b_ref[pl.ds(l, 1), :])

    # ---- pooler (tanh on CLS token) + classifier + sigmoid, all in-kernel ----------
    cls_rows = jnp.concatenate([h[b * S:b * S + 1, :] for b in range(B)], axis=0)  # [B, H]
    pooled = jnp.tanh(
        jnp.dot(cls_rows, poolw_ref[...], preferred_element_type=jnp.float32)
        + poolb_ref[...])
    logits = (jnp.dot(pooled, clsw_ref[...], preferred_element_type=jnp.float32)
              + clsb_ref[...])
    o_ref[...] = jax.nn.sigmoid(logits).astype(o_ref.dtype)


def fused_forward(word, pos_type, params, *, B, S, n_heads, n_classes):
    H = word.shape[1]
    n_layers = params["w_qkv"].shape[0]
    args = (
        word, pos_type,
        params["emb_ln_g"].reshape(1, H), params["emb_ln_b"].reshape(1, H),
        params["w_qkv"], params["b_qkv"],
        params["w_ao"], params["b_ao"],
        params["ln1_g"], params["ln1_b"],
        params["w_ffn1"], params["b_ffn1"],
        params["w_ffn2"], params["b_ffn2"],
        params["ln2_g"], params["ln2_b"],
        params["pool_w"], params["pool_b"].reshape(1, H),
        params["cls_w"], params["cls_b"].reshape(1, n_classes),
    )
    vmem_specs = [pl.BlockSpec(memory_space=pltpu.MemorySpace.VMEM) for _ in args]
    return pl.pallas_call(
        functools.partial(bert_fused_kernel, B=B, S=S,
                          n_heads=n_heads, n_layers=n_layers),
        out_shape=jax.ShapeDtypeStruct((B, n_classes), jnp.float32),
        in_specs=vmem_specs,
        out_specs=pl.BlockSpec(memory_space=pltpu.MemorySpace.VMEM),
    )(*args)


# ----------------------------- params & wrapper ------------------------------

def init_params(key, *, vocab=30, max_pos=16, hidden=32, n_heads=4,
                n_layers=2, intermediate=64, n_classes=3):
    del n_heads  # static; kept out of the (array-only) params pytree
    H, I, L = hidden, intermediate, n_layers
    ks = iter(jax.random.split(key, 16))
    w = lambda shape: 0.02 * jax.random.normal(next(ks), shape, jnp.float32)
    z = lambda shape: jnp.zeros(shape, jnp.float32)
    o = lambda shape: jnp.ones(shape, jnp.float32)
    return {
        "word_emb": w((vocab, H)),
        "pos_emb": w((max_pos, H)),
        "type_emb": w((2, H)),
        "emb_ln_g": o((H,)), "emb_ln_b": z((H,)),
        # stacked per-layer weights; QKV fused into one [H, 3H] projection
        "w_qkv": w((L, H, 3 * H)), "b_qkv": z((L, 3 * H)),
        "w_ao": w((L, H, H)), "b_ao": z((L, H)),
        "ln1_g": o((L, H)), "ln1_b": z((L, H)),
        "w_ffn1": w((L, H, I)), "b_ffn1": z((L, I)),
        "w_ffn2": w((L, I, H)), "b_ffn2": z((L, H)),
        "ln2_g": o((L, H)), "ln2_b": z((L, H)),
        "pool_w": w((H, H)), "pool_b": z((H,)),
        "cls_w": w((H, n_classes)), "cls_b": z((n_classes,)),
    }


def torch_model_forward(params, x, *, n_heads=4):
    """x: int32 [B, S] token ids -> sigmoid(Linear(pooler_out)) of shape [B, n_classes]."""
    B, S = x.shape
    H = params["word_emb"].shape[1]
    n_classes = params["cls_w"].shape[1]
    # XLA glue: embedding gather; pos + token-type-0 folded into one [S, H] table.
    word = params["word_emb"][x].reshape(B * S, H)
    pos_type = params["pos_emb"][:S] + params["type_emb"][0][None, :]
    return fused_forward(word, pos_type, params,
                         B=B, S=S, n_heads=n_heads, n_classes=n_classes)


if __name__ == "__main__":
    key = jax.random.PRNGKey(0)
    k_params, k_x = jax.random.split(key)

    B, S, VOCAB = 2, 8, 30
    params = init_params(k_params, vocab=VOCAB, max_pos=16, hidden=32,
                         n_heads=4, n_layers=2, intermediate=64, n_classes=3)
    x = jax.random.randint(k_x, (B, S), 0, VOCAB, dtype=jnp.int32)

    y = jax.jit(torch_model_forward)(params, x)
    y = jax.block_until_ready(y)

    assert y.shape == (B, 3) and y.dtype == jnp.float32
    assert bool(jnp.all(jnp.isfinite(y))) and bool(jnp.all((y > 0) & (y < 1)))
    print("KERNEL_OK")
</pallas_src>

<mosaic_0001>
module attributes {stable_mosaic.version = 11 : i64} {
  func.func @bert_fused_kernel(%arg0: memref<16x32xf32, #tpu.memory_space<vmem>>, %arg1: memref<8x32xf32, #tpu.memory_space<vmem>>, %arg2: memref<1x32xf32, #tpu.memory_space<vmem>>, %arg3: memref<1x32xf32, #tpu.memory_space<vmem>>, %arg4: memref<2x32x96xf32, #tpu.memory_space<vmem>>, %arg5: memref<2x96xf32, #tpu.memory_space<vmem>>, %arg6: memref<2x32x32xf32, #tpu.memory_space<vmem>>, %arg7: memref<2x32xf32, #tpu.memory_space<vmem>>, %arg8: memref<2x32xf32, #tpu.memory_space<vmem>>, %arg9: memref<2x32xf32, #tpu.memory_space<vmem>>, %arg10: memref<2x32x64xf32, #tpu.memory_space<vmem>>, %arg11: memref<2x64xf32, #tpu.memory_space<vmem>>, %arg12: memref<2x64x32xf32, #tpu.memory_space<vmem>>, %arg13: memref<2x32xf32, #tpu.memory_space<vmem>>, %arg14: memref<2x32xf32, #tpu.memory_space<vmem>>, %arg15: memref<2x32xf32, #tpu.memory_space<vmem>>, %arg16: memref<32x32xf32, #tpu.memory_space<vmem>>, %arg17: memref<1x32xf32, #tpu.memory_space<vmem>>, %arg18: memref<32x3xf32, #tpu.memory_space<vmem>>, %arg19: memref<1x3xf32, #tpu.memory_space<vmem>>, %arg20: memref<2x3xf32, #tpu.memory_space<vmem>>) attributes {dimension_semantics = [], scalar_prefetch = 0 : i64, scratch_operands = 0 : i64, tpu.core_type = #tpu.core_type<tc>} {
    %c0 = arith.constant 0 : index
    %c0_0 = arith.constant 0 : index
    %0 = vector.load %arg1[%c0, %c0_0] : memref<8x32xf32, #tpu.memory_space<vmem>>, vector<8x32xf32>
    %c0_1 = arith.constant 0 : index
    %c0_2 = arith.constant 0 : index
    %1 = vector.load %arg0[%c0_1, %c0_2] : memref<16x32xf32, #tpu.memory_space<vmem>>, vector<16x32xf32>
    %2 = tpu.concatenate %0, %0 in 0 : vector<8x32xf32>, vector<8x32xf32> -> vector<16x32xf32>
    %3 = arith.addf %1, %2 : vector<16x32xf32>
    %c0_3 = arith.constant 0 : index
    %c0_4 = arith.constant 0 : index
    %4 = vector.load %arg2[%c0_3, %c0_4] : memref<1x32xf32, #tpu.memory_space<vmem>>, vector<1x32xf32>
    %c0_5 = arith.constant 0 : index
    %c0_6 = arith.constant 0 : index
    %5 = vector.load %arg3[%c0_5, %c0_6] : memref<1x32xf32, #tpu.memory_space<vmem>>, vector<1x32xf32>
    %cst = arith.constant dense<0.000000e+00> : vector<16xf32>
    %6 = vector.multi_reduction <add>, %3, %cst [1] : vector<16x32xf32> to vector<16xf32>
    %7 = vector.shape_cast %6 : vector<16xf32> to vector<16x1xf32>
    %cst_7 = arith.constant 3.200000e+01 : f32
    %8 = vector.broadcast %cst_7 : f32 to vector<16x1xf32>
    %9 = arith.divf %7, %8 : vector<16x1xf32>
    %10 = vector.broadcast %9 : vector<16x1xf32> to vector<16x32xf32>
    %11 = arith.subf %3, %10 : vector<16x32xf32>
    %12 = arith.mulf %11, %11 : vector<16x32xf32>
    %cst_8 = arith.constant dense<0.000000e+00> : vector<16xf32>
    %13 = vector.multi_reduction <add>, %12, %cst_8 [1] : vector<16x32xf32> to vector<16xf32>
    %14 = vector.shape_cast %13 : vector<16xf32> to vector<16x1xf32>
    %cst_9 = arith.constant 3.200000e+01 : f32
    %15 = vector.broadcast %cst_9 : f32 to vector<16x1xf32>
    %16 = arith.divf %14, %15 : vector<16x1xf32>
    %17 = vector.broadcast %9 : vector<16x1xf32> to vector<16x32xf32>
    %18 = arith.subf %3, %17 : vector<16x32xf32>
    %cst_10 = arith.constant 9.99999996E-13 : f32
    %19 = vector.broadcast %cst_10 : f32 to vector<16x1xf32>
    %20 = arith.addf %16, %19 : vector<16x1xf32>
    %21 = math.rsqrt %20 : vector<16x1xf32>
    %22 = vector.broadcast %21 : vector<16x1xf32> to vector<16x32xf32>
    %23 = arith.mulf %18, %22 : vector<16x32xf32>
    %24 = vector.broadcast %4 : vector<1x32xf32> to vector<16x32xf32>
    %25 = arith.mulf %23, %24 : vector<16x32xf32>
    %26 = vector.broadcast %5 : vector<1x32xf32> to vector<16x32xf32>
    %27 = arith.addf %25, %26 : vector<16x32xf32>
    %c0_11 = arith.constant 0 : index
    %c0_12 = arith.constant 0 : index
    %c0_13 = arith.constant 0 : index
    %28 = vector.load %arg4[%c0_11, %c0_12, %c0_13] : memref<2x32x96xf32, #tpu.memory_space<vmem>>, vector<1x32x96xf32>
    %29 = vector.shape_cast %28 : vector<1x32x96xf32> to vector<32x96xf32>
    %cst_14 = arith.constant dense<0.000000e+00> : vector<16x96xf32>
    %30 = tpu.matmul %27, %29, %cst_14 {dimension_numbers = #tpu.dot_dimension_numbers<[1], [0], [0], [1], [0, 0, 1, 1], [], []>} : vector<16x32xf32>, vector<32x96xf32>, vector<16x96xf32> -> vector<16x96xf32>
    %c0_15 = arith.constant 0 : index
    %c0_16 = arith.constant 0 : index
    %31 = vector.load %arg5[%c0_15, %c0_16] : memref<2x96xf32, #tpu.memory_space<vmem>>, vector<1x96xf32>
    %32 = vector.broadcast %31 : vector<1x96xf32> to vector<16x96xf32>
    %33 = arith.addf %30, %32 : vector<16x96xf32>
    %34 = vector.extract_strided_slice %33 {offsets = [0, 0], sizes = [16, 32], strides = [1, 1]} : vector<16x96xf32> to vector<16x32xf32>
    %35 = vector.extract_strided_slice %33 {offsets = [0, 32], sizes = [16, 32], strides = [1, 1]} : vector<16x96xf32> to vector<16x32xf32>
    %36 = vector.extract_strided_slice %33 {offsets = [0, 64], sizes = [16, 32], strides = [1, 1]} : vector<16x96xf32> to vector<16x32xf32>
    %37 = vector.extract_strided_slice %34 {offsets = [0, 0], sizes = [8, 8], strides = [1, 1]} : vector<16x32xf32> to vector<8x8xf32>
    %38 = vector.extract_strided_slice %35 {offsets = [0, 0], sizes = [8, 8], strides = [1, 1]} : vector<16x32xf32> to vector<8x8xf32>
    %39 = vector.extract_strided_slice %36 {offsets = [0, 0], sizes = [8, 8], strides = [1, 1]} : vector<16x32xf32> to vector<8x8xf32>
    %cst_17 = arith.constant dense<0.000000e+00> : vector<8x8xf32>
    %40 = tpu.matmul %37, %38, %cst_17 {dimension_numbers = #tpu.dot_dimension_numbers<[1], [1], [0], [0], [0, 0, 1, 0], [], []>} : vector<8x8xf32>, vector<8x8xf32>, vector<8x8xf32> -> vector<8x8xf32>
    %cst_18 = arith.constant 0.353553385 : f32
    %41 = vector.broadcast %cst_18 : f32 to vector<8x8xf32>
    %42 = arith.mulf %40, %41 : vector<8x8xf32>
    %cst_19 = arith.constant dense<0xFF800000> : vector<8xf32>
    %43 = vector.multi_reduction <maximumf>, %42, %cst_19 [1] : vector<8x8xf32> to vector<8xf32>
    %44 = vector.shape_cast %43 : vector<8xf32> to vector<8x1xf32>
    %45 = vector.broadcast %44 : vector<8x1xf32> to vector<8x8xf32>
    %46 = arith.subf %42, %45 : vector<8x8xf32>
    %47 = math.exp %46 : vector<8x8xf32>
    %cst_20 = arith.constant dense<0.000000e+00> : vector<8xf32>
    %48 = vector.multi_reduction <add>, %47, %cst_20 [1] : vector<8x8xf32> to vector<8xf32>
    %49 = vector.shape_cast %48 : vector<8xf32> to vector<8x1xf32>
    %50 = tpu.reciprocal %49 {approx = true} : vector<8x1xf32> -> vector<8x1xf32>
    %51 = vector.broadcast %50 : vector<8x1xf32> to vector<8x8xf32>
    %52 = arith.mulf %47, %51 : vector<8x8xf32>
    %cst_21 = arith.constant dense<0.000000e+00> : vector<8x8xf32>
    %53 = tpu.matmul %52, %39, %cst_21 {dimension_numbers = #tpu.dot_dimension_numbers<[1], [0], [0], [1], [0, 0, 1, 1], [], []>} : vector<8x8xf32>, vector<8x8xf32>, vector<8x8xf32> -> vector<8x8xf32>
    %54 = vector.extract_strided_slice %34 {offsets = [0, 8], sizes = [8, 8], strides = [1, 1]} : vector<16x32xf32> to vector<8x8xf32>
    %55 = vector.extract_strided_slice %35 {offsets = [0, 8], sizes = [8, 8], strides = [1, 1]} : vector<16x32xf32> to vector<8x8xf32>
    %56 = vector.extract_strided_slice %36 {offsets = [0, 8], sizes = [8, 8], strides = [1, 1]} : vector<16x32xf32> to vector<8x8xf32>
    %cst_22 = arith.constant dense<0.000000e+00> : vector<8x8xf32>
    %57 = tpu.matmul %54, %55, %cst_22 {dimension_numbers = #tpu.dot_dimension_numbers<[1], [1], [0], [0], [0, 0, 1, 0], [], []>} : vector<8x8xf32>, vector<8x8xf32>, vector<8x8xf32> -> vector<8x8xf32>
    %cst_23 = arith.constant 0.353553385 : f32
    %58 = vector.broadcast %cst_23 : f32 to vector<8x8xf32>
    %59 = arith.mulf %57, %58 : vector<8x8xf32>
    %cst_24 = arith.constant dense<0xFF800000> : vector<8xf32>
    %60 = vector.multi_reduction <maximumf>, %59, %cst_24 [1] : vector<8x8xf32> to vector<8xf32>
    %61 = vector.shape_cast %60 : vector<8xf32> to vector<8x1xf32>
    %62 = vector.broadcast %61 : vector<8x1xf32> to vector<8x8xf32>
    %63 = arith.subf %59, %62 : vector<8x8xf32>
    %64 = math.exp %63 : vector<8x8xf32>
    %cst_25 = arith.constant dense<0.000000e+00> : vector<8xf32>
    %65 = vector.multi_reduction <add>, %64, %cst_25 [1] : vector<8x8xf32> to vector<8xf32>
    %66 = vector.shape_cast %65 : vector<8xf32> to vector<8x1xf32>
    %67 = tpu.reciprocal %66 {approx = true} : vector<8x1xf32> -> vector<8x1xf32>
    %68 = vector.broadcast %67 : vector<8x1xf32> to vector<8x8xf32>
    %69 = arith.mulf %64, %68 : vector<8x8xf32>
    %cst_26 = arith.constant dense<0.000000e+00> : vector<8x8xf32>
    %70 = tpu.matmul %69, %56, %cst_26 {dimension_numbers = #tpu.dot_dimension_numbers<[1], [0], [0], [1], [0, 0, 1, 1], [], []>} : vector<8x8xf32>, vector<8x8xf32>, vector<8x8xf32> -> vector<8x8xf32>
    %71 = vector.extract_strided_slice %34 {offsets = [0, 16], sizes = [8, 8], strides = [1, 1]} : vector<16x32xf32> to vector<8x8xf32>
    %72 = vector.extract_strided_slice %35 {offsets = [0, 16], sizes = [8, 8], strides = [1, 1]} : vector<16x32xf32> to vector<8x8xf32>
    %73 = vector.extract_strided_slice %36 {offsets = [0, 16], sizes = [8, 8], strides = [1, 1]} : vector<16x32xf32> to vector<8x8xf32>
    %cst_27 = arith.constant dense<0.000000e+00> : vector<8x8xf32>
    %74 = tpu.matmul %71, %72, %cst_27 {dimension_numbers = #tpu.dot_dimension_numbers<[1], [1], [0], [0], [0, 0, 1, 0], [], []>} : vector<8x8xf32>, vector<8x8xf32>, vector<8x8xf32> -> vector<8x8xf32>
    %cst_28 = arith.constant 0.353553385 : f32
    %75 = vector.broadcast %cst_28 : f32 to vector<8x8xf32>
    %76 = arith.mulf %74, %75 : vector<8x8xf32>
    %cst_29 = arith.constant dense<0xFF800000> : vector<8xf32>
    %77 = vector.multi_reduction <maximumf>, %76, %cst_29 [1] : vector<8x8xf32> to vector<8xf32>
    %78 = vector.shape_cast %77 : vector<8xf32> to vector<8x1xf32>
    %79 = vector.broadcast %78 : vector<8x1xf32> to vector<8x8xf32>
    %80 = arith.subf %76, %79 : vector<8x8xf32>
    %81 = math.exp %80 : vector<8x8xf32>
    %cst_30 = arith.constant dense<0.000000e+00> : vector<8xf32>
    %82 = vector.multi_reduction <add>, %81, %cst_30 [1] : vector<8x8xf32> to vector<8xf32>
    %83 = vector.shape_cast %82 : vector<8xf32> to vector<8x1xf32>
    %84 = tpu.reciprocal %83 {approx = true} : vector<8x1xf32> -> vector<8x1xf32>
    %85 = vector.broadcast %84 : vector<8x1xf32> to vector<8x8xf32>
    %86 = arith.mulf %81, %85 : vector<8x8xf32>
    %cst_31 = arith.constant dense<0.000000e+00> : vector<8x8xf32>
    %87 = tpu.matmul %86, %73, %cst_31 {dimension_numbers = #tpu.dot_dimension_numbers<[1], [0], [0], [1], [0, 0, 1, 1], [], []>} : vector<8x8xf32>, vector<8x8xf32>, vector<8x8xf32> -> vector<8x8xf32>
    %88 = vector.extract_strided_slice %34 {offsets = [0, 24], sizes = [8, 8], strides = [1, 1]} : vector<16x32xf32> to vector<8x8xf32>
    %89 = vector.extract_strided_slice %35 {offsets = [0, 24], sizes = [8, 8], strides = [1, 1]} : vector<16x32xf32> to vector<8x8xf32>
    %90 = vector.extract_strided_slice %36 {offsets = [0, 24], sizes = [8, 8], strides = [1, 1]} : vector<16x32xf32> to vector<8x8xf32>
    %cst_32 = arith.constant dense<0.000000e+00> : vector<8x8xf32>
    %91 = tpu.matmul %88, %89, %cst_32 {dimension_numbers = #tpu.dot_dimension_numbers<[1], [1], [0], [0], [0, 0, 1, 0], [], []>} : vector<8x8xf32>, vector<8x8xf32>, vector<8x8xf32> -> vector<8x8xf32>
    %cst_33 = arith.constant 0.353553385 : f32
    %92 = vector.broadcast %cst_33 : f32 to vector<8x8xf32>
    %93 = arith.mulf %91, %92 : vector<8x8xf32>
    %cst_34 = arith.constant dense<0xFF800000> : vector<8xf32>
    %94 = vector.multi_reduction <maximumf>, %93, %cst_34 [1] : vector<8x8xf32> to vector<8xf32>
    %95 = vector.shape_cast %94 : vector<8xf32> to vector<8x1xf32>
    %96 = vector.broadcast %95 : vector<8x1xf32> to vector<8x8xf32>
    %97 = arith.subf %93, %96 : vector<8x8xf32>
    %98 = math.exp %97 : vector<8x8xf32>
    %cst_35 = arith.constant dense<0.000000e+00> : vector<8xf32>
    %99 = vector.multi_reduction <add>, %98, %cst_35 [1] : vector<8x8xf32> to vector<8xf32>
    %100 = vector.shape_cast %99 : vector<8xf32> to vector<8x1xf32>
    %101 = tpu.reciprocal %100 {approx = true} : vector<8x1xf32> -> vector<8x1xf32>
    %102 = vector.broadcast %101 : vector<8x1xf32> to vector<8x8xf32>
    %103 = arith.mulf %98, %102 : vector<8x8xf32>
    %cst_36 = arith.constant dense<0.000000e+00> : vector<8x8xf32>
    %104 = tpu.matmul %103, %90, %cst_36 {dimension_numbers = #tpu.dot_dimension_numbers<[1], [0], [0], [1], [0, 0, 1, 1], [], []>} : vector<8x8xf32>, vector<8x8xf32>, vector<8x8xf32> -> vector<8x8xf32>
    %105 = tpu.concatenate %53, %70, %87, %104 in 1 : vector<8x8xf32>, vector<8x8xf32>, vector<8x8xf32>, vector<8x8xf32> -> vector<8x32xf32>
    %106 = vector.extract_strided_slice %34 {offsets = [8, 0], sizes = [8, 8], strides = [1, 1]} : vector<16x32xf32> to vector<8x8xf32>
    %107 = vector.extract_strided_slice %35 {offsets = [8, 0], sizes = [8, 8], strides = [1, 1]} : vector<16x32xf32> to vector<8x8xf32>
    %108 = vector.extract_strided_slice %36 {offsets = [8, 0], sizes = [8, 8], strides = [1, 1]} : vector<16x32xf32> to vector<8x8xf32>
    %cst_37 = arith.constant dense<0.000000e+00> : vector<8x8xf32>
    %109 = tpu.matmul %106, %107, %cst_37 {dimension_numbers = #tpu.dot_dimension_numbers<[1], [1], [0], [0], [0, 0, 1, 0], [], []>} : vector<8x8xf32>, vector<8x8xf32>, vector<8x8xf32> -> vector<8x8xf32>
    %cst_38 = arith.constant 0.353553385 : f32
    %110 = vector.broadcast %cst_38 : f32 to vector<8x8xf32>
    %111 = arith.mulf %109, %110 : vector<8x8xf32>
    %cst_39 = arith.constant dense<0xFF800000> : vector<8xf32>
    %112 = vector.multi_reduction <maximumf>, %111, %cst_39 [1] : vector<8x8xf32> to vector<8xf32>
    %113 = vector.shape_cast %112 : vector<8xf32> to vector<8x1xf32>
    %114 = vector.broadcast %113 : vector<8x1xf32> to vector<8x8xf32>
    %115 = arith.subf %111, %114 : vector<8x8xf32>
    %116 = math.exp %115 : vector<8x8xf32>
    %cst_40 = arith.constant dense<0.000000e+00> : vector<8xf32>
    %117 = vector.multi_reduction <add>, %116, %cst_40 [1] : vector<8x8xf32> to vector<8xf32>
    %118 = vector.shape_cast %117 : vector<8xf32> to vector<8x1xf32>
    %119 = tpu.reciprocal %118 {approx = true} : vector<8x1xf32> -> vector<8x1xf32>
    %120 = vector.broadcast %119 : vector<8x1xf32> to vector<8x8xf32>
    %121 = arith.mulf %116, %120 : vector<8x8xf32>
    %cst_41 = arith.constant dense<0.000000e+00> : vector<8x8xf32>
    %122 = tpu.matmul %121, %108, %cst_41 {dimension_numbers = #tpu.dot_dimension_numbers<[1], [0], [0], [1], [0, 0, 1, 1], [], []>} : vector<8x8xf32>, vector<8x8xf32>, vector<8x8xf32> -> vector<8x8xf32>
    %123 = vector.extract_strided_slice %34 {offsets = [8, 8], sizes = [8, 8], strides = [1, 1]} : vector<16x32xf32> to vector<8x8xf32>
    %124 = vector.extract_strided_slice %35 {offsets = [8, 8], sizes = [8, 8], strides = [1, 1]} : vector<16x32xf32> to vector<8x8xf32>
    %125 = vector.extract_strided_slice %36 {offsets = [8, 8], sizes = [8, 8], strides = [1, 1]} : vector<16x32xf32> to vector<8x8xf32>
    %cst_42 = arith.constant dense<0.000000e+00> : vector<8x8xf32>
    %126 = tpu.matmul %123, %124, %cst_42 {dimension_numbers = #tpu.dot_dimension_numbers<[1], [1], [0], [0], [0, 0, 1, 0], [], []>} : vector<8x8xf32>, vector<8x8xf32>, vector<8x8xf32> -> vector<8x8xf32>
    %cst_43 = arith.constant 0.353553385 : f32
    %127 = vector.broadcast %cst_43 : f32 to vector<8x8xf32>
    %128 = arith.mulf %126, %127 : vector<8x8xf32>
    %cst_44 = arith.constant dense<0xFF800000> : vector<8xf32>
    %129 = vector.multi_reduction <maximumf>, %128, %cst_44 [1] : vector<8x8xf32> to vector<8xf32>
    %130 = vector.shape_cast %129 : vector<8xf32> to vector<8x1xf32>
    %131 = vector.broadcast %130 : vector<8x1xf32> to vector<8x8xf32>
    %132 = arith.subf %128, %131 : vector<8x8xf32>
    %133 = math.exp %132 : vector<8x8xf32>
    %cst_45 = arith.constant dense<0.000000e+00> : vector<8xf32>
    %134 = vector.multi_reduction <add>, %133, %cst_45 [1] : vector<8x8xf32> to vector<8xf32>
    %135 = vector.shape_cast %134 : vector<8xf32> to vector<8x1xf32>
    %136 = tpu.reciprocal %135 {approx = true} : vector<8x1xf32> -> vector<8x1xf32>
    %137 = vector.broadcast %136 : vector<8x1xf32> to vector<8x8xf32>
    %138 = arith.mulf %133, %137 : vector<8x8xf32>
    %cst_46 = arith.constant dense<0.000000e+00> : vector<8x8xf32>
    %139 = tpu.matmul %138, %125, %cst_46 {dimension_numbers = #tpu.dot_dimension_numbers<[1], [0], [0], [1], [0, 0, 1, 1], [], []>} : vector<8x8xf32>, vector<8x8xf32>, vector<8x8xf32> -> vector<8x8xf32>
    %140 = vector.extract_strided_slice %34 {offsets = [8, 16], sizes = [8, 8], strides = [1, 1]} : vector<16x32xf32> to vector<8x8xf32>
    %141 = vector.extract_strided_slice %35 {offsets = [8, 16], sizes = [8, 8], strides = [1, 1]} : vector<16x32xf32> to vector<8x8xf32>
    %142 = vector.extract_strided_slice %36 {offsets = [8, 16], sizes = [8, 8], strides = [1, 1]} : vector<16x32xf32> to vector<8x8xf32>
    %cst_47 = arith.constant dense<0.000000e+00> : vector<8x8xf32>
    %143 = tpu.matmul %140, %141, %cst_47 {dimension_numbers = #tpu.dot_dimension_numbers<[1], [1], [0], [0], [0, 0, 1, 0], [], []>} : vector<8x8xf32>, vector<8x8xf32>, vector<8x8xf32> -> vector<8x8xf32>
    %cst_48 = arith.constant 0.353553385 : f32
    %144 = vector.broadcast %cst_48 : f32 to vector<8x8xf32>
    %145 = arith.mulf %143, %144 : vector<8x8xf32>
    %cst_49 = arith.constant dense<0xFF800000> : vector<8xf32>
    %146 = vector.multi_reduction <maximumf>, %145, %cst_49 [1] : vector<8x8xf32> to vector<8xf32>
    %147 = vector.shape_cast %146 : vector<8xf32> to vector<8x1xf32>
    %148 = vector.broadcast %147 : vector<8x1xf32> to vector<8x8xf32>
    %149 = arith.subf %145, %148 : vector<8x8xf32>
    %150 = math.exp %149 : vector<8x8xf32>
    %cst_50 = arith.constant dense<0.000000e+00> : vector<8xf32>
    %151 = vector.multi_reduction <add>, %150, %cst_50 [1] : vector<8x8xf32> to vector<8xf32>
    %152 = vector.shape_cast %151 : vector<8xf32> to vector<8x1xf32>
    %153 = tpu.reciprocal %152 {approx = true} : vector<8x1xf32> -> vector<8x1xf32>
    %154 = vector.broadcast %153 : vector<8x1xf32> to vector<8x8xf32>
    %155 = arith.mulf %150, %154 : vector<8x8xf32>
    %cst_51 = arith.constant dense<0.000000e+00> : vector<8x8xf32>
    %156 = tpu.matmul %155, %142, %cst_51 {dimension_numbers = #tpu.dot_dimension_numbers<[1], [0], [0], [1], [0, 0, 1, 1], [], []>} : vector<8x8xf32>, vector<8x8xf32>, vector<8x8xf32> -> vector<8x8xf32>
    %157 = vector.extract_strided_slice %34 {offsets = [8, 24], sizes = [8, 8], strides = [1, 1]} : vector<16x32xf32> to vector<8x8xf32>
    %158 = vector.extract_strided_slice %35 {offsets = [8, 24], sizes = [8, 8], strides = [1, 1]} : vector<16x32xf32> to vector<8x8xf32>
    %159 = vector.extract_strided_slice %36 {offsets = [8, 24], sizes = [8, 8], strides = [1, 1]} : vector<16x32xf32> to vector<8x8xf32>
    %cst_52 = arith.constant dense<0.000000e+00> : vector<8x8xf32>
    %160 = tpu.matmul %157, %158, %cst_52 {dimension_numbers = #tpu.dot_dimension_numbers<[1], [1], [0], [0], [0, 0, 1, 0], [], []>} : vector<8x8xf32>, vector<8x8xf32>, vector<8x8xf32> -> vector<8x8xf32>
    %cst_53 = arith.constant 0.353553385 : f32
    %161 = vector.broadcast %cst_53 : f32 to vector<8x8xf32>
    %162 = arith.mulf %160, %161 : vector<8x8xf32>
    %cst_54 = arith.constant dense<0xFF800000> : vector<8xf32>
    %163 = vector.multi_reduction <maximumf>, %162, %cst_54 [1] : vector<8x8xf32> to vector<8xf32>
    %164 = vector.shape_cast %163 : vector<8xf32> to vector<8x1xf32>
    %165 = vector.broadcast %164 : vector<8x1xf32> to vector<8x8xf32>
    %166 = arith.subf %162, %165 : vector<8x8xf32>
    %167 = math.exp %166 : vector<8x8xf32>
    %cst_55 = arith.constant dense<0.000000e+00> : vector<8xf32>
    %168 = vector.multi_reduction <add>, %167, %cst_55 [1] : vector<8x8xf32> to vector<8xf32>
    %169 = vector.shape_cast %168 : vector<8xf32> to vector<8x1xf32>
    %170 = tpu.reciprocal %169 {approx = true} : vector<8x1xf32> -> vector<8x1xf32>
    %171 = vector.broadcast %170 : vector<8x1xf32> to vector<8x8xf32>
    %172 = arith.mulf %167, %171 : vector<8x8xf32>
    %cst_56 = arith.constant dense<0.000000e+00> : vector<8x8xf32>
    %173 = tpu.matmul %172, %159, %cst_56 {dimension_numbers = #tpu.dot_dimension_numbers<[1], [0], [0], [1], [0, 0, 1, 1], [], []>} : vector<8x8xf32>, vector<8x8xf32>, vector<8x8xf32> -> vector<8x8xf32>
    %174 = tpu.concatenate %122, %139, %156, %173 in 1 : vector<8x8xf32>, vector<8x8xf32>, vector<8x8xf32>, vector<8x8xf32> -> vector<8x32xf32>
    %175 = tpu.concatenate %105, %174 in 0 : vector<8x32xf32>, vector<8x32xf32> -> vector<16x32xf32>
    %c0_57 = arith.constant 0 : index
    %c0_58 = arith.constant 0 : index
    %c0_59 = arith.constant 0 : index
    %176 = vector.load %arg6[%c0_57, %c0_58, %c0_59] : memref<2x32x32xf32, #tpu.memory_space<vmem>>, vector<1x32x32xf32>
    %177 = vector.shape_cast %176 : vector<1x32x32xf32> to vector<32x32xf32>
    %cst_60 = arith.constant dense<0.000000e+00> : vector<16x32xf32>
    %178 = tpu.matmul %175, %177, %cst_60 {dimension_numbers = #tpu.dot_dimension_numbers<[1], [0], [0], [1], [0, 0, 1, 1], [], []>} : vector<16x32xf32>, vector<32x32xf32>, vector<16x32xf32> -> vector<16x32xf32>
    %c0_61 = arith.constant 0 : index
    %c0_62 = arith.constant 0 : index
    %179 = vector.load %arg7[%c0_61, %c0_62] : memref<2x32xf32, #tpu.memory_space<vmem>>, vector<1x32xf32>
    %180 = vector.broadcast %179 : vector<1x32xf32> to vector<16x32xf32>
    %181 = arith.addf %178, %180 : vector<16x32xf32>
    %182 = arith.addf %27, %181 : vector<16x32xf32>
    %c0_63 = arith.constant 0 : index
    %c0_64 = arith.constant 0 : index
    %183 = vector.load %arg8[%c0_63, %c0_64] : memref<2x32xf32, #tpu.memory_space<vmem>>, vector<1x32xf32>
    %c0_65 = arith.constant 0 : index
    %c0_66 = arith.constant 0 : index
    %184 = vector.load %arg9[%c0_65, %c0_66] : memref<2x32xf32, #tpu.memory_space<vmem>>, vector<1x32xf32>
    %cst_67 = arith.constant dense<0.000000e+00> : vector<16xf32>
    %185 = vector.multi_reduction <add>, %182, %cst_67 [1] : vector<16x32xf32> to vector<16xf32>
    %186 = vector.shape_cast %185 : vector<16xf32> to vector<16x1xf32>
    %cst_68 = arith.constant 3.200000e+01 : f32
    %187 = vector.broadcast %cst_68 : f32 to vector<16x1xf32>
    %188 = arith.divf %186, %187 : vector<16x1xf32>
    %189 = vector.broadcast %188 : vector<16x1xf32> to vector<16x32xf32>
    %190 = arith.subf %182, %189 : vector<16x32xf32>
    %191 = arith.mulf %190, %190 : vector<16x32xf32>
    %cst_69 = arith.constant dense<0.000000e+00> : vector<16xf32>
    %192 = vector.multi_reduction <add>, %191, %cst_69 [1] : vector<16x32xf32> to vector<16xf32>
    %193 = vector.shape_cast %192 : vector<16xf32> to vector<16x1xf32>
    %cst_70 = arith.constant 3.200000e+01 : f32
    %194 = vector.broadcast %cst_70 : f32 to vector<16x1xf32>
    %195 = arith.divf %193, %194 : vector<16x1xf32>
    %196 = vector.broadcast %188 : vector<16x1xf32> to vector<16x32xf32>
    %197 = arith.subf %182, %196 : vector<16x32xf32>
    %cst_71 = arith.constant 9.99999996E-13 : f32
    %198 = vector.broadcast %cst_71 : f32 to vector<16x1xf32>
    %199 = arith.addf %195, %198 : vector<16x1xf32>
    %200 = math.rsqrt %199 : vector<16x1xf32>
    %201 = vector.broadcast %200 : vector<16x1xf32> to vector<16x32xf32>
    %202 = arith.mulf %197, %201 : vector<16x32xf32>
    %203 = vector.broadcast %183 : vector<1x32xf32> to vector<16x32xf32>
    %204 = arith.mulf %202, %203 : vector<16x32xf32>
    %205 = vector.broadcast %184 : vector<1x32xf32> to vector<16x32xf32>
    %206 = arith.addf %204, %205 : vector<16x32xf32>
    %c0_72 = arith.constant 0 : index
    %c0_73 = arith.constant 0 : index
    %c0_74 = arith.constant 0 : index
    %207 = vector.load %arg10[%c0_72, %c0_73, %c0_74] : memref<2x32x64xf32, #tpu.memory_space<vmem>>, vector<1x32x64xf32>
    %208 = vector.shape_cast %207 : vector<1x32x64xf32> to vector<32x64xf32>
    %cst_75 = arith.constant dense<0.000000e+00> : vector<16x64xf32>
    %209 = tpu.matmul %206, %208, %cst_75 {dimension_numbers = #tpu.dot_dimension_numbers<[1], [0], [0], [1], [0, 0, 1, 1], [], []>} : vector<16x32xf32>, vector<32x64xf32>, vector<16x64xf32> -> vector<16x64xf32>
    %c0_76 = arith.constant 0 : index
    %c0_77 = arith.constant 0 : index
    %210 = vector.load %arg11[%c0_76, %c0_77] : memref<2x64xf32, #tpu.memory_space<vmem>>, vector<1x64xf32>
    %211 = vector.broadcast %210 : vector<1x64xf32> to vector<16x64xf32>
    %212 = arith.addf %209, %211 : vector<16x64xf32>
    %cst_78 = arith.constant 5.000000e-01 : f32
    %213 = vector.broadcast %cst_78 : f32 to vector<16x64xf32>
    %214 = arith.mulf %213, %212 : vector<16x64xf32>
    %cst_79 = arith.constant 4.471500e-02 : f32
    %215 = vector.broadcast %cst_79 : f32 to vector<16x64xf32>
    %216 = arith.mulf %215, %212 : vector<16x64xf32>
    %217 = arith.mulf %216, %212 : vector<16x64xf32>
    %218 = arith.mulf %217, %212 : vector<16x64xf32>
    %219 = arith.addf %212, %218 : vector<16x64xf32>
    %cst_80 = arith.constant 0.797884583 : f32
    %220 = vector.broadcast %cst_80 : f32 to vector<16x64xf32>
    %221 = arith.mulf %220, %219 : vector<16x64xf32>
    %222 = math.tanh %221 : vector<16x64xf32>
    %cst_81 = arith.constant 1.000000e+00 : f32
    %223 = vector.broadcast %cst_81 : f32 to vector<16x64xf32>
    %224 = arith.addf %223, %222 : vector<16x64xf32>
    %225 = arith.mulf %214, %224 : vector<16x64xf32>
    %c0_82 = arith.constant 0 : index
    %c0_83 = arith.constant 0 : index
    %c0_84 = arith.constant 0 : index
    %226 = vector.load %arg12[%c0_82, %c0_83, %c0_84] : memref<2x64x32xf32, #tpu.memory_space<vmem>>, vector<1x64x32xf32>
    %227 = vector.shape_cast %226 : vector<1x64x32xf32> to vector<64x32xf32>
    %cst_85 = arith.constant dense<0.000000e+00> : vector<16x32xf32>
    %228 = tpu.matmul %225, %227, %cst_85 {dimension_numbers = #tpu.dot_dimension_numbers<[1], [0], [0], [1], [0, 0, 1, 1], [], []>} : vector<16x64xf32>, vector<64x32xf32>, vector<16x32xf32> -> vector<16x32xf32>
    %c0_86 = arith.constant 0 : index
    %c0_87 = arith.constant 0 : index
    %229 = vector.load %arg13[%c0_86, %c0_87] : memref<2x32xf32, #tpu.memory_space<vmem>>, vector<1x32xf32>
    %230 = vector.broadcast %229 : vector<1x32xf32> to vector<16x32xf32>
    %231 = arith.addf %228, %230 : vector<16x32xf32>
    %232 = arith.addf %206, %231 : vector<16x32xf32>
    %c0_88 = arith.constant 0 : index
    %c0_89 = arith.constant 0 : index
    %233 = vector.load %arg14[%c0_88, %c0_89] : memref<2x32xf32, #tpu.memory_space<vmem>>, vector<1x32xf32>
    %c0_90 = arith.constant 0 : index
    %c0_91 = arith.constant 0 : index
    %234 = vector.load %arg15[%c0_90, %c0_91] : memref<2x32xf32, #tpu.memory_space<vmem>>, vector<1x32xf32>
    %cst_92 = arith.constant dense<0.000000e+00> : vector<16xf32>
    %235 = vector.multi_reduction <add>, %232, %cst_92 [1] : vector<16x32xf32> to vector<16xf32>
    %236 = vector.shape_cast %235 : vector<16xf32> to vector<16x1xf32>
    %cst_93 = arith.constant 3.200000e+01 : f32
    %237 = vector.broadcast %cst_93 : f32 to vector<16x1xf32>
    %238 = arith.divf %236, %237 : vector<16x1xf32>
    %239 = vector.broadcast %238 : vector<16x1xf32> to vector<16x32xf32>
    %240 = arith.subf %232, %239 : vector<16x32xf32>
    %241 = arith.mulf %240, %240 : vector<16x32xf32>
    %cst_94 = arith.constant dense<0.000000e+00> : vector<16xf32>
    %242 = vector.multi_reduction <add>, %241, %cst_94 [1] : vector<16x32xf32> to vector<16xf32>
    %243 = vector.shape_cast %242 : vector<16xf32> to vector<16x1xf32>
    %cst_95 = arith.constant 3.200000e+01 : f32
    %244 = vector.broadcast %cst_95 : f32 to vector<16x1xf32>
    %245 = arith.divf %243, %244 : vector<16x1xf32>
    %246 = vector.broadcast %238 : vector<16x1xf32> to vector<16x32xf32>
    %247 = arith.subf %232, %246 : vector<16x32xf32>
    %cst_96 = arith.constant 9.99999996E-13 : f32
    %248 = vector.broadcast %cst_96 : f32 to vector<16x1xf32>
    %249 = arith.addf %245, %248 : vector<16x1xf32>
    %250 = math.rsqrt %249 : vector<16x1xf32>
    %251 = vector.broadcast %250 : vector<16x1xf32> to vector<16x32xf32>
    %252 = arith.mulf %247, %251 : vector<16x32xf32>
    %253 = vector.broadcast %233 : vector<1x32xf32> to vector<16x32xf32>
    %254 = arith.mulf %252, %253 : vector<16x32xf32>
    %255 = vector.broadcast %234 : vector<1x32xf32> to vector<16x32xf32>
    %256 = arith.addf %254, %255 : vector<16x32xf32>
    %c1 = arith.constant 1 : index
    %c0_97 = arith.constant 0 : index
    %c0_98 = arith.constant 0 : index
    %257 = vector.load %arg4[%c1, %c0_97, %c0_98] : memref<2x32x96xf32, #tpu.memory_space<vmem>>, vector<1x32x96xf32>
    %258 = vector.shape_cast %257 : vector<1x32x96xf32> to vector<32x96xf32>
    %cst_99 = arith.constant dense<0.000000e+00> : vector<16x96xf32>
    %259 = tpu.matmul %256, %258, %cst_99 {dimension_numbers = #tpu.dot_dimension_numbers<[1], [0], [0], [1], [0, 0, 1, 1], [], []>} : vector<16x32xf32>, vector<32x96xf32>, vector<16x96xf32> -> vector<16x96xf32>
    %c1_100 = arith.constant 1 : index
    %c0_101 = arith.constant 0 : index
    %260 = vector.load %arg5[%c1_100, %c0_101] : memref<2x96xf32, #tpu.memory_space<vmem>>, vector<1x96xf32>
    %261 = vector.broadcast %260 : vector<1x96xf32> to vector<16x96xf32>
    %262 = arith.addf %259, %261 : vector<16x96xf32>
    %263 = vector.extract_strided_slice %262 {offsets = [0, 0], sizes = [16, 32], strides = [1, 1]} : vector<16x96xf32> to vector<16x32xf32>
    %264 = vector.extract_strided_slice %262 {offsets = [0, 32], sizes = [16, 32], strides = [1, 1]} : vector<16x96xf32> to vector<16x32xf32>
    %265 = vector.extract_strided_slice %262 {offsets = [0, 64], sizes = [16, 32], strides = [1, 1]} : vector<16x96xf32> to vector<16x32xf32>
    %266 = vector.extract_strided_slice %263 {offsets = [0, 0], sizes = [8, 8], strides = [1, 1]} : vector<16x32xf32> to vector<8x8xf32>
    %267 = vector.extract_strided_slice %264 {offsets = [0, 0], sizes = [8, 8], strides = [1, 1]} : vector<16x32xf32> to vector<8x8xf32>
    %268 = vector.extract_strided_slice %265 {offsets = [0, 0], sizes = [8, 8], strides = [1, 1]} : vector<16x32xf32> to vector<8x8xf32>
    %cst_102 = arith.constant dense<0.000000e+00> : vector<8x8xf32>
    %269 = tpu.matmul %266, %267, %cst_102 {dimension_numbers = #tpu.dot_dimension_numbers<[1], [1], [0], [0], [0, 0, 1, 0], [], []>} : vector<8x8xf32>, vector<8x8xf32>, vector<8x8xf32> -> vector<8x8xf32>
    %cst_103 = arith.constant 0.353553385 : f32
    %270 = vector.broadcast %cst_103 : f32 to vector<8x8xf32>
    %271 = arith.mulf %269, %270 : vector<8x8xf32>
    %cst_104 = arith.constant dense<0xFF800000> : vector<8xf32>
    %272 = vector.multi_reduction <maximumf>, %271, %cst_104 [1] : vector<8x8xf32> to vector<8xf32>
    %273 = vector.shape_cast %272 : vector<8xf32> to vector<8x1xf32>
    %274 = vector.broadcast %273 : vector<8x1xf32> to vector<8x8xf32>
    %275 = arith.subf %271, %274 : vector<8x8xf32>
    %276 = math.exp %275 : vector<8x8xf32>
    %cst_105 = arith.constant dense<0.000000e+00> : vector<8xf32>
    %277 = vector.multi_reduction <add>, %276, %cst_105 [1] : vector<8x8xf32> to vector<8xf32>
    %278 = vector.shape_cast %277 : vector<8xf32> to vector<8x1xf32>
    %279 = tpu.reciprocal %278 {approx = true} : vector<8x1xf32> -> vector<8x1xf32>
    %280 = vector.broadcast %279 : vector<8x1xf32> to vector<8x8xf32>
    %281 = arith.mulf %276, %280 : vector<8x8xf32>
    %cst_106 = arith.constant dense<0.000000e+00> : vector<8x8xf32>
    %282 = tpu.matmul %281, %268, %cst_106 {dimension_numbers = #tpu.dot_dimension_numbers<[1], [0], [0], [1], [0, 0, 1, 1], [], []>} : vector<8x8xf32>, vector<8x8xf32>, vector<8x8xf32> -> vector<8x8xf32>
    %283 = vector.extract_strided_slice %263 {offsets = [0, 8], sizes = [8, 8], strides = [1, 1]} : vector<16x32xf32> to vector<8x8xf32>
    %284 = vector.extract_strided_slice %264 {offsets = [0, 8], sizes = [8, 8], strides = [1, 1]} : vector<16x32xf32> to vector<8x8xf32>
    %285 = vector.extract_strided_slice %265 {offsets = [0, 8], sizes = [8, 8], strides = [1, 1]} : vector<16x32xf32> to vector<8x8xf32>
    %cst_107 = arith.constant dense<0.000000e+00> : vector<8x8xf32>
    %286 = tpu.matmul %283, %284, %cst_107 {dimension_numbers = #tpu.dot_dimension_numbers<[1], [1], [0], [0], [0, 0, 1, 0], [], []>} : vector<8x8xf32>, vector<8x8xf32>, vector<8x8xf32> -> vector<8x8xf32>
    %cst_108 = arith.constant 0.353553385 : f32
    %287 = vector.broadcast %cst_108 : f32 to vector<8x8xf32>
    %288 = arith.mulf %286, %287 : vector<8x8xf32>
    %cst_109 = arith.constant dense<0xFF800000> : vector<8xf32>
    %289 = vector.multi_reduction <maximumf>, %288, %cst_109 [1] : vector<8x8xf32> to vector<8xf32>
    %290 = vector.shape_cast %289 : vector<8xf32> to vector<8x1xf32>
    %291 = vector.broadcast %290 : vector<8x1xf32> to vector<8x8xf32>
    %292 = arith.subf %288, %291 : vector<8x8xf32>
    %293 = math.exp %292 : vector<8x8xf32>
    %cst_110 = arith.constant dense<0.000000e+00> : vector<8xf32>
    %294 = vector.multi_reduction <add>, %293, %cst_110 [1] : vector<8x8xf32> to vector<8xf32>
    %295 = vector.shape_cast %294 : vector<8xf32> to vector<8x1xf32>
    %296 = tpu.reciprocal %295 {approx = true} : vector<8x1xf32> -> vector<8x1xf32>
    %297 = vector.broadcast %296 : vector<8x1xf32> to vector<8x8xf32>
    %298 = arith.mulf %293, %297 : vector<8x8xf32>
    %cst_111 = arith.constant dense<0.000000e+00> : vector<8x8xf32>
    %299 = tpu.matmul %298, %285, %cst_111 {dimension_numbers = #tpu.dot_dimension_numbers<[1], [0], [0], [1], [0, 0, 1, 1], [], []>} : vector<8x8xf32>, vector<8x8xf32>, vector<8x8xf32> -> vector<8x8xf32>
    %300 = vector.extract_strided_slice %263 {offsets = [0, 16], sizes = [8, 8], strides = [1, 1]} : vector<16x32xf32> to vector<8x8xf32>
    %301 = vector.extract_strided_slice %264 {offsets = [0, 16], sizes = [8, 8], strides = [1, 1]} : vector<16x32xf32> to vector<8x8xf32>
    %302 = vector.extract_strided_slice %265 {offsets = [0, 16], sizes = [8, 8], strides = [1, 1]} : vector<16x32xf32> to vector<8x8xf32>
    %cst_112 = arith.constant dense<0.000000e+00> : vector<8x8xf32>
    %303 = tpu.matmul %300, %301, %cst_112 {dimension_numbers = #tpu.dot_dimension_numbers<[1], [1], [0], [0], [0, 0, 1, 0], [], []>} : vector<8x8xf32>, vector<8x8xf32>, vector<8x8xf32> -> vector<8x8xf32>
    %cst_113 = arith.constant 0.353553385 : f32
    %304 = vector.broadcast %cst_113 : f32 to vector<8x8xf32>
    %305 = arith.mulf %303, %304 : vector<8x8xf32>
    %cst_114 = arith.constant dense<0xFF800000> : vector<8xf32>
    %306 = vector.multi_reduction <maximumf>, %305, %cst_114 [1] : vector<8x8xf32> to vector<8xf32>
    %307 = vector.shape_cast %306 : vector<8xf32> to vector<8x1xf32>
    %308 = vector.broadcast %307 : vector<8x1xf32> to vector<8x8xf32>
    %309 = arith.subf %305, %308 : vector<8x8xf32>
    %310 = math.exp %309 : vector<8x8xf32>
    %cst_115 = arith.constant dense<0.000000e+00> : vector<8xf32>
    %311 = vector.multi_reduction <add>, %310, %cst_115 [1] : vector<8x8xf32> to vector<8xf32>
    %312 = vector.shape_cast %311 : vector<8xf32> to vector<8x1xf32>
    %313 = tpu.reciprocal %312 {approx = true} : vector<8x1xf32> -> vector<8x1xf32>
    %314 = vector.broadcast %313 : vector<8x1xf32> to vector<8x8xf32>
    %315 = arith.mulf %310, %314 : vector<8x8xf32>
    %cst_116 = arith.constant dense<0.000000e+00> : vector<8x8xf32>
    %316 = tpu.matmul %315, %302, %cst_116 {dimension_numbers = #tpu.dot_dimension_numbers<[1], [0], [0], [1], [0, 0, 1, 1], [], []>} : vector<8x8xf32>, vector<8x8xf32>, vector<8x8xf32> -> vector<8x8xf32>
    %317 = vector.extract_strided_slice %263 {offsets = [0, 24], sizes = [8, 8], strides = [1, 1]} : vector<16x32xf32> to vector<8x8xf32>
    %318 = vector.extract_strided_slice %264 {offsets = [0, 24], sizes = [8, 8], strides = [1, 1]} : vector<16x32xf32> to vector<8x8xf32>
    %319 = vector.extract_strided_slice %265 {offsets = [0, 24], sizes = [8, 8], strides = [1, 1]} : vector<16x32xf32> to vector<8x8xf32>
    %cst_117 = arith.constant dense<0.000000e+00> : vector<8x8xf32>
    %320 = tpu.matmul %317, %318, %cst_117 {dimension_numbers = #tpu.dot_dimension_numbers<[1], [1], [0], [0], [0, 0, 1, 0], [], []>} : vector<8x8xf32>, vector<8x8xf32>, vector<8x8xf32> -> vector<8x8xf32>
    %cst_118 = arith.constant 0.353553385 : f32
    %321 = vector.broadcast %cst_118 : f32 to vector<8x8xf32>
    %322 = arith.mulf %320, %321 : vector<8x8xf32>
    %cst_119 = arith.constant dense<0xFF800000> : vector<8xf32>
    %323 = vector.multi_reduction <maximumf>, %322, %cst_119 [1] : vector<8x8xf32> to vector<8xf32>
    %324 = vector.shape_cast %323 : vector<8xf32> to vector<8x1xf32>
    %325 = vector.broadcast %324 : vector<8x1xf32> to vector<8x8xf32>
    %326 = arith.subf %322, %325 : vector<8x8xf32>
    %327 = math.exp %326 : vector<8x8xf32>
    %cst_120 = arith.constant dense<0.000000e+00> : vector<8xf32>
    %328 = vector.multi_reduction <add>, %327, %cst_120 [1] : vector<8x8xf32> to vector<8xf32>
    %329 = vector.shape_cast %328 : vector<8xf32> to vector<8x1xf32>
    %330 = tpu.reciprocal %329 {approx = true} : vector<8x1xf32> -> vector<8x1xf32>
    %331 = vector.broadcast %330 : vector<8x1xf32> to vector<8x8xf32>
    %332 = arith.mulf %327, %331 : vector<8x8xf32>
    %cst_121 = arith.constant dense<0.000000e+00> : vector<8x8xf32>
    %333 = tpu.matmul %332, %319, %cst_121 {dimension_numbers = #tpu.dot_dimension_numbers<[1], [0], [0], [1], [0, 0, 1, 1], [], []>} : vector<8x8xf32>, vector<8x8xf32>, vector<8x8xf32> -> vector<8x8xf32>
    %334 = tpu.concatenate %282, %299, %316, %333 in 1 : vector<8x8xf32>, vector<8x8xf32>, vector<8x8xf32>, vector<8x8xf32> -> vector<8x32xf32>
    %335 = vector.extract_strided_slice %263 {offsets = [8, 0], sizes = [8, 8], strides = [1, 1]} : vector<16x32xf32> to vector<8x8xf32>
    %336 = vector.extract_strided_slice %264 {offsets = [8, 0], sizes = [8, 8], strides = [1, 1]} : vector<16x32xf32> to vector<8x8xf32>
    %337 = vector.extract_strided_slice %265 {offsets = [8, 0], sizes = [8, 8], strides = [1, 1]} : vector<16x32xf32> to vector<8x8xf32>
    %cst_122 = arith.constant dense<0.000000e+00> : vector<8x8xf32>
    %338 = tpu.matmul %335, %336, %cst_122 {dimension_numbers = #tpu.dot_dimension_numbers<[1], [1], [0], [0], [0, 0, 1, 0], [], []>} : vector<8x8xf32>, vector<8x8xf32>, vector<8x8xf32> -> vector<8x8xf32>
    %cst_123 = arith.constant 0.353553385 : f32
    %339 = vector.broadcast %cst_123 : f32 to vector<8x8xf32>
    %340 = arith.mulf %338, %339 : vector<8x8xf32>
    %cst_124 = arith.constant dense<0xFF800000> : vector<8xf32>
    %341 = vector.multi_reduction <maximumf>, %340, %cst_124 [1] : vector<8x8xf32> to vector<8xf32>
    %342 = vector.shape_cast %341 : vector<8xf32> to vector<8x1xf32>
    %343 = vector.broadcast %342 : vector<8x1xf32> to vector<8x8xf32>
    %344 = arith.subf %340, %343 : vector<8x8xf32>
    %345 = math.exp %344 : vector<8x8xf32>
    %cst_125 = arith.constant dense<0.000000e+00> : vector<8xf32>
    %346 = vector.multi_reduction <add>, %345, %cst_125 [1] : vector<8x8xf32> to vector<8xf32>
    %347 = vector.shape_cast %346 : vector<8xf32> to vector<8x1xf32>
    %348 = tpu.reciprocal %347 {approx = true} : vector<8x1xf32> -> vector<8x1xf32>
    %349 = vector.broadcast %348 : vector<8x1xf32> to vector<8x8xf32>
    %350 = arith.mulf %345, %349 : vector<8x8xf32>
    %cst_126 = arith.constant dense<0.000000e+00> : vector<8x8xf32>
    %351 = tpu.matmul %350, %337, %cst_126 {dimension_numbers = #tpu.dot_dimension_numbers<[1], [0], [0], [1], [0, 0, 1, 1], [], []>} : vector<8x8xf32>, vector<8x8xf32>, vector<8x8xf32> -> vector<8x8xf32>
    %352 = vector.extract_strided_slice %263 {offsets = [8, 8], sizes = [8, 8], strides = [1, 1]} : vector<16x32xf32> to vector<8x8xf32>
    %353 = vector.extract_strided_slice %264 {offsets = [8, 8], sizes = [8, 8], strides = [1, 1]} : vector<16x32xf32> to vector<8x8xf32>
    %354 = vector.extract_strided_slice %265 {offsets = [8, 8], sizes = [8, 8], strides = [1, 1]} : vector<16x32xf32> to vector<8x8xf32>
    %cst_127 = arith.constant dense<0.000000e+00> : vector<8x8xf32>
    %355 = tpu.matmul %352, %353, %cst_127 {dimension_numbers = #tpu.dot_dimension_numbers<[1], [1], [0], [0], [0, 0, 1, 0], [], []>} : vector<8x8xf32>, vector<8x8xf32>, vector<8x8xf32> -> vector<8x8xf32>
    %cst_128 = arith.constant 0.353553385 : f32
    %356 = vector.broadcast %cst_128 : f32 to vector<8x8xf32>
    %357 = arith.mulf %355, %356 : vector<8x8xf32>
    %cst_129 = arith.constant dense<0xFF800000> : vector<8xf32>
    %358 = vector.multi_reduction <maximumf>, %357, %cst_129 [1] : vector<8x8xf32> to vector<8xf32>
    %359 = vector.shape_cast %358 : vector<8xf32> to vector<8x1xf32>
    %360 = vector.broadcast %359 : vector<8x1xf32> to vector<8x8xf32>
    %361 = arith.subf %357, %360 : vector<8x8xf32>
    %362 = math.exp %361 : vector<8x8xf32>
    %cst_130 = arith.constant dense<0.000000e+00> : vector<8xf32>
    %363 = vector.multi_reduction <add>, %362, %cst_130 [1] : vector<8x8xf32> to vector<8xf32>
    %364 = vector.shape_cast %363 : vector<8xf32> to vector<8x1xf32>
    %365 = tpu.reciprocal %364 {approx = true} : vector<8x1xf32> -> vector<8x1xf32>
    %366 = vector.broadcast %365 : vector<8x1xf32> to vector<8x8xf32>
    %367 = arith.mulf %362, %366 : vector<8x8xf32>
    %cst_131 = arith.constant dense<0.000000e+00> : vector<8x8xf32>
    %368 = tpu.matmul %367, %354, %cst_131 {dimension_numbers = #tpu.dot_dimension_numbers<[1], [0], [0], [1], [0, 0, 1, 1], [], []>} : vector<8x8xf32>, vector<8x8xf32>, vector<8x8xf32> -> vector<8x8xf32>
    %369 = vector.extract_strided_slice %263 {offsets = [8, 16], sizes = [8, 8], strides = [1, 1]} : vector<16x32xf32> to vector<8x8xf32>
    %370 = vector.extract_strided_slice %264 {offsets = [8, 16], sizes = [8, 8], strides = [1, 1]} : vector<16x32xf32> to vector<8x8xf32>
    %371 = vector.extract_strided_slice %265 {offsets = [8, 16], sizes = [8, 8], strides = [1, 1]} : vector<16x32xf32> to vector<8x8xf32>
    %cst_132 = arith.constant dense<0.000000e+00> : vector<8x8xf32>
    %372 = tpu.matmul %369, %370, %cst_132 {dimension_numbers = #tpu.dot_dimension_numbers<[1], [1], [0], [0], [0, 0, 1, 0], [], []>} : vector<8x8xf32>, vector<8x8xf32>, vector<8x8xf32> -> vector<8x8xf32>
    %cst_133 = arith.constant 0.353553385 : f32
    %373 = vector.broadcast %cst_133 : f32 to vector<8x8xf32>
    %374 = arith.mulf %372, %373 : vector<8x8xf32>
    %cst_134 = arith.constant dense<0xFF800000> : vector<8xf32>
    %375 = vector.multi_reduction <maximumf>, %374, %cst_134 [1] : vector<8x8xf32> to vector<8xf32>
    %376 = vector.shape_cast %375 : vector<8xf32> to vector<8x1xf32>
    %377 = vector.broadcast %376 : vector<8x1xf32> to vector<8x8xf32>
    %378 = arith.subf %374, %377 : vector<8x8xf32>
    %379 = math.exp %378 : vector<8x8xf32>
    %cst_135 = arith.constant dense<0.000000e+00> : vector<8xf32>
    %380 = vector.multi_reduction <add>, %379, %cst_135 [1] : vector<8x8xf32> to vector<8xf32>
    %381 = vector.shape_cast %380 : vector<8xf32> to vector<8x1xf32>
    %382 = tpu.reciprocal %381 {approx = true} : vector<8x1xf32> -> vector<8x1xf32>
    %383 = vector.broadcast %382 : vector<8x1xf32> to vector<8x8xf32>
    %384 = arith.mulf %379, %383 : vector<8x8xf32>
    %cst_136 = arith.constant dense<0.000000e+00> : vector<8x8xf32>
    %385 = tpu.matmul %384, %371, %cst_136 {dimension_numbers = #tpu.dot_dimension_numbers<[1], [0], [0], [1], [0, 0, 1, 1], [], []>} : vector<8x8xf32>, vector<8x8xf32>, vector<8x8xf32> -> vector<8x8xf32>
    %386 = vector.extract_strided_slice %263 {offsets = [8, 24], sizes = [8, 8], strides = [1, 1]} : vector<16x32xf32> to vector<8x8xf32>
    %387 = vector.extract_strided_slice %264 {offsets = [8, 24], sizes = [8, 8], strides = [1, 1]} : vector<16x32xf32> to vector<8x8xf32>
    %388 = vector.extract_strided_slice %265 {offsets = [8, 24], sizes = [8, 8], strides = [1, 1]} : vector<16x32xf32> to vector<8x8xf32>
    %cst_137 = arith.constant dense<0.000000e+00> : vector<8x8xf32>
    %389 = tpu.matmul %386, %387, %cst_137 {dimension_numbers = #tpu.dot_dimension_numbers<[1], [1], [0], [0], [0, 0, 1, 0], [], []>} : vector<8x8xf32>, vector<8x8xf32>, vector<8x8xf32> -> vector<8x8xf32>
    %cst_138 = arith.constant 0.353553385 : f32
    %390 = vector.broadcast %cst_138 : f32 to vector<8x8xf32>
    %391 = arith.mulf %389, %390 : vector<8x8xf32>
    %cst_139 = arith.constant dense<0xFF800000> : vector<8xf32>
    %392 = vector.multi_reduction <maximumf>, %391, %cst_139 [1] : vector<8x8xf32> to vector<8xf32>
    %393 = vector.shape_cast %392 : vector<8xf32> to vector<8x1xf32>
    %394 = vector.broadcast %393 : vector<8x1xf32> to vector<8x8xf32>
    %395 = arith.subf %391, %394 : vector<8x8xf32>
    %396 = math.exp %395 : vector<8x8xf32>
    %cst_140 = arith.constant dense<0.000000e+00> : vector<8xf32>
    %397 = vector.multi_reduction <add>, %396, %cst_140 [1] : vector<8x8xf32> to vector<8xf32>
    %398 = vector.shape_cast %397 : vector<8xf32> to vector<8x1xf32>
    %399 = tpu.reciprocal %398 {approx = true} : vector<8x1xf32> -> vector<8x1xf32>
    %400 = vector.broadcast %399 : vector<8x1xf32> to vector<8x8xf32>
    %401 = arith.mulf %396, %400 : vector<8x8xf32>
    %cst_141 = arith.constant dense<0.000000e+00> : vector<8x8xf32>
    %402 = tpu.matmul %401, %388, %cst_141 {dimension_numbers = #tpu.dot_dimension_numbers<[1], [0], [0], [1], [0, 0, 1, 1], [], []>} : vector<8x8xf32>, vector<8x8xf32>, vector<8x8xf32> -> vector<8x8xf32>
    %403 = tpu.concatenate %351, %368, %385, %402 in 1 : vector<8x8xf32>, vector<8x8xf32>, vector<8x8xf32>, vector<8x8xf32> -> vector<8x32xf32>
    %404 = tpu.concatenate %334, %403 in 0 : vector<8x32xf32>, vector<8x32xf32> -> vector<16x32xf32>
    %c1_142 = arith.constant 1 : index
    %c0_143 = arith.constant 0 : index
    %c0_144 = arith.constant 0 : index
    %405 = vector.load %arg6[%c1_142, %c0_143, %c0_144] : memref<2x32x32xf32, #tpu.memory_space<vmem>>, vector<1x32x32xf32>
    %406 = vector.shape_cast %405 : vector<1x32x32xf32> to vector<32x32xf32>
    %cst_145 = arith.constant dense<0.000000e+00> : vector<16x32xf32>
    %407 = tpu.matmul %404, %406, %cst_145 {dimension_numbers = #tpu.dot_dimension_numbers<[1], [0], [0], [1], [0, 0, 1, 1], [], []>} : vector<16x32xf32>, vector<32x32xf32>, vector<16x32xf32> -> vector<16x32xf32>
    %c1_146 = arith.constant 1 : index
    %c0_147 = arith.constant 0 : index
    %408 = vector.load %arg7[%c1_146, %c0_147] : memref<2x32xf32, #tpu.memory_space<vmem>>, vector<1x32xf32>
    %409 = vector.broadcast %408 : vector<1x32xf32> to vector<16x32xf32>
    %410 = arith.addf %407, %409 : vector<16x32xf32>
    %411 = arith.addf %256, %410 : vector<16x32xf32>
    %c1_148 = arith.constant 1 : index
    %c0_149 = arith.constant 0 : index
    %412 = vector.load %arg8[%c1_148, %c0_149] : memref<2x32xf32, #tpu.memory_space<vmem>>, vector<1x32xf32>
    %c1_150 = arith.constant 1 : index
    %c0_151 = arith.constant 0 : index
    %413 = vector.load %arg9[%c1_150, %c0_151] : memref<2x32xf32, #tpu.memory_space<vmem>>, vector<1x32xf32>
    %cst_152 = arith.constant dense<0.000000e+00> : vector<16xf32>
    %414 = vector.multi_reduction <add>, %411, %cst_152 [1] : vector<16x32xf32> to vector<16xf32>
    %415 = vector.shape_cast %414 : vector<16xf32> to vector<16x1xf32>
    %cst_153 = arith.constant 3.200000e+01 : f32
    %416 = vector.broadcast %cst_153 : f32 to vector<16x1xf32>
    %417 = arith.divf %415, %416 : vector<16x1xf32>
    %418 = vector.broadcast %417 : vector<16x1xf32> to vector<16x32xf32>
    %419 = arith.subf %411, %418 : vector<16x32xf32>
    %420 = arith.mulf %419, %419 : vector<16x32xf32>
    %cst_154 = arith.constant dense<0.000000e+00> : vector<16xf32>
    %421 = vector.multi_reduction <add>, %420, %cst_154 [1] : vector<16x32xf32> to vector<16xf32>
    %422 = vector.shape_cast %421 : vector<16xf32> to vector<16x1xf32>
    %cst_155 = arith.constant 3.200000e+01 : f32
    %423 = vector.broadcast %cst_155 : f32 to vector<16x1xf32>
    %424 = arith.divf %422, %423 : vector<16x1xf32>
    %425 = vector.broadcast %417 : vector<16x1xf32> to vector<16x32xf32>
    %426 = arith.subf %411, %425 : vector<16x32xf32>
    %cst_156 = arith.constant 9.99999996E-13 : f32
    %427 = vector.broadcast %cst_156 : f32 to vector<16x1xf32>
    %428 = arith.addf %424, %427 : vector<16x1xf32>
    %429 = math.rsqrt %428 : vector<16x1xf32>
    %430 = vector.broadcast %429 : vector<16x1xf32> to vector<16x32xf32>
    %431 = arith.mulf %426, %430 : vector<16x32xf32>
    %432 = vector.broadcast %412 : vector<1x32xf32> to vector<16x32xf32>
    %433 = arith.mulf %431, %432 : vector<16x32xf32>
    %434 = vector.broadcast %413 : vector<1x32xf32> to vector<16x32xf32>
    %435 = arith.addf %433, %434 : vector<16x32xf32>
    %c1_157 = arith.constant 1 : index
    %c0_158 = arith.constant 0 : index
    %c0_159 = arith.constant 0 : index
    %436 = vector.load %arg10[%c1_157, %c0_158, %c0_159] : memref<2x32x64xf32, #tpu.memory_space<vmem>>, vector<1x32x64xf32>
    %437 = vector.shape_cast %436 : vector<1x32x64xf32> to vector<32x64xf32>
    %cst_160 = arith.constant dense<0.000000e+00> : vector<16x64xf32>
    %438 = tpu.matmul %435, %437, %cst_160 {dimension_numbers = #tpu.dot_dimension_numbers<[1], [0], [0], [1], [0, 0, 1, 1], [], []>} : vector<16x32xf32>, vector<32x64xf32>, vector<16x64xf32> -> vector<16x64xf32>
    %c1_161 = arith.constant 1 : index
    %c0_162 = arith.constant 0 : index
    %439 = vector.load %arg11[%c1_161, %c0_162] : memref<2x64xf32, #tpu.memory_space<vmem>>, vector<1x64xf32>
    %440 = vector.broadcast %439 : vector<1x64xf32> to vector<16x64xf32>
    %441 = arith.addf %438, %440 : vector<16x64xf32>
    %cst_163 = arith.constant 5.000000e-01 : f32
    %442 = vector.broadcast %cst_163 : f32 to vector<16x64xf32>
    %443 = arith.mulf %442, %441 : vector<16x64xf32>
    %cst_164 = arith.constant 4.471500e-02 : f32
    %444 = vector.broadcast %cst_164 : f32 to vector<16x64xf32>
    %445 = arith.mulf %444, %441 : vector<16x64xf32>
    %446 = arith.mulf %445, %441 : vector<16x64xf32>
    %447 = arith.mulf %446, %441 : vector<16x64xf32>
    %448 = arith.addf %441, %447 : vector<16x64xf32>
    %cst_165 = arith.constant 0.797884583 : f32
    %449 = vector.broadcast %cst_165 : f32 to vector<16x64xf32>
    %450 = arith.mulf %449, %448 : vector<16x64xf32>
    %451 = math.tanh %450 : vector<16x64xf32>
    %cst_166 = arith.constant 1.000000e+00 : f32
    %452 = vector.broadcast %cst_166 : f32 to vector<16x64xf32>
    %453 = arith.addf %452, %451 : vector<16x64xf32>
    %454 = arith.mulf %443, %453 : vector<16x64xf32>
    %c1_167 = arith.constant 1 : index
    %c0_168 = arith.constant 0 : index
    %c0_169 = arith.constant 0 : index
    %455 = vector.load %arg12[%c1_167, %c0_168, %c0_169] : memref<2x64x32xf32, #tpu.memory_space<vmem>>, vector<1x64x32xf32>
    %456 = vector.shape_cast %455 : vector<1x64x32xf32> to vector<64x32xf32>
    %cst_170 = arith.constant dense<0.000000e+00> : vector<16x32xf32>
    %457 = tpu.matmul %454, %456, %cst_170 {dimension_numbers = #tpu.dot_dimension_numbers<[1], [0], [0], [1], [0, 0, 1, 1], [], []>} : vector<16x64xf32>, vector<64x32xf32>, vector<16x32xf32> -> vector<16x32xf32>
    %c1_171 = arith.constant 1 : index
    %c0_172 = arith.constant 0 : index
    %458 = vector.load %arg13[%c1_171, %c0_172] : memref<2x32xf32, #tpu.memory_space<vmem>>, vector<1x32xf32>
    %459 = vector.broadcast %458 : vector<1x32xf32> to vector<16x32xf32>
    %460 = arith.addf %457, %459 : vector<16x32xf32>
    %461 = arith.addf %435, %460 : vector<16x32xf32>
    %c1_173 = arith.constant 1 : index
    %c0_174 = arith.constant 0 : index
    %462 = vector.load %arg14[%c1_173, %c0_174] : memref<2x32xf32, #tpu.memory_space<vmem>>, vector<1x32xf32>
    %c1_175 = arith.constant 1 : index
    %c0_176 = arith.constant 0 : index
    %463 = vector.load %arg15[%c1_175, %c0_176] : memref<2x32xf32, #tpu.memory_space<vmem>>, vector<1x32xf32>
    %cst_177 = arith.constant dense<0.000000e+00> : vector<16xf32>
    %464 = vector.multi_reduction <add>, %461, %cst_177 [1] : vector<16x32xf32> to vector<16xf32>
    %465 = vector.shape_cast %464 : vector<16xf32> to vector<16x1xf32>
    %cst_178 = arith.constant 3.200000e+01 : f32
    %466 = vector.broadcast %cst_178 : f32 to vector<16x1xf32>
    %467 = arith.divf %465, %466 : vector<16x1xf32>
    %468 = vector.broadcast %467 : vector<16x1xf32> to vector<16x32xf32>
    %469 = arith.subf %461, %468 : vector<16x32xf32>
    %470 = arith.mulf %469, %469 : vector<16x32xf32>
    %cst_179 = arith.constant dense<0.000000e+00> : vector<16xf32>
    %471 = vector.multi_reduction <add>, %470, %cst_179 [1] : vector<16x32xf32> to vector<16xf32>
    %472 = vector.shape_cast %471 : vector<16xf32> to vector<16x1xf32>
    %cst_180 = arith.constant 3.200000e+01 : f32
    %473 = vector.broadcast %cst_180 : f32 to vector<16x1xf32>
    %474 = arith.divf %472, %473 : vector<16x1xf32>
    %475 = vector.broadcast %467 : vector<16x1xf32> to vector<16x32xf32>
    %476 = arith.subf %461, %475 : vector<16x32xf32>
    %cst_181 = arith.constant 9.99999996E-13 : f32
    %477 = vector.broadcast %cst_181 : f32 to vector<16x1xf32>
    %478 = arith.addf %474, %477 : vector<16x1xf32>
    %479 = math.rsqrt %478 : vector<16x1xf32>
    %480 = vector.broadcast %479 : vector<16x1xf32> to vector<16x32xf32>
    %481 = arith.mulf %476, %480 : vector<16x32xf32>
    %482 = vector.broadcast %462 : vector<1x32xf32> to vector<16x32xf32>
    %483 = arith.mulf %481, %482 : vector<16x32xf32>
    %484 = vector.broadcast %463 : vector<1x32xf32> to vector<16x32xf32>
    %485 = arith.addf %483, %484 : vector<16x32xf32>
    %486 = vector.extract_strided_slice %485 {offsets = [0, 0], sizes = [1, 32], strides = [1, 1]} : vector<16x32xf32> to vector<1x32xf32>
    %487 = vector.extract_strided_slice %485 {offsets = [8, 0], sizes = [1, 32], strides = [1, 1]} : vector<16x32xf32> to vector<1x32xf32>
    %488 = tpu.concatenate %486, %487 in 0 : vector<1x32xf32>, vector<1x32xf32> -> vector<2x32xf32>
    %c0_182 = arith.constant 0 : index
    %c0_183 = arith.constant 0 : index
    %489 = vector.load %arg16[%c0_182, %c0_183] : memref<32x32xf32, #tpu.memory_space<vmem>>, vector<32x32xf32>
    %cst_184 = arith.constant dense<0.000000e+00> : vector<2x32xf32>
    %490 = tpu.matmul %488, %489, %cst_184 {dimension_numbers = #tpu.dot_dimension_numbers<[1], [0], [0], [1], [0, 0, 1, 1], [], []>} : vector<2x32xf32>, vector<32x32xf32>, vector<2x32xf32> -> vector<2x32xf32>
    %c0_185 = arith.constant 0 : index
    %c0_186 = arith.constant 0 : index
    %491 = vector.load %arg17[%c0_185, %c0_186] : memref<1x32xf32, #tpu.memory_space<vmem>>, vector<1x32xf32>
    %492 = vector.broadcast %491 : vector<1x32xf32> to vector<2x32xf32>
    %493 = arith.addf %490, %492 : vector<2x32xf32>
    %494 = math.tanh %493 : vector<2x32xf32>
    %c0_187 = arith.constant 0 : index
    %c0_188 = arith.constant 0 : index
    %495 = vector.load %arg18[%c0_187, %c0_188] : memref<32x3xf32, #tpu.memory_space<vmem>>, vector<32x3xf32>
    %cst_189 = arith.constant dense<0.000000e+00> : vector<2x3xf32>
    %496 = tpu.matmul %494, %495, %cst_189 {dimension_numbers = #tpu.dot_dimension_numbers<[1], [0], [0], [1], [0, 0, 1, 1], [], []>} : vector<2x32xf32>, vector<32x3xf32>, vector<2x3xf32> -> vector<2x3xf32>
    %c0_190 = arith.constant 0 : index
    %c0_191 = arith.constant 0 : index
    %497 = vector.load %arg19[%c0_190, %c0_191] : memref<1x3xf32, #tpu.memory_space<vmem>>, vector<1x3xf32>
    %498 = vector.broadcast %497 : vector<1x3xf32> to vector<2x3xf32>
    %499 = arith.addf %496, %498 : vector<2x3xf32>
    %500 = arith.negf %499 : vector<2x3xf32>
    %501 = math.exp %500 : vector<2x3xf32>
    %cst_192 = arith.constant 1.000000e+00 : f32
    %502 = vector.broadcast %cst_192 : f32 to vector<2x3xf32>
    %503 = arith.addf %502, %501 : vector<2x3xf32>
    %504 = arith.divf %502, %503 : vector<2x3xf32>
    %c0_193 = arith.constant 0 : index
    %c0_194 = arith.constant 0 : index
    %505 = vector.load %arg20[%c0_193, %c0_194] : memref<2x3xf32, #tpu.memory_space<vmem>>, vector<2x3xf32>
    tpu.vector_store %arg20[%c0_193, %c0_194], %504 {strides = array<i32>} : memref<2x3xf32, #tpu.memory_space<vmem>>, vector<2x3xf32>,
    return
  }
}

</mosaic_0001>

<llo_original>
// kernel: torch_model_forward.1
$region0: #{torch_model_forward.1}
  #allocation0 [shape = 'u32[]', space=smem, size = 0x4, offset = 0x4, fixed_abs, tag = 'smem constant byte address 0x4 - core index']
  #allocation1 [shape = 'u32[144,128]{1,0:T(1,128)}', space=vmem, size = 0x12000, scoped, tag = 'internal scratch']
  %s0 = inlined_call_operand.vmem [shape: f32[16,32], index: 0, kind: input, shape index: {}]
  %s1 = inlined_call_operand.vmem [shape: f32[8,32], index: 1, kind: input, shape index: {}]
  %s2 = inlined_call_operand.vmem [shape: f32[1,32], index: 2, kind: input, shape index: {}]
  %s3 = inlined_call_operand.vmem [shape: f32[1,32], index: 3, kind: input, shape index: {}]
  %s4 = inlined_call_operand.vmem [shape: f32[2,32,96], index: 4, kind: input, shape index: {}]
  %s5 = inlined_call_operand.vmem [shape: f32[2,96], index: 5, kind: input, shape index: {}]
  %s6 = inlined_call_operand.vmem [shape: f32[2,32,32], index: 6, kind: input, shape index: {}]
  %s7 = inlined_call_operand.vmem [shape: f32[2,32], index: 7, kind: input, shape index: {}]
  %s8 = inlined_call_operand.vmem [shape: f32[2,32], index: 8, kind: input, shape index: {}]
  %s9 = inlined_call_operand.vmem [shape: f32[2,32], index: 9, kind: input, shape index: {}]
  %s10 = inlined_call_operand.vmem [shape: f32[2,32,64], index: 10, kind: input, shape index: {}]
  %s11 = inlined_call_operand.vmem [shape: f32[2,64], index: 11, kind: input, shape index: {}]
  %s12 = inlined_call_operand.vmem [shape: f32[2,64,32], index: 12, kind: input, shape index: {}]
  %s13 = inlined_call_operand.vmem [shape: f32[2,32], index: 13, kind: input, shape index: {}]
  %s14 = inlined_call_operand.vmem [shape: f32[2,32], index: 14, kind: input, shape index: {}]
  %s15 = inlined_call_operand.vmem [shape: f32[2,32], index: 15, kind: input, shape index: {}]
  %s16 = inlined_call_operand.vmem [shape: f32[32,32], index: 16, kind: input, shape index: {}]
  %s17 = inlined_call_operand.vmem [shape: f32[1,32], index: 17, kind: input, shape index: {}]
  %s18 = inlined_call_operand.vmem [shape: f32[32,3], index: 18, kind: input, shape index: {}]
  %s19 = inlined_call_operand.vmem [shape: f32[1,3], index: 19, kind: input, shape index: {}]
  %s20 = inlined_call_operand.hbm [shape: f32[2,3], index: 20, kind: output, shape index: {}]
  %s21 = sld [smem:[#allocation0]]
  $region90: #{torch_model_forward.1} parent=0
    _
  %s23 = ssub.s32 1, %s21
  %s24 = scalar_select 0, %s23, %s21
  $region1: #{torch_model_forward.1} parent=0
    #allocation2 [shape = 'u8[1024]{0}', space=vmem, size = 0x400, scoped, tag = 'output window, operand 0, single buffered']
    #allocation3 [shape = 's32[1]{0}', space=sflag, size = 0x4, scoped, tag = 'scoped memory for torch_model_forward.1']
    %25 = vsyncpa [#allocation3], 0
    // Predicated region
    $region2: #{torch_model_forward.1} parent=1 // pred_check
      _
    $region3: #{torch_model_forward.1} parent=1 // pred_check_branch
      %27 = sbr.rel (0) target = $region5
    $region4: #{torch_model_forward.1} parent=1 // pred_region
      _
    $region5: #{torch_model_forward.1} parent=1 // pred_fallthru
      _
    // Predicated region
    $region6: #{torch_model_forward.1} parent=1 // pred_check
      _
    $region7: #{torch_model_forward.1} parent=1 // pred_check_branch
      %29 = sbr.rel (0) target = $region9
    $region8: #{torch_model_forward.1} parent=1 // pred_region
      _
    $region9: #{torch_model_forward.1} parent=1 // pred_fallthru
      _
    // Predicated region
    $region10: #{torch_model_forward.1} parent=1 // pred_check
      _
    $region11: #{torch_model_forward.1} parent=1 // pred_check_branch
      %31 = sbr.rel (0) target = $region13
    $region12: #{torch_model_forward.1} parent=1 // pred_region
      _
    $region13: #{torch_model_forward.1} parent=1 // pred_fallthru
      _
    // Predicated region
    $region14: #{torch_model_forward.1} parent=1 // pred_check
      _
    $region15: #{torch_model_forward.1} parent=1 // pred_check_branch
      %33 = sbr.rel (0) target = $region17
    $region16: #{torch_model_forward.1} parent=1 // pred_region
      _
    $region17: #{torch_model_forward.1} parent=1 // pred_fallthru
      _
    // Predicated region
    $region18: #{torch_model_forward.1} parent=1 // pred_check
      _
    $region19: #{torch_model_forward.1} parent=1 // pred_check_branch
      %35 = sbr.rel (0) target = $region21
    $region20: #{torch_model_forward.1} parent=1 // pred_region
      _
    $region21: #{torch_model_forward.1} parent=1 // pred_fallthru
      _
    // Predicated region
    $region22: #{torch_model_forward.1} parent=1 // pred_check
      _
    $region23: #{torch_model_forward.1} parent=1 // pred_check_branch
      %37 = sbr.rel (0) target = $region25
    $region24: #{torch_model_forward.1} parent=1 // pred_region
      _
    $region25: #{torch_model_forward.1} parent=1 // pred_fallthru
      _
    // Predicated region
    $region26: #{torch_model_forward.1} parent=1 // pred_check
      _
    $region27: #{torch_model_forward.1} parent=1 // pred_check_branch
      %39 = sbr.rel (0) target = $region29
    $region28: #{torch_model_forward.1} parent=1 // pred_region
      _
    $region29: #{torch_model_forward.1} parent=1 // pred_fallthru
      _
    // Predicated region
    $region30: #{torch_model_forward.1} parent=1 // pred_check
      _
    $region31: #{torch_model_forward.1} parent=1 // pred_check_branch
      %41 = sbr.rel (0) target = $region33
    $region32: #{torch_model_forward.1} parent=1 // pred_region
      _
    $region33: #{torch_model_forward.1} parent=1 // pred_fallthru
      _
    // Predicated region
    $region34: #{torch_model_forward.1} parent=1 // pred_check
      _
    $region35: #{torch_model_forward.1} parent=1 // pred_check_branch
      %43 = sbr.rel (0) target = $region37
    $region36: #{torch_model_forward.1} parent=1 // pred_region
      _
    $region37: #{torch_model_forward.1} parent=1 // pred_fallthru
      _
    // Predicated region
    $region38: #{torch_model_forward.1} parent=1 // pred_check
      _
    $region39: #{torch_model_forward.1} parent=1 // pred_check_branch
      %45 = sbr.rel (0) target = $region41
    $region40: #{torch_model_forward.1} parent=1 // pred_region
      _
    $region41: #{torch_model_forward.1} parent=1 // pred_fallthru
      _
    // Predicated region
    $region42: #{torch_model_forward.1} parent=1 // pred_check
      _
    $region43: #{torch_model_forward.1} parent=1 // pred_check_branch
      %47 = sbr.rel (0) target = $region45
    $region44: #{torch_model_forward.1} parent=1 // pred_region
      _
    $region45: #{torch_model_forward.1} parent=1 // pred_fallthru
      _
    // Predicated region
    $region46: #{torch_model_forward.1} parent=1 // pred_check
      _
    $region47: #{torch_model_forward.1} parent=1 // pred_check_branch
      %49 = sbr.rel (0) target = $region49
    $region48: #{torch_model_forward.1} parent=1 // pred_region
      _
    $region49: #{torch_model_forward.1} parent=1 // pred_fallthru
      _
    // Predicated region
    $region50: #{torch_model_forward.1} parent=1 // pred_check
      _
    $region51: #{torch_model_forward.1} parent=1 // pred_check_branch
      %51 = sbr.rel (0) target = $region53
    $region52: #{torch_model_forward.1} parent=1 // pred_region
      _
    $region53: #{torch_model_forward.1} parent=1 // pred_fallthru
      _
    // Predicated region
    $region54: #{torch_model_forward.1} parent=1 // pred_check
      _
    $region55: #{torch_model_forward.1} parent=1 // pred_check_branch
      %53 = sbr.rel (0) target = $region57
    $region56: #{torch_model_forward.1} parent=1 // pred_region
      _
    $region57: #{torch_model_forward.1} parent=1 // pred_fallthru
      _
    // Predicated region
    $region58: #{torch_model_forward.1} parent=1 // pred_check
      _
    $region59: #{torch_model_forward.1} parent=1 // pred_check_branch
      %55 = sbr.rel (0) target = $region61
    $region60: #{torch_model_forward.1} parent=1 // pred_region
      _
    $region61: #{torch_model_forward.1} parent=1 // pred_fallthru
      _
    // Predicated region
    $region62: #{torch_model_forward.1} parent=1 // pred_check
      _
    $region63: #{torch_model_forward.1} parent=1 // pred_check_branch
      %57 = sbr.rel (0) target = $region65
    $region64: #{torch_model_forward.1} parent=1 // pred_region
      _
    $region65: #{torch_model_forward.1} parent=1 // pred_fallthru
      _
    // Predicated region
    $region66: #{torch_model_forward.1} parent=1 // pred_check
      _
    $region67: #{torch_model_forward.1} parent=1 // pred_check_branch
      %59 = sbr.rel (0) target = $region69
    $region68: #{torch_model_forward.1} parent=1 // pred_region
      _
    $region69: #{torch_model_forward.1} parent=1 // pred_fallthru
      _
    // Predicated region
    $region70: #{torch_model_forward.1} parent=1 // pred_check
      _
    $region71: #{torch_model_forward.1} parent=1 // pred_check_branch
      %61 = sbr.rel (0) target = $region73
    $region72: #{torch_model_forward.1} parent=1 // pred_region
      _
    $region73: #{torch_model_forward.1} parent=1 // pred_fallthru
      _
    // Predicated region
    $region74: #{torch_model_forward.1} parent=1 // pred_check
      _
    $region75: #{torch_model_forward.1} parent=1 // pred_check_branch
      %63 = sbr.rel (0) target = $region77
    $region76: #{torch_model_forward.1} parent=1 // pred_region
      _
    $region77: #{torch_model_forward.1} parent=1 // pred_fallthru
      _
    // Predicated region
    $region78: #{torch_model_forward.1} parent=1 // pred_check
      _
    $region79: #{torch_model_forward.1} parent=1 // pred_check_branch
      %65 = sbr.rel (0) target = $region81
    $region80: #{torch_model_forward.1} parent=1 // pred_region
      _
    $region81: #{torch_model_forward.1} parent=1 // pred_fallthru
      _
    %v66 = vld [vmem:[%s1] sm:$0xff]
    %v67 = vld [vmem:[%s0] sm:$0xff]
    %v68 = vld [vmem:[%s0 + $0x8] sm:$0xff]
    %v69 = vadd.f32 %v67, %v66
    %v70 = vadd.f32 %v68, %v66
    %v71 = vld [vmem:[%s2] sm:$0x1]
    %v72 = vld [vmem:[%s3] sm:$0x1]
    %vm73 = vcmask 261120
    %v74 = vsel %vm73, %v69, 0.0
    %75 = vadd.xlane.f32.xlu0 %v74
    %v76 = vpop.xlane.xlu0 %75
    %v77 = vsel %vm73, %v70, 0.0
    %78 = vadd.xlane.f32.xlu0 %v77
    %v79 = vpop.xlane.xlu0 %78
    %v80 = vrcp.pop 32.0
    %v81 = vmul.f32 %v76, %v80
    %v82 = vmul.f32 %v79, %v80
    %v83 = vsub.f32 %v69, %v81
    %v84 = vsub.f32 %v70, %v82
    %v85 = vmul.f32 %v83, %v83
    %v86 = vmul.f32 %v84, %v84
    %v87 = vsel %vm73, %v85, 0.0
    %88 = vadd.xlane.f32.xlu0 %v87
    %v89 = vpop.xlane.xlu0 %88
    %v90 = vsel %vm73, %v86, 0.0
    %91 = vadd.xlane.f32.xlu0 %v90
    %v92 = vpop.xlane.xlu0 %91
    %v93 = vmul.f32 %v89, %v80
    %v94 = vmul.f32 %v92, %v80
    %v95 = vadd.f32 %v93, 1e-12
    %v96 = vadd.f32 %v94, 1e-12
    %v97 = vrsqrt.pop %v95
    %v98 = vrsqrt.pop %v96
    %v99 = vmul.f32 %v83, %v97
    %v100 = vmul.f32 %v84, %v98
    %v102 = vlaneseq
    %v103 = vshrl.u32 %v102, 7
    %v104 = vsub.s32 0, %v103
    %v105 = vrot.slane %v71, %v104
    %v107 = vmul.f32 %v99, %v105
    %v108 = vmul.f32 %v100, %v105
    %v110 = vlaneseq
    %v111 = vshrl.u32 %v110, 7
    %v112 = vsub.s32 0, %v111
    %v113 = vrot.slane %v72, %v112
    %v115 = vadd.f32 %v107, %v113
    %v116 = vadd.f32 %v108, %v113
    %v117 = vld [vmem:[%s4] sm:$0xff]
    %v118 = vld [vmem:[%s4 + $0x8] sm:$0xff]
    %v119 = vld [vmem:[%s4 + $0x10] sm:$0xff]
    %v120 = vld [vmem:[%s4 + $0x18] sm:$0xff]
    %v121 = vld [vmem:[%s5] sm:$0x1]
    %v122 = vlaneseq
    %v123 = vshrl.u32 %v122, 7
    %v124 = vsub.s32 0, %v123
    %v125 = vrot.slane %v121, %v124
    %v127 = vsel %vm73, %v115, 0
    %v130 = vsel %vm73, %v116, 0
    %132 = vmatprep.subr.mxu0 0.0
    %133 = vmatpush1.msra.mxu0 %v117
    %134 = vmatprep.subr.mxu0 0.0
    %135 = vmatpush1.msra.mxu0 %v118
    %136 = vmatprep.subr.mxu0 0.0
    %137 = vmatpush1.msra.mxu0 %v119
    %138 = vmatprep.subr.mxu0 0.0
    %139 = vmatpush1.msra.mxu0 %v120
    %140 = vmatprep.subr.mxu0 0.0
    %141 = vmatpush1.msra.mxu0 0.0
    %142 = vmatprep.subr.mxu0 0.0
    %143 = vmatpush1.msra.mxu0 0.0
    %144 = vmatprep.subr.mxu0 0.0
    %145 = vmatpush1.msra.mxu0 0.0
    %146 = vmatprep.subr.mxu0 0.0
    %147 = vmatpush1.msra.mxu0 0.0
    %148 = vmatprep.subr.mxu0 0.0
    %149 = vmatpush1.msra.mxu0 0.0
    %150 = vmatprep.subr.mxu0 0.0
    %151 = vmatpush1.msra.mxu0 0.0
    %152 = vmatprep.subr.mxu0 0.0
    %153 = vmatpush1.msra.mxu0 0.0
    %154 = vmatprep.subr.mxu0 0.0
    %155 = vmatpush1.msra.mxu0 0.0
    %156 = vmatprep.subr.mxu0 0.0
    %157 = vmatpush1.msra.mxu0 0.0
    %158 = vmatprep.subr.mxu0 0.0
    %159 = vmatpush1.msra.mxu0 0.0
    %160 = vmatprep.subr.mxu0 0.0
    %161 = vmatpush1.msra.mxu0 0.0
    %162 = vmatprep.subr.mxu0 0.0
    %163 = vmatpush1.msra.mxu0 0.0
    %164 = vmatprep.subr.mxu0 0.0
    %165 = vmatpush1.msra.mxu0 0.0
    %166 = vmatprep.subr.mxu0 0.0
    %167 = vmatpush1.msra.mxu0 0.0
    %168 = vmatprep.subr.mxu0 0.0
    %169 = vmatpush1.msra.mxu0 0.0
    %170 = vmatprep.subr.mxu0 0.0
    %171 = vmatpush1.msra.mxu0 0.0
    %172 = vmatprep.subr.mxu0 0.0
    %173 = vmatpush1.msra.mxu0 0.0
    %174 = vmatprep.subr.mxu0 0.0
    %175 = vmatpush1.msra.mxu0 0.0
    %176 = vmatprep.subr.mxu0 0.0
    %177 = vmatpush1.msra.mxu0 0.0
    %178 = vmatprep.subr.mxu0 0.0
    %179 = vmatpush1.msra.mxu0 0.0
    %180 = vmatprep.subr.mxu0 0.0
    %181 = vmatpush1.msra.mxu0 0.0
    %182 = vmatprep.subr.mxu0 0.0
    %183 = vmatpush1.msra.mxu0 0.0
    %184 = vmatprep.subr.mxu0 0.0
    %185 = vmatpush1.msra.mxu0 0.0
    %186 = vmatprep.subr.mxu0 0.0
    %187 = vmatpush1.msra.mxu0 0.0
    %188 = vmatprep.subr.mxu0 0.0
    %189 = vmatpush1.msra.mxu0 0.0
    %190 = vmatprep.subr.mxu0 0.0
    %191 = vmatpush1.msra.mxu0 0.0
    %192 = vmatprep.subr.mxu0 0.0
    %193 = vmatpush1.msra.mxu0 0.0
    %194 = vmatprep.subr.mxu0 0.0
    %195 = vmatpush1.msra.mxu0 0.0
    %196 = vmatprep.mubr.f32.mxu0 0.0
    %197 = vmatmul.mubr.f32.gmra.mrb[0].mxu0 %v127
    %v198 = vpop.f32.mrb[0].mxu0
    %v199 = vadd.f32 %v125, %v198
    %v200 = vpop.f32.mrb[0].mxu0
    %201 = vmatprep.mubr.f32.mxu0 0.0
    %202 = vmatmul.mubr.f32.gmra.mrb[0].mxu0 %v130
    %v203 = vpop.f32.mrb[0].mxu0
    %v204 = vadd.f32 %v125, %v203
    %v205 = vpop.f32.mrb[0].mxu0
    %206 = vdwg.mxu0
    %208 = vrot.lane.b32.xlu0 %v199, 96
    %v209 = vpop.permute.xlu0 %208
    %vm210 = vcmask 64512
    %v211 = vsel %vm210, %v199, 0
    %v213 = vsel %vm210, %v209, 0
    %215 = vmatprep.subr.mxu0 0.0
    %216 = vmatpush1.xpose.msra.mxu0 %v213
    %217 = vmatprep.subr.mxu0 0.0
    %218 = vmatpush1.xpose.msra.mxu0 0.0
    %219 = vmatprep.subr.mxu0 0.0
    %220 = vmatpush1.xpose.msra.mxu0 0.0
    %221 = vmatprep.subr.mxu0 0.0
    %222 = vmatpush1.xpose.msra.mxu0 0.0
    %223 = vmatprep.subr.mxu0 0.0
    %224 = vmatpush1.xpose.msra.mxu0 0.0
    %225 = vmatprep.subr.mxu0 0.0
    %226 = vmatpush1.xpose.msra.mxu0 0.0
    %227 = vmatprep.subr.mxu0 0.0
    %228 = vmatpush1.xpose.msra.mxu0 0.0
    %229 = vmatprep.subr.mxu0 0.0
    %230 = vmatpush1.xpose.msra.mxu0 0.0
    %231 = vmatprep.subr.mxu0 0.0
    %232 = vmatpush1.xpose.msra.mxu0 0.0
    %233 = vmatprep.subr.mxu0 0.0
    %234 = vmatpush1.xpose.msra.mxu0 0.0
    %235 = vmatprep.subr.mxu0 0.0
    %236 = vmatpush1.xpose.msra.mxu0 0.0
    %237 = vmatprep.subr.mxu0 0.0
    %238 = vmatpush1.xpose.msra.mxu0 0.0
    %239 = vmatprep.subr.mxu0 0.0
    %240 = vmatpush1.xpose.msra.mxu0 0.0
    %241 = vmatprep.subr.mxu0 0.0
    %242 = vmatpush1.xpose.msra.mxu0 0.0
    %243 = vmatprep.subr.mxu0 0.0
    %244 = vmatpush1.xpose.msra.mxu0 0.0
    %245 = vmatprep.subr.mxu0 0.0
    %246 = vmatpush1.xpose.msra.mxu0 0.0
    %247 = vmatprep.subr.mxu0 0.0
    %248 = vmatpush1.xpose.msra.mxu0 0.0
    %249 = vmatprep.subr.mxu0 0.0
    %250 = vmatpush1.xpose.msra.mxu0 0.0
    %251 = vmatprep.subr.mxu0 0.0
    %252 = vmatpush1.xpose.msra.mxu0 0.0
    %253 = vmatprep.subr.mxu0 0.0
    %254 = vmatpush1.xpose.msra.mxu0 0.0
    %255 = vmatprep.subr.mxu0 0.0
    %256 = vmatpush1.xpose.msra.mxu0 0.0
    %257 = vmatprep.subr.mxu0 0.0
    %258 = vmatpush1.xpose.msra.mxu0 0.0
    %259 = vmatprep.subr.mxu0 0.0
    %260 = vmatpush1.xpose.msra.mxu0 0.0
    %261 = vmatprep.subr.mxu0 0.0
    %262 = vmatpush1.xpose.msra.mxu0 0.0
    %263 = vmatprep.subr.mxu0 0.0
    %264 = vmatpush1.xpose.msra.mxu0 0.0
    %265 = vmatprep.subr.mxu0 0.0
    %266 = vmatpush1.xpose.msra.mxu0 0.0
    %267 = vmatprep.subr.mxu0 0.0
    %268 = vmatpush1.xpose.msra.mxu0 0.0
    %269 = vmatprep.subr.mxu0 0.0
    %270 = vmatpush1.xpose.msra.mxu0 0.0
    %271 = vmatprep.subr.mxu0 0.0
    %272 = vmatpush1.xpose.msra.mxu0 0.0
    %273 = vmatprep.subr.mxu0 0.0
    %274 = vmatpush1.xpose.msra.mxu0 0.0
    %275 = vmatprep.subr.mxu0 0.0
    %276 = vmatpush1.xpose.msra.mxu0 0.0
    %277 = vmatprep.subr.mxu0 0.0
    %278 = vmatpush1.xpose.msra.mxu0 0.0
    %279 = vmatprep.mubr.f32.mxu0 0.0
    %280 = vmatmul.mubr.f32.gmra.mrb[0].mxu0 %v211
    %v281 = vpop.f32.mrb[0].mxu0
    %v282 = vadd.f32 0.0, %v281
    %v283 = vpop.f32.mrb[0].mxu0
    %284 = vdwg.mxu0
    %v285 = vmul.f32 %v282, 0.35355338
    %v286 = vsel %vm210, %v285, -inf
    %287 = vmax.xlane.f32.xlu0 %v286
    %v288 = vpop.xlane.xlu0 %287
    %v289 = vsub.f32 %v285, %v288
    %v290 = vmul.f32 %v289, 1.442695
    %v291 = vpow.pop %v290
    %v292 = vsel %vm210, %v291, 0.0
    %293 = vadd.xlane.f32.xlu0 %v292
    %v294 = vpop.xlane.xlu0 %293
    %v295 = vrcp.pop %v294
    %v296 = vmul.f32 %v291, %v295
    %297 = vrot.lane.b32.xlu0 %v199, 64
    %v298 = vpop.permute.xlu0 %297
    %v301 = vsel %vm210, %v296, 0
    %303 = vmatprep.subr.mxu0 0.0
    %304 = vmatpush1.msra.mxu0 %v298
    %305 = vmatprep.subr.mxu0 0.0
    %306 = vmatpush1.msra.mxu0 0.0
    %307 = vmatprep.subr.mxu0 0.0
    %308 = vmatpush1.msra.mxu0 0.0
    %309 = vmatprep.subr.mxu0 0.0
    %310 = vmatpush1.msra.mxu0 0.0
    %311 = vmatprep.subr.mxu0 0.0
    %312 = vmatpush1.msra.mxu0 0.0
    %313 = vmatprep.subr.mxu0 0.0
    %314 = vmatpush1.msra.mxu0 0.0
    %315 = vmatprep.subr.mxu0 0.0
    %316 = vmatpush1.msra.mxu0 0.0
    %317 = vmatprep.subr.mxu0 0.0
    %318 = vmatpush1.msra.mxu0 0.0
    %319 = vmatprep.subr.mxu0 0.0
    %320 = vmatpush1.msra.mxu0 0.0
    %321 = vmatprep.subr.mxu0 0.0
    %322 = vmatpush1.msra.mxu0 0.0
    %323 = vmatprep.subr.mxu0 0.0
    %324 = vmatpush1.msra.mxu0 0.0
    %325 = vmatprep.subr.mxu0 0.0
    %326 = vmatpush1.msra.mxu0 0.0
    %327 = vmatprep.subr.mxu0 0.0
    %328 = vmatpush1.msra.mxu0 0.0
    %329 = vmatprep.subr.mxu0 0.0
    %330 = vmatpush1.msra.mxu0 0.0
    %331 = vmatprep.subr.mxu0 0.0
    %332 = vmatpush1.msra.mxu0 0.0
    %333 = vmatprep.subr.mxu0 0.0
    %334 = vmatpush1.msra.mxu0 0.0
    %335 = vmatprep.subr.mxu0 0.0
    %336 = vmatpush1.msra.mxu0 0.0
    %337 = vmatprep.subr.mxu0 0.0
    %338 = vmatpush1.msra.mxu0 0.0
    %339 = vmatprep.subr.mxu0 0.0
    %340 = vmatpush1.msra.mxu0 0.0
    %341 = vmatprep.subr.mxu0 0.0
    %342 = vmatpush1.msra.mxu0 0.0
    %343 = vmatprep.subr.mxu0 0.0
    %344 = vmatpush1.msra.mxu0 0.0
    %345 = vmatprep.subr.mxu0 0.0
    %346 = vmatpush1.msra.mxu0 0.0
    %347 = vmatprep.subr.mxu0 0.0
    %348 = vmatpush1.msra.mxu0 0.0
    %349 = vmatprep.subr.mxu0 0.0
    %350 = vmatpush1.msra.mxu0 0.0
    %351 = vmatprep.subr.mxu0 0.0
    %352 = vmatpush1.msra.mxu0 0.0
    %353 = vmatprep.subr.mxu0 0.0
    %354 = vmatpush1.msra.mxu0 0.0
    %355 = vmatprep.subr.mxu0 0.0
    %356 = vmatpush1.msra.mxu0 0.0
    %357 = vmatprep.subr.mxu0 0.0
    %358 = vmatpush1.msra.mxu0 0.0
    %359 = vmatprep.subr.mxu0 0.0
    %360 = vmatpush1.msra.mxu0 0.0
    %361 = vmatprep.subr.mxu0 0.0
    %362 = vmatpush1.msra.mxu0 0.0
    %363 = vmatprep.subr.mxu0 0.0
    %364 = vmatpush1.msra.mxu0 0.0
    %365 = vmatprep.subr.mxu0 0.0
    %366 = vmatpush1.msra.mxu0 0.0
    %367 = vmatprep.mubr.f32.mxu0 0.0
    %368 = vmatmul.mubr.f32.gmra.mrb[0].mxu0 %v301
    %v369 = vpop.f32.mrb[0].mxu0
    %v370 = vadd.f32 0.0, %v369
    %v371 = vpop.f32.mrb[0].mxu0
    %372 = vdwg.mxu0
    %373 = vrot.lane.b32.xlu0 %v199, 120
    %v374 = vpop.permute.xlu0 %373
    %375 = vrot.lane.b32.xlu0 %v199, 88
    %v376 = vpop.permute.xlu0 %375
    %v377 = vsel %vm210, %v374, 0
    %v379 = vsel %vm210, %v376, 0
    %381 = vmatprep.subr.mxu0 0.0
    %382 = vmatpush1.xpose.msra.mxu0 %v379
    %383 = vmatprep.subr.mxu0 0.0
    %384 = vmatpush1.xpose.msra.mxu0 0.0
    %385 = vmatprep.subr.mxu0 0.0
    %386 = vmatpush1.xpose.msra.mxu0 0.0
    %387 = vmatprep.subr.mxu0 0.0
    %388 = vmatpush1.xpose.msra.mxu0 0.0
    %389 = vmatprep.subr.mxu0 0.0
    %390 = vmatpush1.xpose.msra.mxu0 0.0
    %391 = vmatprep.subr.mxu0 0.0
    %392 = vmatpush1.xpose.msra.mxu0 0.0
    %393 = vmatprep.subr.mxu0 0.0
    %394 = vmatpush1.xpose.msra.mxu0 0.0
    %395 = vmatprep.subr.mxu0 0.0
    %396 = vmatpush1.xpose.msra.mxu0 0.0
    %397 = vmatprep.subr.mxu0 0.0
    %398 = vmatpush1.xpose.msra.mxu0 0.0
    %399 = vmatprep.subr.mxu0 0.0
    %400 = vmatpush1.xpose.msra.mxu0 0.0
    %401 = vmatprep.subr.mxu0 0.0
    %402 = vmatpush1.xpose.msra.mxu0 0.0
    %403 = vmatprep.subr.mxu0 0.0
    %404 = vmatpush1.xpose.msra.mxu0 0.0
    %405 = vmatprep.subr.mxu0 0.0
    %406 = vmatpush1.xpose.msra.mxu0 0.0
    %407 = vmatprep.subr.mxu0 0.0
    %408 = vmatpush1.xpose.msra.mxu0 0.0
    %409 = vmatprep.subr.mxu0 0.0
    %410 = vmatpush1.xpose.msra.mxu0 0.0
    %411 = vmatprep.subr.mxu0 0.0
    %412 = vmatpush1.xpose.msra.mxu0 0.0
    %413 = vmatprep.subr.mxu0 0.0
    %414 = vmatpush1.xpose.msra.mxu0 0.0
    %415 = vmatprep.subr.mxu0 0.0
    %416 = vmatpush1.xpose.msra.mxu0 0.0
    %417 = vmatprep.subr.mxu0 0.0
    %418 = vmatpush1.xpose.msra.mxu0 0.0
    %419 = vmatprep.subr.mxu0 0.0
    %420 = vmatpush1.xpose.msra.mxu0 0.0
    %421 = vmatprep.subr.mxu0 0.0
    %422 = vmatpush1.xpose.msra.mxu0 0.0
    %423 = vmatprep.subr.mxu0 0.0
    %424 = vmatpush1.xpose.msra.mxu0 0.0
    %425 = vmatprep.subr.mxu0 0.0
    %426 = vmatpush1.xpose.msra.mxu0 0.0
    %427 = vmatprep.subr.mxu0 0.0
    %428 = vmatpush1.xpose.msra.mxu0 0.0
    %429 = vmatprep.subr.mxu0 0.0
    %430 = vmatpush1.xpose.msra.mxu0 0.0
    %431 = vmatprep.subr.mxu0 0.0
    %432 = vmatpush1.xpose.msra.mxu0 0.0
    %433 = vmatprep.subr.mxu0 0.0
    %434 = vmatpush1.xpose.msra.mxu0 0.0
    %435 = vmatprep.subr.mxu0 0.0
    %436 = vmatpush1.xpose.msra.mxu0 0.0
    %437 = vmatprep.subr.mxu0 0.0
    %438 = vmatpush1.xpose.msra.mxu0 0.0
    %439 = vmatprep.subr.mxu0 0.0
    %440 = vmatpush1.xpose.msra.mxu0 0.0
    %441 = vmatprep.subr.mxu0 0.0
    %442 = vmatpush1.xpose.msra.mxu0 0.0
    %443 = vmatprep.subr.mxu0 0.0
    %444 = vmatpush1.xpose.msra.mxu0 0.0
    %445 = vmatprep.mubr.f32.mxu0 0.0
    %446 = vmatmul.mubr.f32.gmra.mrb[0].mxu0 %v377
    %v447 = vpop.f32.mrb[0].mxu0
    %v448 = vadd.f32 0.0, %v447
    %v449 = vpop.f32.mrb[0].mxu0
    %450 = vdwg.mxu0
    %v451 = vmul.f32 %v448, 0.35355338
    %v452 = vsel %vm210, %v451, -inf
    %453 = vmax.xlane.f32.xlu0 %v452
    %v454 = vpop.xlane.xlu0 %453
    %v455 = vsub.f32 %v451, %v454
    %v456 = vmul.f32 %v455, 1.442695
    %v457 = vpow.pop %v456
    %v458 = vsel %vm210, %v457, 0.0
    %459 = vadd.xlane.f32.xlu0 %v458
    %v460 = vpop.xlane.xlu0 %459
    %v461 = vrcp.pop %v460
    %v462 = vmul.f32 %v457, %v461
    %463 = vrot.lane.b32.xlu0 %v199, 56
    %v464 = vpop.permute.xlu0 %463
    %v467 = vsel %vm210, %v462, 0
    %469 = vmatprep.subr.mxu0 0.0
    %470 = vmatpush1.msra.mxu0 %v464
    %471 = vmatprep.subr.mxu0 0.0
    %472 = vmatpush1.msra.mxu0 0.0
    %473 = vmatprep.subr.mxu0 0.0
    %474 = vmatpush1.msra.mxu0 0.0
    %475 = vmatprep.subr.mxu0 0.0
    %476 = vmatpush1.msra.mxu0 0.0
    %477 = vmatprep.subr.mxu0 0.0
    %478 = vmatpush1.msra.mxu0 0.0
    %479 = vmatprep.subr.mxu0 0.0
    %480 = vmatpush1.msra.mxu0 0.0
    %481 = vmatprep.subr.mxu0 0.0
    %482 = vmatpush1.msra.mxu0 0.0
    %483 = vmatprep.subr.mxu0 0.0
    %484 = vmatpush1.msra.mxu0 0.0
    %485 = vmatprep.subr.mxu0 0.0
    %486 = vmatpush1.msra.mxu0 0.0
    %487 = vmatprep.subr.mxu0 0.0
    %488 = vmatpush1.msra.mxu0 0.0
    %489 = vmatprep.subr.mxu0 0.0
    %490 = vmatpush1.msra.mxu0 0.0
    %491 = vmatprep.subr.mxu0 0.0
    %492 = vmatpush1.msra.mxu0 0.0
    %493 = vmatprep.subr.mxu0 0.0
    %494 = vmatpush1.msra.mxu0 0.0
    %495 = vmatprep.subr.mxu0 0.0
    %496 = vmatpush1.msra.mxu0 0.0
    %497 = vmatprep.subr.mxu0 0.0
    %498 = vmatpush1.msra.mxu0 0.0
    %499 = vmatprep.subr.mxu0 0.0
    %500 = vmatpush1.msra.mxu0 0.0
    %501 = vmatprep.subr.mxu0 0.0
    %502 = vmatpush1.msra.mxu0 0.0
    %503 = vmatprep.subr.mxu0 0.0
    %504 = vmatpush1.msra.mxu0 0.0
    %505 = vmatprep.subr.mxu0 0.0
    %506 = vmatpush1.msra.mxu0 0.0
    %507 = vmatprep.subr.mxu0 0.0
    %508 = vmatpush1.msra.mxu0 0.0
    %509 = vmatprep.subr.mxu0 0.0
    %510 = vmatpush1.msra.mxu0 0.0
    %511 = vmatprep.subr.mxu0 0.0
    %512 = vmatpush1.msra.mxu0 0.0
    %513 = vmatprep.subr.mxu0 0.0
    %514 = vmatpush1.msra.mxu0 0.0
    %515 = vmatprep.subr.mxu0 0.0
    %516 = vmatpush1.msra.mxu0 0.0
    %517 = vmatprep.subr.mxu0 0.0
    %518 = vmatpush1.msra.mxu0 0.0
    %519 = vmatprep.subr.mxu0 0.0
    %520 = vmatpush1.msra.mxu0 0.0
    %521 = vmatprep.subr.mxu0 0.0
    %522 = vmatpush1.msra.mxu0 0.0
    %523 = vmatprep.subr.mxu0 0.0
    %524 = vmatpush1.msra.mxu0 0.0
    %525 = vmatprep.subr.mxu0 0.0
    %526 = vmatpush1.msra.mxu0 0.0
    %527 = vmatprep.subr.mxu0 0.0
    %528 = vmatpush1.msra.mxu0 0.0
    %529 = vmatprep.subr.mxu0 0.0
    %530 = vmatpush1.msra.mxu0 0.0
    %531 = vmatprep.subr.mxu0 0.0
    %532 = vmatpush1.msra.mxu0 0.0
    %533 = vmatprep.mubr.f32.mxu0 0.0
    %534 = vmatmul.mubr.f32.gmra.mrb[0].mxu0 %v467
    %v535 = vpop.f32.mrb[0].mxu0
    %v536 = vadd.f32 0.0, %v535
    %v537 = vpop.f32.mrb[0].mxu0
    %538 = vdwg.mxu0
    %539 = vrot.lane.b32.xlu0 %v199, 112
    %v540 = vpop.permute.xlu0 %539
    %541 = vrot.lane.b32.xlu0 %v199, 80
    %v542 = vpop.permute.xlu0 %541
    %v543 = vsel %vm210, %v540, 0
    %v545 = vsel %vm210, %v542, 0
    %547 = vmatprep.subr.mxu0 0.0
    %548 = vmatpush1.xpose.msra.mxu0 %v545
    %549 = vmatprep.subr.mxu0 0.0
    %550 = vmatpush1.xpose.msra.mxu0 0.0
    %551 = vmatprep.subr.mxu0 0.0
    %552 = vmatpush1.xpose.msra.mxu0 0.0
    %553 = vmatprep.subr.mxu0 0.0
    %554 = vmatpush1.xpose.msra.mxu0 0.0
    %555 = vmatprep.subr.mxu0 0.0
    %556 = vmatpush1.xpose.msra.mxu0 0.0
    %557 = vmatprep.subr.mxu0 0.0
    %558 = vmatpush1.xpose.msra.mxu0 0.0
    %559 = vmatprep.subr.mxu0 0.0
    %560 = vmatpush1.xpose.msra.mxu0 0.0
    %561 = vmatprep.subr.mxu0 0.0
    %562 = vmatpush1.xpose.msra.mxu0 0.0
    %563 = vmatprep.subr.mxu0 0.0
    %564 = vmatpush1.xpose.msra.mxu0 0.0
    %565 = vmatprep.subr.mxu0 0.0
    %566 = vmatpush1.xpose.msra.mxu0 0.0
    %567 = vmatprep.subr.mxu0 0.0
    %568 = vmatpush1.xpose.msra.mxu0 0.0
    %569 = vmatprep.subr.mxu0 0.0
    %570 = vmatpush1.xpose.msra.mxu0 0.0
    %571 = vmatprep.subr.mxu0 0.0
    %572 = vmatpush1.xpose.msra.mxu0 0.0
    %573 = vmatprep.subr.mxu0 0.0
    %574 = vmatpush1.xpose.msra.mxu0 0.0
    %575 = vmatprep.subr.mxu0 0.0
    %576 = vmatpush1.xpose.msra.mxu0 0.0
    %577 = vmatprep.subr.mxu0 0.0
    %578 = vmatpush1.xpose.msra.mxu0 0.0
    %579 = vmatprep.subr.mxu0 0.0
    %580 = vmatpush1.xpose.msra.mxu0 0.0
    %581 = vmatprep.subr.mxu0 0.0
    %582 = vmatpush1.xpose.msra.mxu0 0.0
    %583 = vmatprep.subr.mxu0 0.0
    %584 = vmatpush1.xpose.msra.mxu0 0.0
    %585 = vmatprep.subr.mxu0 0.0
    %586 = vmatpush1.xpose.msra.mxu0 0.0
    %587 = vmatprep.subr.mxu0 0.0
    %588 = vmatpush1.xpose.msra.mxu0 0.0
    %589 = vmatprep.subr.mxu0 0.0
    %590 = vmatpush1.xpose.msra.mxu0 0.0
    %591 = vmatprep.subr.mxu0 0.0
    %592 = vmatpush1.xpose.msra.mxu0 0.0
    %593 = vmatprep.subr.mxu0 0.0
    %594 = vmatpush1.xpose.msra.mxu0 0.0
    %595 = vmatprep.subr.mxu0 0.0
    %596 = vmatpush1.xpose.msra.mxu0 0.0
    %597 = vmatprep.subr.mxu0 0.0
    %598 = vmatpush1.xpose.msra.mxu0 0.0
    %599 = vmatprep.subr.mxu0 0.0
    %600 = vmatpush1.xpose.msra.mxu0 0.0
    %601 = vmatprep.subr.mxu0 0.0
    %602 = vmatpush1.xpose.msra.mxu0 0.0
    %603 = vmatprep.subr.mxu0 0.0
    %604 = vmatpush1.xpose.msra.mxu0 0.0
    %605 = vmatprep.subr.mxu0 0.0
    %606 = vmatpush1.xpose.msra.mxu0 0.0
    %607 = vmatprep.subr.mxu0 0.0
    %608 = vmatpush1.xpose.msra.mxu0 0.0
    %609 = vmatprep.subr.mxu0 0.0
    %610 = vmatpush1.xpose.msra.mxu0 0.0
    %611 = vmatprep.mubr.f32.mxu0 0.0
    %612 = vmatmul.mubr.f32.gmra.mrb[0].mxu0 %v543
    %v613 = vpop.f32.mrb[0].mxu0
    %v614 = vadd.f32 0.0, %v613
    %v615 = vpop.f32.mrb[0].mxu0
    %616 = vdwg.mxu0
    %v617 = vmul.f32 %v614, 0.35355338
    %v618 = vsel %vm210, %v617, -inf
    %619 = vmax.xlane.f32.xlu0 %v618
    %v620 = vpop.xlane.xlu0 %619
    %v621 = vsub.f32 %v617, %v620
    %v622 = vmul.f32 %v621, 1.442695
    %v623 = vpow.pop %v622
    %v624 = vsel %vm210, %v623, 0.0
    %625 = vadd.xlane.f32.xlu0 %v624
    %v626 = vpop.xlane.xlu0 %625
    %v627 = vrcp.pop %v626
    %v628 = vmul.f32 %v623, %v627
    %629 = vrot.lane.b32.xlu0 %v199, 48
    %v630 = vpop.permute.xlu0 %629
    %v633 = vsel %vm210, %v628, 0
    %635 = vmatprep.subr.mxu0 0.0
    %636 = vmatpush1.msra.mxu0 %v630
    %637 = vmatprep.subr.mxu0 0.0
    %638 = vmatpush1.msra.mxu0 0.0
    %639 = vmatprep.subr.mxu0 0.0
    %640 = vmatpush1.msra.mxu0 0.0
    %641 = vmatprep.subr.mxu0 0.0
    %642 = vmatpush1.msra.mxu0 0.0
    %643 = vmatprep.subr.mxu0 0.0
    %644 = vmatpush1.msra.mxu0 0.0
    %645 = vmatprep.subr.mxu0 0.0
    %646 = vmatpush1.msra.mxu0 0.0
    %647 = vmatprep.subr.mxu0 0.0
    %648 = vmatpush1.msra.mxu0 0.0
    %649 = vmatprep.subr.mxu0 0.0
    %650 = vmatpush1.msra.mxu0 0.0
    %651 = vmatprep.subr.mxu0 0.0
    %652 = vmatpush1.msra.mxu0 0.0
    %653 = vmatprep.subr.mxu0 0.0
    %654 = vmatpush1.msra.mxu0 0.0
    %655 = vmatprep.subr.mxu0 0.0
    %656 = vmatpush1.msra.mxu0 0.0
    %657 = vmatprep.subr.mxu0 0.0
    %658 = vmatpush1.msra.mxu0 0.0
    %659 = vmatprep.subr.mxu0 0.0
    %660 = vmatpush1.msra.mxu0 0.0
    %661 = vmatprep.subr.mxu0 0.0
    %662 = vmatpush1.msra.mxu0 0.0
    %663 = vmatprep.subr.mxu0 0.0
    %664 = vmatpush1.msra.mxu0 0.0
    %665 = vmatprep.subr.mxu0 0.0
    %666 = vmatpush1.msra.mxu0 0.0
    %667 = vmatprep.subr.mxu0 0.0
    %668 = vmatpush1.msra.mxu0 0.0
    %669 = vmatprep.subr.mxu0 0.0
    %670 = vmatpush1.msra.mxu0 0.0
    %671 = vmatprep.subr.mxu0 0.0
    %672 = vmatpush1.msra.mxu0 0.0
    %673 = vmatprep.subr.mxu0 0.0
    %674 = vmatpush1.msra.mxu0 0.0
    %675 = vmatprep.subr.mxu0 0.0
    %676 = vmatpush1.msra.mxu0 0.0
    %677 = vmatprep.subr.mxu0 0.0
    %678 = vmatpush1.msra.mxu0 0.0
    %679 = vmatprep.subr.mxu0 0.0
    %680 = vmatpush1.msra.mxu0 0.0
    %681 = vmatprep.subr.mxu0 0.0
    %682 = vmatpush1.msra.mxu0 0.0
    %683 = vmatprep.subr.mxu0 0.0
    %684 = vmatpush1.msra.mxu0 0.0
    %685 = vmatprep.subr.mxu0 0.0
    %686 = vmatpush1.msra.mxu0 0.0
    %687 = vmatprep.subr.mxu0 0.0
    %688 = vmatpush1.msra.mxu0 0.0
    %689 = vmatprep.subr.mxu0 0.0
    %690 = vmatpush1.msra.mxu0 0.0
    %691 = vmatprep.subr.mxu0 0.0
    %692 = vmatpush1.msra.mxu0 0.0
    %693 = vmatprep.subr.mxu0 0.0
    %694 = vmatpush1.msra.mxu0 0.0
    %695 = vmatprep.subr.mxu0 0.0
    %696 = vmatpush1.msra.mxu0 0.0
    %697 = vmatprep.subr.mxu0 0.0
    %698 = vmatpush1.msra.mxu0 0.0
    %699 = vmatprep.mubr.f32.mxu0 0.0
    %700 = vmatmul.mubr.f32.gmra.mrb[0].mxu0 %v633
    %v701 = vpop.f32.mrb[0].mxu0
    %v702 = vadd.f32 0.0, %v701
    %v703 = vpop.f32.mrb[0].mxu0
    %704 = vdwg.mxu0
    %705 = vrot.lane.b32.xlu0 %v199, 104
    %v706 = vpop.permute.xlu0 %705
    %707 = vrot.lane.b32.xlu0 %v199, 72
    %v708 = vpop.permute.xlu0 %707
    %v709 = vsel %vm210, %v706, 0
    %v711 = vsel %vm210, %v708, 0
    %713 = vmatprep.subr.mxu0 0.0
    %714 = vmatpush1.xpose.msra.mxu0 %v711
    %715 = vmatprep.subr.mxu0 0.0
    %716 = vmatpush1.xpose.msra.mxu0 0.0
    %717 = vmatprep.subr.mxu0 0.0
    %718 = vmatpush1.xpose.msra.mxu0 0.0
    %719 = vmatprep.subr.mxu0 0.0
    %720 = vmatpush1.xpose.msra.mxu0 0.0
    %721 = vmatprep.subr.mxu0 0.0
    %722 = vmatpush1.xpose.msra.mxu0 0.0
    %723 = vmatprep.subr.mxu0 0.0
    %724 = vmatpush1.xpose.msra.mxu0 0.0
    %725 = vmatprep.subr.mxu0 0.0
    %726 = vmatpush1.xpose.msra.mxu0 0.0
    %727 = vmatprep.subr.mxu0 0.0
    %728 = vmatpush1.xpose.msra.mxu0 0.0
    %729 = vmatprep.subr.mxu0 0.0
    %730 = vmatpush1.xpose.msra.mxu0 0.0
    %731 = vmatprep.subr.mxu0 0.0
    %732 = vmatpush1.xpose.msra.mxu0 0.0
    %733 = vmatprep.subr.mxu0 0.0
    %734 = vmatpush1.xpose.msra.mxu0 0.0
    %735 = vmatprep.subr.mxu0 0.0
    %736 = vmatpush1.xpose.msra.mxu0 0.0
    %737 = vmatprep.subr.mxu0 0.0
    %738 = vmatpush1.xpose.msra.mxu0 0.0
    %739 = vmatprep.subr.mxu0 0.0
    %740 = vmatpush1.xpose.msra.mxu0 0.0
    %741 = vmatprep.subr.mxu0 0.0
    %742 = vmatpush1.xpose.msra.mxu0 0.0
    %743 = vmatprep.subr.mxu0 0.0
    %744 = vmatpush1.xpose.msra.mxu0 0.0
    %745 = vmatprep.subr.mxu0 0.0
    %746 = vmatpush1.xpose.msra.mxu0 0.0
    %747 = vmatprep.subr.mxu0 0.0
    %748 = vmatpush1.xpose.msra.mxu0 0.0
    %749 = vmatprep.subr.mxu0 0.0
    %750 = vmatpush1.xpose.msra.mxu0 0.0
    %751 = vmatprep.subr.mxu0 0.0
    %752 = vmatpush1.xpose.msra.mxu0 0.0
    %753 = vmatprep.subr.mxu0 0.0
    %754 = vmatpush1.xpose.msra.mxu0 0.0
    %755 = vmatprep.subr.mxu0 0.0
    %756 = vmatpush1.xpose.msra.mxu0 0.0
    %757 = vmatprep.subr.mxu0 0.0
    %758 = vmatpush1.xpose.msra.mxu0 0.0
    %759 = vmatprep.subr.mxu0 0.0
    %760 = vmatpush1.xpose.msra.mxu0 0.0
    %761 = vmatprep.subr.mxu0 0.0
    %762 = vmatpush1.xpose.msra.mxu0 0.0
    %763 = vmatprep.subr.mxu0 0.0
    %764 = vmatpush1.xpose.msra.mxu0 0.0
    %765 = vmatprep.subr.mxu0 0.0
    %766 = vmatpush1.xpose.msra.mxu0 0.0
    %767 = vmatprep.subr.mxu0 0.0
    %768 = vmatpush1.xpose.msra.mxu0 0.0
    %769 = vmatprep.subr.mxu0 0.0
    %770 = vmatpush1.xpose.msra.mxu0 0.0
    %771 = vmatprep.subr.mxu0 0.0
    %772 = vmatpush1.xpose.msra.mxu0 0.0
    %773 = vmatprep.subr.mxu0 0.0
    %774 = vmatpush1.xpose.msra.mxu0 0.0
    %775 = vmatprep.subr.mxu0 0.0
    %776 = vmatpush1.xpose.msra.mxu0 0.0
    %777 = vmatprep.mubr.f32.mxu0 0.0
    %778 = vmatmul.mubr.f32.gmra.mrb[0].mxu0 %v709
    %v779 = vpop.f32.mrb[0].mxu0
    %v780 = vadd.f32 0.0, %v779
    %v781 = vpop.f32.mrb[0].mxu0
    %782 = vdwg.mxu0
    %v783 = vmul.f32 %v780, 0.35355338
    %v784 = vsel %vm210, %v783, -inf
    %785 = vmax.xlane.f32.xlu0 %v784
    %v786 = vpop.xlane.xlu0 %785
    %v787 = vsub.f32 %v783, %v786
    %v788 = vmul.f32 %v787, 1.442695
    %v789 = vpow.pop %v788
    %v790 = vsel %vm210, %v789, 0.0
    %791 = vadd.xlane.f32.xlu0 %v790
    %v792 = vpop.xlane.xlu0 %791
    %v793 = vrcp.pop %v792
    %v794 = vmul.f32 %v789, %v793
    %795 = vrot.lane.b32.xlu0 %v199, 40
    %v796 = vpop.permute.xlu0 %795
    %v799 = vsel %vm210, %v794, 0
    %801 = vmatprep.subr.mxu0 0.0
    %802 = vmatpush1.msra.mxu0 %v796
    %803 = vmatprep.subr.mxu0 0.0
    %804 = vmatpush1.msra.mxu0 0.0
    %805 = vmatprep.subr.mxu0 0.0
    %806 = vmatpush1.msra.mxu0 0.0
    %807 = vmatprep.subr.mxu0 0.0
    %808 = vmatpush1.msra.mxu0 0.0
    %809 = vmatprep.subr.mxu0 0.0
    %810 = vmatpush1.msra.mxu0 0.0
    %811 = vmatprep.subr.mxu0 0.0
    %812 = vmatpush1.msra.mxu0 0.0
    %813 = vmatprep.subr.mxu0 0.0
    %814 = vmatpush1.msra.mxu0 0.0
    %815 = vmatprep.subr.mxu0 0.0
    %816 = vmatpush1.msra.mxu0 0.0
    %817 = vmatprep.subr.mxu0 0.0
    %818 = vmatpush1.msra.mxu0 0.0
    %819 = vmatprep.subr.mxu0 0.0
    %820 = vmatpush1.msra.mxu0 0.0
    %821 = vmatprep.subr.mxu0 0.0
    %822 = vmatpush1.msra.mxu0 0.0
    %823 = vmatprep.subr.mxu0 0.0
    %824 = vmatpush1.msra.mxu0 0.0
    %825 = vmatprep.subr.mxu0 0.0
    %826 = vmatpush1.msra.mxu0 0.0
    %827 = vmatprep.subr.mxu0 0.0
    %828 = vmatpush1.msra.mxu0 0.0
    %829 = vmatprep.subr.mxu0 0.0
    %830 = vmatpush1.msra.mxu0 0.0
    %831 = vmatprep.subr.mxu0 0.0
    %832 = vmatpush1.msra.mxu0 0.0
    %833 = vmatprep.subr.mxu0 0.0
    %834 = vmatpush1.msra.mxu0 0.0
    %835 = vmatprep.subr.mxu0 0.0
    %836 = vmatpush1.msra.mxu0 0.0
    %837 = vmatprep.subr.mxu0 0.0
    %838 = vmatpush1.msra.mxu0 0.0
    %839 = vmatprep.subr.mxu0 0.0
    %840 = vmatpush1.msra.mxu0 0.0
    %841 = vmatprep.subr.mxu0 0.0
    %842 = vmatpush1.msra.mxu0 0.0
    %843 = vmatprep.subr.mxu0 0.0
    %844 = vmatpush1.msra.mxu0 0.0
    %845 = vmatprep.subr.mxu0 0.0
    %846 = vmatpush1.msra.mxu0 0.0
    %847 = vmatprep.subr.mxu0 0.0
    %848 = vmatpush1.msra.mxu0 0.0
    %849 = vmatprep.subr.mxu0 0.0
    %850 = vmatpush1.msra.mxu0 0.0
    %851 = vmatprep.subr.mxu0 0.0
    %852 = vmatpush1.msra.mxu0 0.0
    %853 = vmatprep.subr.mxu0 0.0
    %854 = vmatpush1.msra.mxu0 0.0
    %855 = vmatprep.subr.mxu0 0.0
    %856 = vmatpush1.msra.mxu0 0.0
    %857 = vmatprep.subr.mxu0 0.0
    %858 = vmatpush1.msra.mxu0 0.0
    %859 = vmatprep.subr.mxu0 0.0
    %860 = vmatpush1.msra.mxu0 0.0
    %861 = vmatprep.subr.mxu0 0.0
    %862 = vmatpush1.msra.mxu0 0.0
    %863 = vmatprep.subr.mxu0 0.0
    %864 = vmatpush1.msra.mxu0 0.0
    %865 = vmatprep.mubr.f32.mxu0 0.0
    %866 = vmatmul.mubr.f32.gmra.mrb[0].mxu0 %v799
    %v867 = vpop.f32.mrb[0].mxu0
    %v868 = vadd.f32 0.0, %v867
    %v869 = vpop.f32.mrb[0].mxu0
    %870 = vdwg.mxu0
    %872 = vrot.lane.b32.xlu0 %v536, 8
    %v873 = vpop.permute.xlu0 %872
    %876 = vrot.lane.b32.xlu0 %v702, 16
    %v877 = vpop.permute.xlu0 %876
    %880 = vrot.lane.b32.xlu0 %v868, 24
    %v881 = vpop.permute.xlu0 %880
    %v883 = vsel %vm210, %v370, %v873
    %vm884 = vcmask 130048
    %v885 = vsel %vm884, %v883, %v877
    %vm886 = vcmask 195584
    %v887 = vsel %vm886, %v885, %v881
    %889 = vrot.lane.b32.xlu0 %v204, 96
    %v890 = vpop.permute.xlu0 %889
    %v891 = vsel %vm210, %v204, 0
    %v893 = vsel %vm210, %v890, 0
    %895 = vmatprep.subr.mxu0 0.0
    %896 = vmatpush1.xpose.msra.mxu0 %v893
    %897 = vmatprep.subr.mxu0 0.0
    %898 = vmatpush1.xpose.msra.mxu0 0.0
    %899 = vmatprep.subr.mxu0 0.0
    %900 = vmatpush1.xpose.msra.mxu0 0.0
    %901 = vmatprep.subr.mxu0 0.0
    %902 = vmatpush1.xpose.msra.mxu0 0.0
    %903 = vmatprep.subr.mxu0 0.0
    %904 = vmatpush1.xpose.msra.mxu0 0.0
    %905 = vmatprep.subr.mxu0 0.0
    %906 = vmatpush1.xpose.msra.mxu0 0.0
    %907 = vmatprep.subr.mxu0 0.0
    %908 = vmatpush1.xpose.msra.mxu0 0.0
    %909 = vmatprep.subr.mxu0 0.0
    %910 = vmatpush1.xpose.msra.mxu0 0.0
    %911 = vmatprep.subr.mxu0 0.0
    %912 = vmatpush1.xpose.msra.mxu0 0.0
    %913 = vmatprep.subr.mxu0 0.0
    %914 = vmatpush1.xpose.msra.mxu0 0.0
    %915 = vmatprep.subr.mxu0 0.0
    %916 = vmatpush1.xpose.msra.mxu0 0.0
    %917 = vmatprep.subr.mxu0 0.0
    %918 = vmatpush1.xpose.msra.mxu0 0.0
    %919 = vmatprep.subr.mxu0 0.0
    %920 = vmatpush1.xpose.msra.mxu0 0.0
    %921 = vmatprep.subr.mxu0 0.0
    %922 = vmatpush1.xpose.msra.mxu0 0.0
    %923 = vmatprep.subr.mxu0 0.0
    %924 = vmatpush1.xpose.msra.mxu0 0.0
    %925 = vmatprep.subr.mxu0 0.0
    %926 = vmatpush1.xpose.msra.mxu0 0.0
    %927 = vmatprep.subr.mxu0 0.0
    %928 = vmatpush1.xpose.msra.mxu0 0.0
    %929 = vmatprep.subr.mxu0 0.0
    %930 = vmatpush1.xpose.msra.mxu0 0.0
    %931 = vmatprep.subr.mxu0 0.0
    %932 = vmatpush1.xpose.msra.mxu0 0.0
    %933 = vmatprep.subr.mxu0 0.0
    %934 = vmatpush1.xpose.msra.mxu0 0.0
    %935 = vmatprep.subr.mxu0 0.0
    %936 = vmatpush1.xpose.msra.mxu0 0.0
    %937 = vmatprep.subr.mxu0 0.0
    %938 = vmatpush1.xpose.msra.mxu0 0.0
    %939 = vmatprep.subr.mxu0 0.0
    %940 = vmatpush1.xpose.msra.mxu0 0.0
    %941 = vmatprep.subr.mxu0 0.0
    %942 = vmatpush1.xpose.msra.mxu0 0.0
    %943 = vmatprep.subr.mxu0 0.0
    %944 = vmatpush1.xpose.msra.mxu0 0.0
    %945 = vmatprep.subr.mxu0 0.0
    %946 = vmatpush1.xpose.msra.mxu0 0.0
    %947 = vmatprep.subr.mxu0 0.0
    %948 = vmatpush1.xpose.msra.mxu0 0.0
    %949 = vmatprep.subr.mxu0 0.0
    %950 = vmatpush1.xpose.msra.mxu0 0.0
    %951 = vmatprep.subr.mxu0 0.0
    %952 = vmatpush1.xpose.msra.mxu0 0.0
    %953 = vmatprep.subr.mxu0 0.0
    %954 = vmatpush1.xpose.msra.mxu0 0.0
    %955 = vmatprep.subr.mxu0 0.0
    %956 = vmatpush1.xpose.msra.mxu0 0.0
    %957 = vmatprep.subr.mxu0 0.0
    %958 = vmatpush1.xpose.msra.mxu0 0.0
    %959 = vmatprep.mubr.f32.mxu0 0.0
    %960 = vmatmul.mubr.f32.gmra.mrb[0].mxu0 %v891
    %v961 = vpop.f32.mrb[0].mxu0
    %v962 = vadd.f32 0.0, %v961
    %v963 = vpop.f32.mrb[0].mxu0
    %964 = vdwg.mxu0
    %v965 = vmul.f32 %v962, 0.35355338
    %v966 = vsel %vm210, %v965, -inf
    %967 = vmax.xlane.f32.xlu0 %v966
    %v968 = vpop.xlane.xlu0 %967
    %v969 = vsub.f32 %v965, %v968
    %v970 = vmul.f32 %v969, 1.442695
    %v971 = vpow.pop %v970
    %v972 = vsel %vm210, %v971, 0.0
    %973 = vadd.xlane.f32.xlu0 %v972
    %v974 = vpop.xlane.xlu0 %973
    %v975 = vrcp.pop %v974
    %v976 = vmul.f32 %v971, %v975
    %977 = vrot.lane.b32.xlu0 %v204, 64
    %v978 = vpop.permute.xlu0 %977
    %v981 = vsel %vm210, %v976, 0
    %983 = vmatprep.subr.mxu0 0.0
    %984 = vmatpush1.msra.mxu0 %v978
    %985 = vmatprep.subr.mxu0 0.0
    %986 = vmatpush1.msra.mxu0 0.0
    %987 = vmatprep.subr.mxu0 0.0
    %988 = vmatpush1.msra.mxu0 0.0
    %989 = vmatprep.subr.mxu0 0.0
    %990 = vmatpush1.msra.mxu0 0.0
    %991 = vmatprep.subr.mxu0 0.0
    %992 = vmatpush1.msra.mxu0 0.0
    %993 = vmatprep.subr.mxu0 0.0
    %994 = vmatpush1.msra.mxu0 0.0
    %995 = vmatprep.subr.mxu0 0.0
    %996 = vmatpush1.msra.mxu0 0.0
    %997 = vmatprep.subr.mxu0 0.0
    %998 = vmatpush1.msra.mxu0 0.0
    %999 = vmatprep.subr.mxu0 0.0
    %1000 = vmatpush1.msra.mxu0 0.0
    %1001 = vmatprep.subr.mxu0 0.0
    %1002 = vmatpush1.msra.mxu0 0.0
    %1003 = vmatprep.subr.mxu0 0.0
    %1004 = vmatpush1.msra.mxu0 0.0
    %1005 = vmatprep.subr.mxu0 0.0
    %1006 = vmatpush1.msra.mxu0 0.0
    %1007 = vmatprep.subr.mxu0 0.0
    %1008 = vmatpush1.msra.mxu0 0.0
    %1009 = vmatprep.subr.mxu0 0.0
    %1010 = vmatpush1.msra.mxu0 0.0
    %1011 = vmatprep.subr.mxu0 0.0
    %1012 = vmatpush1.msra.mxu0 0.0
    %1013 = vmatprep.subr.mxu0 0.0
    %1014 = vmatpush1.msra.mxu0 0.0
    %1015 = vmatprep.subr.mxu0 0.0
    %1016 = vmatpush1.msra.mxu0 0.0
    %1017 = vmatprep.subr.mxu0 0.0
    %1018 = vmatpush1.msra.mxu0 0.0
    %1019 = vmatprep.subr.mxu0 0.0
    %1020 = vmatpush1.msra.mxu0 0.0
    %1021 = vmatprep.subr.mxu0 0.0
    %1022 = vmatpush1.msra.mxu0 0.0
    %1023 = vmatprep.subr.mxu0 0.0
    %1024 = vmatpush1.msra.mxu0 0.0
    %1025 = vmatprep.subr.mxu0 0.0
    %1026 = vmatpush1.msra.mxu0 0.0
    %1027 = vmatprep.subr.mxu0 0.0
    %1028 = vmatpush1.msra.mxu0 0.0
    %1029 = vmatprep.subr.mxu0 0.0
    %1030 = vmatpush1.msra.mxu0 0.0
    %1031 = vmatprep.subr.mxu0 0.0
    %1032 = vmatpush1.msra.mxu0 0.0
    %1033 = vmatprep.subr.mxu0 0.0
    %1034 = vmatpush1.msra.mxu0 0.0
    %1035 = vmatprep.subr.mxu0 0.0
    %1036 = vmatpush1.msra.mxu0 0.0
    %1037 = vmatprep.subr.mxu0 0.0
    %1038 = vmatpush1.msra.mxu0 0.0
    %1039 = vmatprep.subr.mxu0 0.0
    %1040 = vmatpush1.msra.mxu0 0.0
    %1041 = vmatprep.subr.mxu0 0.0
    %1042 = vmatpush1.msra.mxu0 0.0
    %1043 = vmatprep.subr.mxu0 0.0
    %1044 = vmatpush1.msra.mxu0 0.0
    %1045 = vmatprep.subr.mxu0 0.0
    %1046 = vmatpush1.msra.mxu0 0.0
    %1047 = vmatprep.mubr.f32.mxu0 0.0
    %1048 = vmatmul.mubr.f32.gmra.mrb[0].mxu0 %v981
    %v1049 = vpop.f32.mrb[0].mxu0
    %v1050 = vadd.f32 0.0, %v1049
    %v1051 = vpop.f32.mrb[0].mxu0
    %1052 = vdwg.mxu0
    %1053 = vrot.lane.b32.xlu0 %v204, 120
    %v1054 = vpop.permute.xlu0 %1053
    %1055 = vrot.lane.b32.xlu0 %v204, 88
    %v1056 = vpop.permute.xlu0 %1055
    %v1057 = vsel %vm210, %v1054, 0
    %v1059 = vsel %vm210, %v1056, 0
    %1061 = vmatprep.subr.mxu0 0.0
    %1062 = vmatpush1.xpose.msra.mxu0 %v1059
    %1063 = vmatprep.subr.mxu0 0.0
    %1064 = vmatpush1.xpose.msra.mxu0 0.0
    %1065 = vmatprep.subr.mxu0 0.0
    %1066 = vmatpush1.xpose.msra.mxu0 0.0
    %1067 = vmatprep.subr.mxu0 0.0
    %1068 = vmatpush1.xpose.msra.mxu0 0.0
    %1069 = vmatprep.subr.mxu0 0.0
    %1070 = vmatpush1.xpose.msra.mxu0 0.0
    %1071 = vmatprep.subr.mxu0 0.0
    %1072 = vmatpush1.xpose.msra.mxu0 0.0
    %1073 = vmatprep.subr.mxu0 0.0
    %1074 = vmatpush1.xpose.msra.mxu0 0.0
    %1075 = vmatprep.subr.mxu0 0.0
    %1076 = vmatpush1.xpose.msra.mxu0 0.0
    %1077 = vmatprep.subr.mxu0 0.0
    %1078 = vmatpush1.xpose.msra.mxu0 0.0
    %1079 = vmatprep.subr.mxu0 0.0
    %1080 = vmatpush1.xpose.msra.mxu0 0.0
    %1081 = vmatprep.subr.mxu0 0.0
    %1082 = vmatpush1.xpose.msra.mxu0 0.0
    %1083 = vmatprep.subr.mxu0 0.0
    %1084 = vmatpush1.xpose.msra.mxu0 0.0
    %1085 = vmatprep.subr.mxu0 0.0
    %1086 = vmatpush1.xpose.msra.mxu0 0.0
    %1087 = vmatprep.subr.mxu0 0.0
    %1088 = vmatpush1.xpose.msra.mxu0 0.0
    %1089 = vmatprep.subr.mxu0 0.0
    %1090 = vmatpush1.xpose.msra.mxu0 0.0
    %1091 = vmatprep.subr.mxu0 0.0
    %1092 = vmatpush1.xpose.msra.mxu0 0.0
    %1093 = vmatprep.subr.mxu0 0.0
    %1094 = vmatpush1.xpose.msra.mxu0 0.0
    %1095 = vmatprep.subr.mxu0 0.0
    %1096 = vmatpush1.xpose.msra.mxu0 0.0
    %1097 = vmatprep.subr.mxu0 0.0
    %1098 = vmatpush1.xpose.msra.mxu0 0.0
    %1099 = vmatprep.subr.mxu0 0.0
    %1100 = vmatpush1.xpose.msra.mxu0 0.0
    %1101 = vmatprep.subr.mxu0 0.0
    %1102 = vmatpush1.xpose.msra.mxu0 0.0
    %1103 = vmatprep.subr.mxu0 0.0
    %1104 = vmatpush1.xpose.msra.mxu0 0.0
    %1105 = vmatprep.subr.mxu0 0.0
    %1106 = vmatpush1.xpose.msra.mxu0 0.0
    %1107 = vmatprep.subr.mxu0 0.0
    %1108 = vmatpush1.xpose.msra.mxu0 0.0
    %1109 = vmatprep.subr.mxu0 0.0
    %1110 = vmatpush1.xpose.msra.mxu0 0.0
    %1111 = vmatprep.subr.mxu0 0.0
    %1112 = vmatpush1.xpose.msra.mxu0 0.0
    %1113 = vmatprep.subr.mxu0 0.0
    %1114 = vmatpush1.xpose.msra.mxu0 0.0
    %1115 = vmatprep.subr.mxu0 0.0
    %1116 = vmatpush1.xpose.msra.mxu0 0.0
    %1117 = vmatprep.subr.mxu0 0.0
    %1118 = vmatpush1.xpose.msra.mxu0 0.0
    %1119 = vmatprep.subr.mxu0 0.0
    %1120 = vmatpush1.xpose.msra.mxu0 0.0
    %1121 = vmatprep.subr.mxu0 0.0
    %1122 = vmatpush1.xpose.msra.mxu0 0.0
    %1123 = vmatprep.subr.mxu0 0.0
    %1124 = vmatpush1.xpose.msra.mxu0 0.0
    %1125 = vmatprep.mubr.f32.mxu0 0.0
    %1126 = vmatmul.mubr.f32.gmra.mrb[0].mxu0 %v1057
    %v1127 = vpop.f32.mrb[0].mxu0
    %v1128 = vadd.f32 0.0, %v1127
    %v1129 = vpop.f32.mrb[0].mxu0
    %1130 = vdwg.mxu0
    %v1131 = vmul.f32 %v1128, 0.35355338
    %v1132 = vsel %vm210, %v1131, -inf
    %1133 = vmax.xlane.f32.xlu0 %v1132
    %v1134 = vpop.xlane.xlu0 %1133
    %v1135 = vsub.f32 %v1131, %v1134
    %v1136 = vmul.f32 %v1135, 1.442695
    %v1137 = vpow.pop %v1136
    %v1138 = vsel %vm210, %v1137, 0.0
    %1139 = vadd.xlane.f32.xlu0 %v1138
    %v1140 = vpop.xlane.xlu0 %1139
    %v1141 = vrcp.pop %v1140
    %v1142 = vmul.f32 %v1137, %v1141
    %1143 = vrot.lane.b32.xlu0 %v204, 56
    %v1144 = vpop.permute.xlu0 %1143
    %v1147 = vsel %vm210, %v1142, 0
    %1149 = vmatprep.subr.mxu0 0.0
    %1150 = vmatpush1.msra.mxu0 %v1144
    %1151 = vmatprep.subr.mxu0 0.0
    %1152 = vmatpush1.msra.mxu0 0.0
    %1153 = vmatprep.subr.mxu0 0.0
    %1154 = vmatpush1.msra.mxu0 0.0
    %1155 = vmatprep.subr.mxu0 0.0
    %1156 = vmatpush1.msra.mxu0 0.0
    %1157 = vmatprep.subr.mxu0 0.0
    %1158 = vmatpush1.msra.mxu0 0.0
    %1159 = vmatprep.subr.mxu0 0.0
    %1160 = vmatpush1.msra.mxu0 0.0
    %1161 = vmatprep.subr.mxu0 0.0
    %1162 = vmatpush1.msra.mxu0 0.0
    %1163 = vmatprep.subr.mxu0 0.0
    %1164 = vmatpush1.msra.mxu0 0.0
    %1165 = vmatprep.subr.mxu0 0.0
    %1166 = vmatpush1.msra.mxu0 0.0
    %1167 = vmatprep.subr.mxu0 0.0
    %1168 = vmatpush1.msra.mxu0 0.0
    %1169 = vmatprep.subr.mxu0 0.0
    %1170 = vmatpush1.msra.mxu0 0.0
    %1171 = vmatprep.subr.mxu0 0.0
    %1172 = vmatpush1.msra.mxu0 0.0
    %1173 = vmatprep.subr.mxu0 0.0
    %1174 = vmatpush1.msra.mxu0 0.0
    %1175 = vmatprep.subr.mxu0 0.0
    %1176 = vmatpush1.msra.mxu0 0.0
    %1177 = vmatprep.subr.mxu0 0.0
    %1178 = vmatpush1.msra.mxu0 0.0
    %1179 = vmatprep.subr.mxu0 0.0
    %1180 = vmatpush1.msra.mxu0 0.0
    %1181 = vmatprep.subr.mxu0 0.0
    %1182 = vmatpush1.msra.mxu0 0.0
    %1183 = vmatprep.subr.mxu0 0.0
    %1184 = vmatpush1.msra.mxu0 0.0
    %1185 = vmatprep.subr.mxu0 0.0
    %1186 = vmatpush1.msra.mxu0 0.0
    %1187 = vmatprep.subr.mxu0 0.0
    %1188 = vmatpush1.msra.mxu0 0.0
    %1189 = vmatprep.subr.mxu0 0.0
    %1190 = vmatpush1.msra.mxu0 0.0
    %1191 = vmatprep.subr.mxu0 0.0
    %1192 = vmatpush1.msra.mxu0 0.0
    %1193 = vmatprep.subr.mxu0 0.0
    %1194 = vmatpush1.msra.mxu0 0.0
    %1195 = vmatprep.subr.mxu0 0.0
    %1196 = vmatpush1.msra.mxu0 0.0
    %1197 = vmatprep.subr.mxu0 0.0
    %1198 = vmatpush1.msra.mxu0 0.0
    %1199 = vmatprep.subr.mxu0 0.0
    %1200 = vmatpush1.msra.mxu0 0.0
    %1201 = vmatprep.subr.mxu0 0.0
    %1202 = vmatpush1.msra.mxu0 0.0
    %1203 = vmatprep.subr.mxu0 0.0
    %1204 = vmatpush1.msra.mxu0 0.0
    %1205 = vmatprep.subr.mxu0 0.0
    %1206 = vmatpush1.msra.mxu0 0.0
    %1207 = vmatprep.subr.mxu0 0.0
    %1208 = vmatpush1.msra.mxu0 0.0
    %1209 = vmatprep.subr.mxu0 0.0
    %1210 = vmatpush1.msra.mxu0 0.0
    %1211 = vmatprep.subr.mxu0 0.0
    %1212 = vmatpush1.msra.mxu0 0.0
    %1213 = vmatprep.mubr.f32.mxu0 0.0
    %1214 = vmatmul.mubr.f32.gmra.mrb[0].mxu0 %v1147
    %v1215 = vpop.f32.mrb[0].mxu0
    %v1216 = vadd.f32 0.0, %v1215
    %v1217 = vpop.f32.mrb[0].mxu0
    %1218 = vdwg.mxu0
    %1219 = vrot.lane.b32.xlu0 %v204, 112
    %v1220 = vpop.permute.xlu0 %1219
    %1221 = vrot.lane.b32.xlu0 %v204, 80
    %v1222 = vpop.permute.xlu0 %1221
    %v1223 = vsel %vm210, %v1220, 0
    %v1225 = vsel %vm210, %v1222, 0
    %1227 = vmatprep.subr.mxu0 0.0
    %1228 = vmatpush1.xpose.msra.mxu0 %v1225
    %1229 = vmatprep.subr.mxu0 0.0
    %1230 = vmatpush1.xpose.msra.mxu0 0.0
    %1231 = vmatprep.subr.mxu0 0.0
    %1232 = vmatpush1.xpose.msra.mxu0 0.0
    %1233 = vmatprep.subr.mxu0 0.0
    %1234 = vmatpush1.xpose.msra.mxu0 0.0
    %1235 = vmatprep.subr.mxu0 0.0
    %1236 = vmatpush1.xpose.msra.mxu0 0.0
    %1237 = vmatprep.subr.mxu0 0.0
    %1238 = vmatpush1.xpose.msra.mxu0 0.0
    %1239 = vmatprep.subr.mxu0 0.0
    %1240 = vmatpush1.xpose.msra.mxu0 0.0
    %1241 = vmatprep.subr.mxu0 0.0
    %1242 = vmatpush1.xpose.msra.mxu0 0.0
    %1243 = vmatprep.subr.mxu0 0.0
    %1244 = vmatpush1.xpose.msra.mxu0 0.0
    %1245 = vmatprep.subr.mxu0 0.0
    %1246 = vmatpush1.xpose.msra.mxu0 0.0
    %1247 = vmatprep.subr.mxu0 0.0
    %1248 = vmatpush1.xpose.msra.mxu0 0.0
    %1249 = vmatprep.subr.mxu0 0.0
    %1250 = vmatpush1.xpose.msra.mxu0 0.0
    %1251 = vmatprep.subr.mxu0 0.0
    %1252 = vmatpush1.xpose.msra.mxu0 0.0
    %1253 = vmatprep.subr.mxu0 0.0
    %1254 = vmatpush1.xpose.msra.mxu0 0.0
    %1255 = vmatprep.subr.mxu0 0.0
    %1256 = vmatpush1.xpose.msra.mxu0 0.0
    %1257 = vmatprep.subr.mxu0 0.0
    %1258 = vmatpush1.xpose.msra.mxu0 0.0
    %1259 = vmatprep.subr.mxu0 0.0
    %1260 = vmatpush1.xpose.msra.mxu0 0.0
    %1261 = vmatprep.subr.mxu0 0.0
    %1262 = vmatpush1.xpose.msra.mxu0 0.0
    %1263 = vmatprep.subr.mxu0 0.0
    %1264 = vmatpush1.xpose.msra.mxu0 0.0
    %1265 = vmatprep.subr.mxu0 0.0
    %1266 = vmatpush1.xpose.msra.mxu0 0.0
    %1267 = vmatprep.subr.mxu0 0.0
    %1268 = vmatpush1.xpose.msra.mxu0 0.0
    %1269 = vmatprep.subr.mxu0 0.0
    %1270 = vmatpush1.xpose.msra.mxu0 0.0
    %1271 = vmatprep.subr.mxu0 0.0
    %1272 = vmatpush1.xpose.msra.mxu0 0.0
    %1273 = vmatprep.subr.mxu0 0.0
    %1274 = vmatpush1.xpose.msra.mxu0 0.0
    %1275 = vmatprep.subr.mxu0 0.0
    %1276 = vmatpush1.xpose.msra.mxu0 0.0
    %1277 = vmatprep.subr.mxu0 0.0
    %1278 = vmatpush1.xpose.msra.mxu0 0.0
    %1279 = vmatprep.subr.mxu0 0.0
    %1280 = vmatpush1.xpose.msra.mxu0 0.0
    %1281 = vmatprep.subr.mxu0 0.0
    %1282 = vmatpush1.xpose.msra.mxu0 0.0
    %1283 = vmatprep.subr.mxu0 0.0
    %1284 = vmatpush1.xpose.msra.mxu0 0.0
    %1285 = vmatprep.subr.mxu0 0.0
    %1286 = vmatpush1.xpose.msra.mxu0 0.0
    %1287 = vmatprep.subr.mxu0 0.0
    %1288 = vmatpush1.xpose.msra.mxu0 0.0
    %1289 = vmatprep.subr.mxu0 0.0
    %1290 = vmatpush1.xpose.msra.mxu0 0.0
    %1291 = vmatprep.mubr.f32.mxu0 0.0
    %1292 = vmatmul.mubr.f32.gmra.mrb[0].mxu0 %v1223
    %v1293 = vpop.f32.mrb[0].mxu0
    %v1294 = vadd.f32 0.0, %v1293
    %v1295 = vpop.f32.mrb[0].mxu0
    %1296 = vdwg.mxu0
    %v1297 = vmul.f32 %v1294, 0.35355338
    %v1298 = vsel %vm210, %v1297, -inf
    %1299 = vmax.xlane.f32.xlu0 %v1298
    %v1300 = vpop.xlane.xlu0 %1299
    %v1301 = vsub.f32 %v1297, %v1300
    %v1302 = vmul.f32 %v1301, 1.442695
    %v1303 = vpow.pop %v1302
    %v1304 = vsel %vm210, %v1303, 0.0
    %1305 = vadd.xlane.f32.xlu0 %v1304
    %v1306 = vpop.xlane.xlu0 %1305
    %v1307 = vrcp.pop %v1306
    %v1308 = vmul.f32 %v1303, %v1307
    %1309 = vrot.lane.b32.xlu0 %v204, 48
    %v1310 = vpop.permute.xlu0 %1309
    %v1313 = vsel %vm210, %v1308, 0
    %1315 = vmatprep.subr.mxu0 0.0
    %1316 = vmatpush1.msra.mxu0 %v1310
    %1317 = vmatprep.subr.mxu0 0.0
    %1318 = vmatpush1.msra.mxu0 0.0
    %1319 = vmatprep.subr.mxu0 0.0
    %1320 = vmatpush1.msra.mxu0 0.0
    %1321 = vmatprep.subr.mxu0 0.0
    %1322 = vmatpush1.msra.mxu0 0.0
    %1323 = vmatprep.subr.mxu0 0.0
    %1324 = vmatpush1.msra.mxu0 0.0
    %1325 = vmatprep.subr.mxu0 0.0
    %1326 = vmatpush1.msra.mxu0 0.0
    %1327 = vmatprep.subr.mxu0 0.0
    %1328 = vmatpush1.msra.mxu0 0.0
    %1329 = vmatprep.subr.mxu0 0.0
    %1330 = vmatpush1.msra.mxu0 0.0
    %1331 = vmatprep.subr.mxu0 0.0
    %1332 = vmatpush1.msra.mxu0 0.0
    %1333 = vmatprep.subr.mxu0 0.0
    %1334 = vmatpush1.msra.mxu0 0.0
    %1335 = vmatprep.subr.mxu0 0.0
    %1336 = vmatpush1.msra.mxu0 0.0
    %1337 = vmatprep.subr.mxu0 0.0
    %1338 = vmatpush1.msra.mxu0 0.0
    %1339 = vmatprep.subr.mxu0 0.0
    %1340 = vmatpush1.msra.mxu0 0.0
    %1341 = vmatprep.subr.mxu0 0.0
    %1342 = vmatpush1.msra.mxu0 0.0
    %1343 = vmatprep.subr.mxu0 0.0
    %1344 = vmatpush1.msra.mxu0 0.0
    %1345 = vmatprep.subr.mxu0 0.0
    %1346 = vmatpush1.msra.mxu0 0.0
    %1347 = vmatprep.subr.mxu0 0.0
    %1348 = vmatpush1.msra.mxu0 0.0
    %1349 = vmatprep.subr.mxu0 0.0
    %1350 = vmatpush1.msra.mxu0 0.0
    %1351 = vmatprep.subr.mxu0 0.0
    %1352 = vmatpush1.msra.mxu0 0.0
    %1353 = vmatprep.subr.mxu0 0.0
    %1354 = vmatpush1.msra.mxu0 0.0
    %1355 = vmatprep.subr.mxu0 0.0
    %1356 = vmatpush1.msra.mxu0 0.0
    %1357 = vmatprep.subr.mxu0 0.0
    %1358 = vmatpush1.msra.mxu0 0.0
    %1359 = vmatprep.subr.mxu0 0.0
    %1360 = vmatpush1.msra.mxu0 0.0
    %1361 = vmatprep.subr.mxu0 0.0
    %1362 = vmatpush1.msra.mxu0 0.0
    %1363 = vmatprep.subr.mxu0 0.0
    %1364 = vmatpush1.msra.mxu0 0.0
    %1365 = vmatprep.subr.mxu0 0.0
    %1366 = vmatpush1.msra.mxu0 0.0
    %1367 = vmatprep.subr.mxu0 0.0
    %1368 = vmatpush1.msra.mxu0 0.0
    %1369 = vmatprep.subr.mxu0 0.0
    %1370 = vmatpush1.msra.mxu0 0.0
    %1371 = vmatprep.subr.mxu0 0.0
    %1372 = vmatpush1.msra.mxu0 0.0
    %1373 = vmatprep.subr.mxu0 0.0
    %1374 = vmatpush1.msra.mxu0 0.0
    %1375 = vmatprep.subr.mxu0 0.0
    %1376 = vmatpush1.msra.mxu0 0.0
    %1377 = vmatprep.subr.mxu0 0.0
    %1378 = vmatpush1.msra.mxu0 0.0
    %1379 = vmatprep.mubr.f32.mxu0 0.0
    %1380 = vmatmul.mubr.f32.gmra.mrb[0].mxu0 %v1313
    %v1381 = vpop.f32.mrb[0].mxu0
    %v1382 = vadd.f32 0.0, %v1381
    %v1383 = vpop.f32.mrb[0].mxu0
    %1384 = vdwg.mxu0
    %1385 = vrot.lane.b32.xlu0 %v204, 104
    %v1386 = vpop.permute.xlu0 %1385
    %1387 = vrot.lane.b32.xlu0 %v204, 72
    %v1388 = vpop.permute.xlu0 %1387
    %v1389 = vsel %vm210, %v1386, 0
    %v1391 = vsel %vm210, %v1388, 0
    %1393 = vmatprep.subr.mxu0 0.0
    %1394 = vmatpush1.xpose.msra.mxu0 %v1391
    %1395 = vmatprep.subr.mxu0 0.0
    %1396 = vmatpush1.xpose.msra.mxu0 0.0
    %1397 = vmatprep.subr.mxu0 0.0
    %1398 = vmatpush1.xpose.msra.mxu0 0.0
    %1399 = vmatprep.subr.mxu0 0.0
    %1400 = vmatpush1.xpose.msra.mxu0 0.0
    %1401 = vmatprep.subr.mxu0 0.0
    %1402 = vmatpush1.xpose.msra.mxu0 0.0
    %1403 = vmatprep.subr.mxu0 0.0
    %1404 = vmatpush1.xpose.msra.mxu0 0.0
    %1405 = vmatprep.subr.mxu0 0.0
    %1406 = vmatpush1.xpose.msra.mxu0 0.0
    %1407 = vmatprep.subr.mxu0 0.0
    %1408 = vmatpush1.xpose.msra.mxu0 0.0
    %1409 = vmatprep.subr.mxu0 0.0
    %1410 = vmatpush1.xpose.msra.mxu0 0.0
    %1411 = vmatprep.subr.mxu0 0.0
    %1412 = vmatpush1.xpose.msra.mxu0 0.0
    %1413 = vmatprep.subr.mxu0 0.0
    %1414 = vmatpush1.xpose.msra.mxu0 0.0
    %1415 = vmatprep.subr.mxu0 0.0
    %1416 = vmatpush1.xpose.msra.mxu0 0.0
    %1417 = vmatprep.subr.mxu0 0.0
    %1418 = vmatpush1.xpose.msra.mxu0 0.0
    %1419 = vmatprep.subr.mxu0 0.0
    %1420 = vmatpush1.xpose.msra.mxu0 0.0
    %1421 = vmatprep.subr.mxu0 0.0
    %1422 = vmatpush1.xpose.msra.mxu0 0.0
    %1423 = vmatprep.subr.mxu0 0.0
    %1424 = vmatpush1.xpose.msra.mxu0 0.0
    %1425 = vmatprep.subr.mxu0 0.0
    %1426 = vmatpush1.xpose.msra.mxu0 0.0
    %1427 = vmatprep.subr.mxu0 0.0
    %1428 = vmatpush1.xpose.msra.mxu0 0.0
    %1429 = vmatprep.subr.mxu0 0.0
    %1430 = vmatpush1.xpose.msra.mxu0 0.0
    %1431 = vmatprep.subr.mxu0 0.0
    %1432 = vmatpush1.xpose.msra.mxu0 0.0
    %1433 = vmatprep.subr.mxu0 0.0
    %1434 = vmatpush1.xpose.msra.mxu0 0.0
    %1435 = vmatprep.subr.mxu0 0.0
    %1436 = vmatpush1.xpose.msra.mxu0 0.0
    %1437 = vmatprep.subr.mxu0 0.0
    %1438 = vmatpush1.xpose.msra.mxu0 0.0
    %1439 = vmatprep.subr.mxu0 0.0
    %1440 = vmatpush1.xpose.msra.mxu0 0.0
    %1441 = vmatprep.subr.mxu0 0.0
    %1442 = vmatpush1.xpose.msra.mxu0 0.0
    %1443 = vmatprep.subr.mxu0 0.0
    %1444 = vmatpush1.xpose.msra.mxu0 0.0
    %1445 = vmatprep.subr.mxu0 0.0
    %1446 = vmatpush1.xpose.msra.mxu0 0.0
    %1447 = vmatprep.subr.mxu0 0.0
    %1448 = vmatpush1.xpose.msra.mxu0 0.0
    %1449 = vmatprep.subr.mxu0 0.0
    %1450 = vmatpush1.xpose.msra.mxu0 0.0
    %1451 = vmatprep.subr.mxu0 0.0
    %1452 = vmatpush1.xpose.msra.mxu0 0.0
    %1453 = vmatprep.subr.mxu0 0.0
    %1454 = vmatpush1.xpose.msra.mxu0 0.0
    %1455 = vmatprep.subr.mxu0 0.0
    %1456 = vmatpush1.xpose.msra.mxu0 0.0
    %1457 = vmatprep.mubr.f32.mxu0 0.0
    %1458 = vmatmul.mubr.f32.gmra.mrb[0].mxu0 %v1389
    %v1459 = vpop.f32.mrb[0].mxu0
    %v1460 = vadd.f32 0.0, %v1459
    %v1461 = vpop.f32.mrb[0].mxu0
    %1462 = vdwg.mxu0
    %v1463 = vmul.f32 %v1460, 0.35355338
    %v1464 = vsel %vm210, %v1463, -inf
    %1465 = vmax.xlane.f32.xlu0 %v1464
    %v1466 = vpop.xlane.xlu0 %1465
    %v1467 = vsub.f32 %v1463, %v1466
    %v1468 = vmul.f32 %v1467, 1.442695
    %v1469 = vpow.pop %v1468
    %v1470 = vsel %vm210, %v1469, 0.0
    %1471 = vadd.xlane.f32.xlu0 %v1470
    %v1472 = vpop.xlane.xlu0 %1471
    %v1473 = vrcp.pop %v1472
    %v1474 = vmul.f32 %v1469, %v1473
    %1475 = vrot.lane.b32.xlu0 %v204, 40
    %v1476 = vpop.permute.xlu0 %1475
    %v1479 = vsel %vm210, %v1474, 0
    %1481 = vmatprep.subr.mxu0 0.0
    %1482 = vmatpush1.msra.mxu0 %v1476
    %1483 = vmatprep.subr.mxu0 0.0
    %1484 = vmatpush1.msra.mxu0 0.0
    %1485 = vmatprep.subr.mxu0 0.0
    %1486 = vmatpush1.msra.mxu0 0.0
    %1487 = vmatprep.subr.mxu0 0.0
    %1488 = vmatpush1.msra.mxu0 0.0
    %1489 = vmatprep.subr.mxu0 0.0
    %1490 = vmatpush1.msra.mxu0 0.0
    %1491 = vmatprep.subr.mxu0 0.0
    %1492 = vmatpush1.msra.mxu0 0.0
    %1493 = vmatprep.subr.mxu0 0.0
    %1494 = vmatpush1.msra.mxu0 0.0
    %1495 = vmatprep.subr.mxu0 0.0
    %1496 = vmatpush1.msra.mxu0 0.0
    %1497 = vmatprep.subr.mxu0 0.0
    %1498 = vmatpush1.msra.mxu0 0.0
    %1499 = vmatprep.subr.mxu0 0.0
    %1500 = vmatpush1.msra.mxu0 0.0
    %1501 = vmatprep.subr.mxu0 0.0
    %1502 = vmatpush1.msra.mxu0 0.0
    %1503 = vmatprep.subr.mxu0 0.0
    %1504 = vmatpush1.msra.mxu0 0.0
    %1505 = vmatprep.subr.mxu0 0.0
    %1506 = vmatpush1.msra.mxu0 0.0
    %1507 = vmatprep.subr.mxu0 0.0
    %1508 = vmatpush1.msra.mxu0 0.0
    %1509 = vmatprep.subr.mxu0 0.0
    %1510 = vmatpush1.msra.mxu0 0.0
    %1511 = vmatprep.subr.mxu0 0.0
    %1512 = vmatpush1.msra.mxu0 0.0
    %1513 = vmatprep.subr.mxu0 0.0
    %1514 = vmatpush1.msra.mxu0 0.0
    %1515 = vmatprep.subr.mxu0 0.0
    %1516 = vmatpush1.msra.mxu0 0.0
    %1517 = vmatprep.subr.mxu0 0.0
    %1518 = vmatpush1.msra.mxu0 0.0
    %1519 = vmatprep.subr.mxu0 0.0
    %1520 = vmatpush1.msra.mxu0 0.0
    %1521 = vmatprep.subr.mxu0 0.0
    %1522 = vmatpush1.msra.mxu0 0.0
    %1523 = vmatprep.subr.mxu0 0.0
    %1524 = vmatpush1.msra.mxu0 0.0
    %1525 = vmatprep.subr.mxu0 0.0
    %1526 = vmatpush1.msra.mxu0 0.0
    %1527 = vmatprep.subr.mxu0 0.0
    %1528 = vmatpush1.msra.mxu0 0.0
    %1529 = vmatprep.subr.mxu0 0.0
    %1530 = vmatpush1.msra.mxu0 0.0
    %1531 = vmatprep.subr.mxu0 0.0
    %1532 = vmatpush1.msra.mxu0 0.0
    %1533 = vmatprep.subr.mxu0 0.0
    %1534 = vmatpush1.msra.mxu0 0.0
    %1535 = vmatprep.subr.mxu0 0.0
    %1536 = vmatpush1.msra.mxu0 0.0
    %1537 = vmatprep.subr.mxu0 0.0
    %1538 = vmatpush1.msra.mxu0 0.0
    %1539 = vmatprep.subr.mxu0 0.0
    %1540 = vmatpush1.msra.mxu0 0.0
    %1541 = vmatprep.subr.mxu0 0.0
    %1542 = vmatpush1.msra.mxu0 0.0
    %1543 = vmatprep.subr.mxu0 0.0
    %1544 = vmatpush1.msra.mxu0 0.0
    %1545 = vmatprep.mubr.f32.mxu0 0.0
    %1546 = vmatmul.mubr.f32.gmra.mrb[0].mxu0 %v1479
    %v1547 = vpop.f32.mrb[0].mxu0
    %v1548 = vadd.f32 0.0, %v1547
    %v1549 = vpop.f32.mrb[0].mxu0
    %1550 = vdwg.mxu0
    %1552 = vrot.lane.b32.xlu0 %v1216, 8
    %v1553 = vpop.permute.xlu0 %1552
    %1556 = vrot.lane.b32.xlu0 %v1382, 16
    %v1557 = vpop.permute.xlu0 %1556
    %1560 = vrot.lane.b32.xlu0 %v1548, 24
    %v1561 = vpop.permute.xlu0 %1560
    %v1563 = vsel %vm210, %v1050, %v1553
    %v1564 = vsel %vm884, %v1563, %v1557
    %v1565 = vsel %vm886, %v1564, %v1561
    %v1566 = vld [vmem:[%s6] sm:$0xff]
    %v1567 = vld [vmem:[%s6 + $0x8] sm:$0xff]
    %v1568 = vld [vmem:[%s6 + $0x10] sm:$0xff]
    %v1569 = vld [vmem:[%s6 + $0x18] sm:$0xff]
    %v1570 = vld [vmem:[%s7] sm:$0x1]
    %v1571 = vlaneseq
    %v1572 = vshrl.u32 %v1571, 7
    %v1573 = vsub.s32 0, %v1572
    %v1574 = vrot.slane %v1570, %v1573
    %v1576 = vsel %vm73, %v887, 0
    %v1579 = vsel %vm73, %v1565, 0
    %1581 = vmatprep.subr.mxu0 0.0
    %1582 = vmatpush1.msra.mxu0 %v1566
    %1583 = vmatprep.subr.mxu0 0.0
    %1584 = vmatpush1.msra.mxu0 %v1567
    %1585 = vmatprep.subr.mxu0 0.0
    %1586 = vmatpush1.msra.mxu0 %v1568
    %1587 = vmatprep.subr.mxu0 0.0
    %1588 = vmatpush1.msra.mxu0 %v1569
    %1589 = vmatprep.subr.mxu0 0.0
    %1590 = vmatpush1.msra.mxu0 0.0
    %1591 = vmatprep.subr.mxu0 0.0
    %1592 = vmatpush1.msra.mxu0 0.0
    %1593 = vmatprep.subr.mxu0 0.0
    %1594 = vmatpush1.msra.mxu0 0.0
    %1595 = vmatprep.subr.mxu0 0.0
    %1596 = vmatpush1.msra.mxu0 0.0
    %1597 = vmatprep.subr.mxu0 0.0
    %1598 = vmatpush1.msra.mxu0 0.0
    %1599 = vmatprep.subr.mxu0 0.0
    %1600 = vmatpush1.msra.mxu0 0.0
    %1601 = vmatprep.subr.mxu0 0.0
    %1602 = vmatpush1.msra.mxu0 0.0
    %1603 = vmatprep.subr.mxu0 0.0
    %1604 = vmatpush1.msra.mxu0 0.0
    %1605 = vmatprep.subr.mxu0 0.0
    %1606 = vmatpush1.msra.mxu0 0.0
    %1607 = vmatprep.subr.mxu0 0.0
    %1608 = vmatpush1.msra.mxu0 0.0
    %1609 = vmatprep.subr.mxu0 0.0
    %1610 = vmatpush1.msra.mxu0 0.0
    %1611 = vmatprep.subr.mxu0 0.0
    %1612 = vmatpush1.msra.mxu0 0.0
    %1613 = vmatprep.subr.mxu0 0.0
    %1614 = vmatpush1.msra.mxu0 0.0
    %1615 = vmatprep.subr.mxu0 0.0
    %1616 = vmatpush1.msra.mxu0 0.0
    %1617 = vmatprep.subr.mxu0 0.0
    %1618 = vmatpush1.msra.mxu0 0.0
    %1619 = vmatprep.subr.mxu0 0.0
    %1620 = vmatpush1.msra.mxu0 0.0
    %1621 = vmatprep.subr.mxu0 0.0
    %1622 = vmatpush1.msra.mxu0 0.0
    %1623 = vmatprep.subr.mxu0 0.0
    %1624 = vmatpush1.msra.mxu0 0.0
    %1625 = vmatprep.subr.mxu0 0.0
    %1626 = vmatpush1.msra.mxu0 0.0
    %1627 = vmatprep.subr.mxu0 0.0
    %1628 = vmatpush1.msra.mxu0 0.0
    %1629 = vmatprep.subr.mxu0 0.0
    %1630 = vmatpush1.msra.mxu0 0.0
    %1631 = vmatprep.subr.mxu0 0.0
    %1632 = vmatpush1.msra.mxu0 0.0
    %1633 = vmatprep.subr.mxu0 0.0
    %1634 = vmatpush1.msra.mxu0 0.0
    %1635 = vmatprep.subr.mxu0 0.0
    %1636 = vmatpush1.msra.mxu0 0.0
    %1637 = vmatprep.subr.mxu0 0.0
    %1638 = vmatpush1.msra.mxu0 0.0
    %1639 = vmatprep.subr.mxu0 0.0
    %1640 = vmatpush1.msra.mxu0 0.0
    %1641 = vmatprep.subr.mxu0 0.0
    %1642 = vmatpush1.msra.mxu0 0.0
    %1643 = vmatprep.subr.mxu0 0.0
    %1644 = vmatpush1.msra.mxu0 0.0
    %1645 = vmatprep.mubr.f32.mxu0 0.0
    %1646 = vmatmul.mubr.f32.gmra.mrb[0].mxu0 %v1576
    %v1647 = vpop.f32.mrb[0].mxu0
    %v1648 = vadd.f32 %v1574, %v1647
    %v1649 = vpop.f32.mrb[0].mxu0
    %1650 = vmatprep.mubr.f32.mxu0 0.0
    %1651 = vmatmul.mubr.f32.gmra.mrb[0].mxu0 %v1579
    %v1652 = vpop.f32.mrb[0].mxu0
    %v1653 = vadd.f32 %v1574, %v1652
    %v1654 = vpop.f32.mrb[0].mxu0
    %1655 = vdwg.mxu0
    %v1656 = vadd.f32 %v115, %v1648
    %v1657 = vadd.f32 %v116, %v1653
    %v1658 = vld [vmem:[%s8] sm:$0x1]
    %v1659 = vld [vmem:[%s9] sm:$0x1]
    %v1660 = vsel %vm73, %v1656, 0.0
    %1661 = vadd.xlane.f32.xlu0 %v1660
    %v1662 = vpop.xlane.xlu0 %1661
    %v1663 = vsel %vm73, %v1657, 0.0
    %1664 = vadd.xlane.f32.xlu0 %v1663
    %v1665 = vpop.xlane.xlu0 %1664
    %v1666 = vmul.f32 %v1662, %v80
    %v1667 = vmul.f32 %v1665, %v80
    %v1668 = vsub.f32 %v1656, %v1666
    %v1669 = vsub.f32 %v1657, %v1667
    %v1670 = vmul.f32 %v1668, %v1668
    %v1671 = vmul.f32 %v1669, %v1669
    %v1672 = vsel %vm73, %v1670, 0.0
    %1673 = vadd.xlane.f32.xlu0 %v1672
    %v1674 = vpop.xlane.xlu0 %1673
    %v1675 = vsel %vm73, %v1671, 0.0
    %1676 = vadd.xlane.f32.xlu0 %v1675
    %v1677 = vpop.xlane.xlu0 %1676
    %v1678 = vmul.f32 %v1674, %v80
    %v1679 = vmul.f32 %v1677, %v80
    %v1680 = vadd.f32 %v1678, 1e-12
    %v1681 = vadd.f32 %v1679, 1e-12
    %v1682 = vrsqrt.pop %v1680
    %v1683 = vrsqrt.pop %v1681
    %v1684 = vmul.f32 %v1668, %v1682
    %v1685 = vmul.f32 %v1669, %v1683
    %v1686 = vlaneseq
    %v1687 = vshrl.u32 %v1686, 7
    %v1688 = vsub.s32 0, %v1687
    %v1689 = vrot.slane %v1658, %v1688
    %v1690 = vmul.f32 %v1684, %v1689
    %v1691 = vmul.f32 %v1685, %v1689
    %v1692 = vlaneseq
    %v1693 = vshrl.u32 %v1692, 7
    %v1694 = vsub.s32 0, %v1693
    %v1695 = vrot.slane %v1659, %v1694
    %v1696 = vadd.f32 %v1690, %v1695
    %v1697 = vadd.f32 %v1691, %v1695
    %v1698 = vld [vmem:[%s10] sm:$0xff]
    %v1699 = vld [vmem:[%s10 + $0x8] sm:$0xff]
    %v1700 = vld [vmem:[%s10 + $0x10] sm:$0xff]
    %v1701 = vld [vmem:[%s10 + $0x18] sm:$0xff]
    %v1702 = vld [vmem:[%s11] sm:$0x1]
    %v1703 = vlaneseq
    %v1704 = vshrl.u32 %v1703, 7
    %v1705 = vsub.s32 0, %v1704
    %v1706 = vrot.slane %v1702, %v1705
    %v1708 = vsel %vm73, %v1696, 0
    %v1711 = vsel %vm73, %v1697, 0
    %1713 = vmatprep.subr.mxu0 0.0
    %1714 = vmatpush1.msra.mxu0 %v1698
    %1715 = vmatprep.subr.mxu0 0.0
    %1716 = vmatpush1.msra.mxu0 %v1699
    %1717 = vmatprep.subr.mxu0 0.0
    %1718 = vmatpush1.msra.mxu0 %v1700
    %1719 = vmatprep.subr.mxu0 0.0
    %1720 = vmatpush1.msra.mxu0 %v1701
    %1721 = vmatprep.subr.mxu0 0.0
    %1722 = vmatpush1.msra.mxu0 0.0
    %1723 = vmatprep.subr.mxu0 0.0
    %1724 = vmatpush1.msra.mxu0 0.0
    %1725 = vmatprep.subr.mxu0 0.0
    %1726 = vmatpush1.msra.mxu0 0.0
    %1727 = vmatprep.subr.mxu0 0.0
    %1728 = vmatpush1.msra.mxu0 0.0
    %1729 = vmatprep.subr.mxu0 0.0
    %1730 = vmatpush1.msra.mxu0 0.0
    %1731 = vmatprep.subr.mxu0 0.0
    %1732 = vmatpush1.msra.mxu0 0.0
    %1733 = vmatprep.subr.mxu0 0.0
    %1734 = vmatpush1.msra.mxu0 0.0
    %1735 = vmatprep.subr.mxu0 0.0
    %1736 = vmatpush1.msra.mxu0 0.0
    %1737 = vmatprep.subr.mxu0 0.0
    %1738 = vmatpush1.msra.mxu0 0.0
    %1739 = vmatprep.subr.mxu0 0.0
    %1740 = vmatpush1.msra.mxu0 0.0
    %1741 = vmatprep.subr.mxu0 0.0
    %1742 = vmatpush1.msra.mxu0 0.0
    %1743 = vmatprep.subr.mxu0 0.0
    %1744 = vmatpush1.msra.mxu0 0.0
    %1745 = vmatprep.subr.mxu0 0.0
    %1746 = vmatpush1.msra.mxu0 0.0
    %1747 = vmatprep.subr.mxu0 0.0
    %1748 = vmatpush1.msra.mxu0 0.0
    %1749 = vmatprep.subr.mxu0 0.0
    %1750 = vmatpush1.msra.mxu0 0.0
    %1751 = vmatprep.subr.mxu0 0.0
    %1752 = vmatpush1.msra.mxu0 0.0
    %1753 = vmatprep.subr.mxu0 0.0
    %1754 = vmatpush1.msra.mxu0 0.0
    %1755 = vmatprep.subr.mxu0 0.0
    %1756 = vmatpush1.msra.mxu0 0.0
    %1757 = vmatprep.subr.mxu0 0.0
    %1758 = vmatpush1.msra.mxu0 0.0
    %1759 = vmatprep.subr.mxu0 0.0
    %1760 = vmatpush1.msra.mxu0 0.0
    %1761 = vmatprep.subr.mxu0 0.0
    %1762 = vmatpush1.msra.mxu0 0.0
    %1763 = vmatprep.subr.mxu0 0.0
    %1764 = vmatpush1.msra.mxu0 0.0
    %1765 = vmatprep.subr.mxu0 0.0
    %1766 = vmatpush1.msra.mxu0 0.0
    %1767 = vmatprep.subr.mxu0 0.0
    %1768 = vmatpush1.msra.mxu0 0.0
    %1769 = vmatprep.subr.mxu0 0.0
    %1770 = vmatpush1.msra.mxu0 0.0
    %1771 = vmatprep.subr.mxu0 0.0
    %1772 = vmatpush1.msra.mxu0 0.0
    %1773 = vmatprep.subr.mxu0 0.0
    %1774 = vmatpush1.msra.mxu0 0.0
    %1775 = vmatprep.subr.mxu0 0.0
    %1776 = vmatpush1.msra.mxu0 0.0
    %1777 = vmatprep.mubr.f32.mxu0 0.0
    %1778 = vmatmul.mubr.f32.gmra.mrb[0].mxu0 %v1708
    %v1779 = vpop.f32.mrb[0].mxu0
    %v1780 = vadd.f32 %v1706, %v1779
    %v1781 = vpop.f32.mrb[0].mxu0
    %1782 = vmatprep.mubr.f32.mxu0 0.0
    %1783 = vmatmul.mubr.f32.gmra.mrb[0].mxu0 %v1711
    %v1784 = vpop.f32.mrb[0].mxu0
    %v1785 = vadd.f32 %v1706, %v1784
    %v1786 = vpop.f32.mrb[0].mxu0
    %1787 = vdwg.mxu0
    %v1788 = vmul.f32 %v1780, 0.5
    %v1789 = vmul.f32 %v1785, 0.5
    %v1790 = vmul.f32 %v1780, 0.044715
    %v1791 = vmul.f32 %v1785, 0.044715
    %v1792 = vmul.f32 %v1790, %v1780
    %v1793 = vmul.f32 %v1791, %v1785
    %v1794 = vmul.f32 %v1792, %v1780
    %v1795 = vmul.f32 %v1793, %v1785
    %v1796 = vadd.f32 %v1780, %v1794
    %v1797 = vadd.f32 %v1785, %v1795
    %v1798 = vmul.f32 %v1796, 0.7978846
    %v1799 = vmul.f32 %v1797, 0.7978846
    %v1800 = vtanh.pop %v1798
    %v1801 = vtanh.pop %v1799
    %v1802 = vadd.f32 %v1800, 1.0
    %v1803 = vadd.f32 %v1801, 1.0
    %v1804 = vmul.f32 %v1788, %v1802
    %v1805 = vmul.f32 %v1789, %v1803
    %v1806 = vld [vmem:[%s12] sm:$0xff]
    %v1807 = vld [vmem:[%s12 + $0x8] sm:$0xff]
    %v1808 = vld [vmem:[%s12 + $0x10] sm:$0xff]
    %v1809 = vld [vmem:[%s12 + $0x18] sm:$0xff]
    %v1810 = vld [vmem:[%s12 + $0x20] sm:$0xff]
    %v1811 = vld [vmem:[%s12 + $0x28] sm:$0xff]
    %v1812 = vld [vmem:[%s12 + $0x30] sm:$0xff]
    %v1813 = vld [vmem:[%s12 + $0x38] sm:$0xff]
    %v1814 = vld [vmem:[%s13] sm:$0x1]
    %v1815 = vlaneseq
    %v1816 = vshrl.u32 %v1815, 7
    %v1817 = vsub.s32 0, %v1816
    %v1818 = vrot.slane %v1814, %v1817
    %vm1819 = vcmask 523264
    %v1821 = vsel %vm1819, %v1804, 0
    %v1824 = vsel %vm1819, %v1805, 0
    %1826 = vmatprep.subr.mxu0 0.0
    %1827 = vmatpush1.msra.mxu0 %v1806
    %1828 = vmatprep.subr.mxu0 0.0
    %1829 = vmatpush1.msra.mxu0 %v1807
    %1830 = vmatprep.subr.mxu0 0.0
    %1831 = vmatpush1.msra.mxu0 %v1808
    %1832 = vmatprep.subr.mxu0 0.0
    %1833 = vmatpush1.msra.mxu0 %v1809
    %1834 = vmatprep.subr.mxu0 0.0
    %1835 = vmatpush1.msra.mxu0 %v1810
    %1836 = vmatprep.subr.mxu0 0.0
    %1837 = vmatpush1.msra.mxu0 %v1811
    %1838 = vmatprep.subr.mxu0 0.0
    %1839 = vmatpush1.msra.mxu0 %v1812
    %1840 = vmatprep.subr.mxu0 0.0
    %1841 = vmatpush1.msra.mxu0 %v1813
    %1842 = vmatprep.subr.mxu0 0.0
    %1843 = vmatpush1.msra.mxu0 0.0
    %1844 = vmatprep.subr.mxu0 0.0
    %1845 = vmatpush1.msra.mxu0 0.0
    %1846 = vmatprep.subr.mxu0 0.0
    %1847 = vmatpush1.msra.mxu0 0.0
    %1848 = vmatprep.subr.mxu0 0.0
    %1849 = vmatpush1.msra.mxu0 0.0
    %1850 = vmatprep.subr.mxu0 0.0
    %1851 = vmatpush1.msra.mxu0 0.0
    %1852 = vmatprep.subr.mxu0 0.0
    %1853 = vmatpush1.msra.mxu0 0.0
    %1854 = vmatprep.subr.mxu0 0.0
    %1855 = vmatpush1.msra.mxu0 0.0
    %1856 = vmatprep.subr.mxu0 0.0
    %1857 = vmatpush1.msra.mxu0 0.0
    %1858 = vmatprep.subr.mxu0 0.0
    %1859 = vmatpush1.msra.mxu0 0.0
    %1860 = vmatprep.subr.mxu0 0.0
    %1861 = vmatpush1.msra.mxu0 0.0
    %1862 = vmatprep.subr.mxu0 0.0
    %1863 = vmatpush1.msra.mxu0 0.0
    %1864 = vmatprep.subr.mxu0 0.0
    %1865 = vmatpush1.msra.mxu0 0.0
    %1866 = vmatprep.subr.mxu0 0.0
    %1867 = vmatpush1.msra.mxu0 0.0
    %1868 = vmatprep.subr.mxu0 0.0
    %1869 = vmatpush1.msra.mxu0 0.0
    %1870 = vmatprep.subr.mxu0 0.0
    %1871 = vmatpush1.msra.mxu0 0.0
    %1872 = vmatprep.subr.mxu0 0.0
    %1873 = vmatpush1.msra.mxu0 0.0
    %1874 = vmatprep.subr.mxu0 0.0
    %1875 = vmatpush1.msra.mxu0 0.0
    %1876 = vmatprep.subr.mxu0 0.0
    %1877 = vmatpush1.msra.mxu0 0.0
    %1878 = vmatprep.subr.mxu0 0.0
    %1879 = vmatpush1.msra.mxu0 0.0
    %1880 = vmatprep.subr.mxu0 0.0
    %1881 = vmatpush1.msra.mxu0 0.0
    %1882 = vmatprep.subr.mxu0 0.0
    %1883 = vmatpush1.msra.mxu0 0.0
    %1884 = vmatprep.subr.mxu0 0.0
    %1885 = vmatpush1.msra.mxu0 0.0
    %1886 = vmatprep.subr.mxu0 0.0
    %1887 = vmatpush1.msra.mxu0 0.0
    %1888 = vmatprep.subr.mxu0 0.0
    %1889 = vmatpush1.msra.mxu0 0.0
    %1890 = vmatprep.mubr.f32.mxu0 0.0
    %1891 = vmatmul.mubr.f32.gmra.mrb[0].mxu0 %v1821
    %v1892 = vpop.f32.mrb[0].mxu0
    %v1893 = vadd.f32 %v1818, %v1892
    %v1894 = vpop.f32.mrb[0].mxu0
    %1895 = vmatprep.mubr.f32.mxu0 0.0
    %1896 = vmatmul.mubr.f32.gmra.mrb[0].mxu0 %v1824
    %v1897 = vpop.f32.mrb[0].mxu0
    %v1898 = vadd.f32 %v1818, %v1897
    %v1899 = vpop.f32.mrb[0].mxu0
    %1900 = vdwg.mxu0
    %v1901 = vadd.f32 %v1696, %v1893
    %v1902 = vadd.f32 %v1697, %v1898
    %v1903 = vld [vmem:[%s14] sm:$0x1]
    %v1904 = vld [vmem:[%s15] sm:$0x1]
    %v1905 = vsel %vm73, %v1901, 0.0
    %1906 = vadd.xlane.f32.xlu0 %v1905
    %v1907 = vpop.xlane.xlu0 %1906
    %v1908 = vsel %vm73, %v1902, 0.0
    %1909 = vadd.xlane.f32.xlu0 %v1908
    %v1910 = vpop.xlane.xlu0 %1909
    %v1911 = vmul.f32 %v1907, %v80
    %v1912 = vmul.f32 %v1910, %v80
    %v1913 = vsub.f32 %v1901, %v1911
    %v1914 = vsub.f32 %v1902, %v1912
    %v1915 = vmul.f32 %v1913, %v1913
    %v1916 = vmul.f32 %v1914, %v1914
    %v1917 = vsel %vm73, %v1915, 0.0
    %1918 = vadd.xlane.f32.xlu0 %v1917
    %v1919 = vpop.xlane.xlu0 %1918
    %v1920 = vsel %vm73, %v1916, 0.0
    %1921 = vadd.xlane.f32.xlu0 %v1920
    %v1922 = vpop.xlane.xlu0 %1921
    %v1923 = vmul.f32 %v1919, %v80
    %v1924 = vmul.f32 %v1922, %v80
    %v1925 = vadd.f32 %v1923, 1e-12
    %v1926 = vadd.f32 %v1924, 1e-12
    %v1927 = vrsqrt.pop %v1925
    %v1928 = vrsqrt.pop %v1926
    %v1929 = vmul.f32 %v1913, %v1927
    %v1930 = vmul.f32 %v1914, %v1928
    %v1931 = vlaneseq
    %v1932 = vshrl.u32 %v1931, 7
    %v1933 = vsub.s32 0, %v1932
    %v1934 = vrot.slane %v1903, %v1933
    %v1935 = vmul.f32 %v1929, %v1934
    %v1936 = vmul.f32 %v1930, %v1934
    %v1937 = vlaneseq
    %v1938 = vshrl.u32 %v1937, 7
    %v1939 = vsub.s32 0, %v1938
    %v1940 = vrot.slane %v1904, %v1939
    %v1941 = vadd.f32 %v1935, %v1940
    %v1942 = vadd.f32 %v1936, %v1940
    %s1943 = scalar_lea.vmem %s4, 32
    %v1944 = vld [vmem:[%s1943] sm:$0xff]
    %v1945 = vld [vmem:[%s1943 + $0x8] sm:$0xff]
    %v1946 = vld [vmem:[%s1943 + $0x10] sm:$0xff]
    %v1947 = vld [vmem:[%s1943 + $0x18] sm:$0xff]
    %v1948 = vld [vmem:[%s5 + $0x1] sm:$0x1]
    %v1949 = vlaneseq
    %v1950 = vshrl.u32 %v1949, 7
    %v1951 = vsub.s32 0, %v1950
    %v1952 = vrot.slane %v1948, %v1951
    %v1954 = vsel %vm73, %v1941, 0
    %v1957 = vsel %vm73, %v1942, 0
    %1959 = vmatprep.subr.mxu0 0.0
    %1960 = vmatpush1.msra.mxu0 %v1944
    %1961 = vmatprep.subr.mxu0 0.0
    %1962 = vmatpush1.msra.mxu0 %v1945
    %1963 = vmatprep.subr.mxu0 0.0
    %1964 = vmatpush1.msra.mxu0 %v1946
    %1965 = vmatprep.subr.mxu0 0.0
    %1966 = vmatpush1.msra.mxu0 %v1947
    %1967 = vmatprep.subr.mxu0 0.0
    %1968 = vmatpush1.msra.mxu0 0.0
    %1969 = vmatprep.subr.mxu0 0.0
    %1970 = vmatpush1.msra.mxu0 0.0
    %1971 = vmatprep.subr.mxu0 0.0
    %1972 = vmatpush1.msra.mxu0 0.0
    %1973 = vmatprep.subr.mxu0 0.0
    %1974 = vmatpush1.msra.mxu0 0.0
    %1975 = vmatprep.subr.mxu0 0.0
    %1976 = vmatpush1.msra.mxu0 0.0
    %1977 = vmatprep.subr.mxu0 0.0
    %1978 = vmatpush1.msra.mxu0 0.0
    %1979 = vmatprep.subr.mxu0 0.0
    %1980 = vmatpush1.msra.mxu0 0.0
    %1981 = vmatprep.subr.mxu0 0.0
    %1982 = vmatpush1.msra.mxu0 0.0
    %1983 = vmatprep.subr.mxu0 0.0
    %1984 = vmatpush1.msra.mxu0 0.0
    %1985 = vmatprep.subr.mxu0 0.0
    %1986 = vmatpush1.msra.mxu0 0.0
    %1987 = vmatprep.subr.mxu0 0.0
    %1988 = vmatpush1.msra.mxu0 0.0
    %1989 = vmatprep.subr.mxu0 0.0
    %1990 = vmatpush1.msra.mxu0 0.0
    %1991 = vmatprep.subr.mxu0 0.0
    %1992 = vmatpush1.msra.mxu0 0.0
    %1993 = vmatprep.subr.mxu0 0.0
    %1994 = vmatpush1.msra.mxu0 0.0
    %1995 = vmatprep.subr.mxu0 0.0
    %1996 = vmatpush1.msra.mxu0 0.0
    %1997 = vmatprep.subr.mxu0 0.0
    %1998 = vmatpush1.msra.mxu0 0.0
    %1999 = vmatprep.subr.mxu0 0.0
    %2000 = vmatpush1.msra.mxu0 0.0
    %2001 = vmatprep.subr.mxu0 0.0
    %2002 = vmatpush1.msra.mxu0 0.0
    %2003 = vmatprep.subr.mxu0 0.0
    %2004 = vmatpush1.msra.mxu0 0.0
    %2005 = vmatprep.subr.mxu0 0.0
    %2006 = vmatpush1.msra.mxu0 0.0
    %2007 = vmatprep.subr.mxu0 0.0
    %2008 = vmatpush1.msra.mxu0 0.0
    %2009 = vmatprep.subr.mxu0 0.0
    %2010 = vmatpush1.msra.mxu0 0.0
    %2011 = vmatprep.subr.mxu0 0.0
    %2012 = vmatpush1.msra.mxu0 0.0
    %2013 = vmatprep.subr.mxu0 0.0
    %2014 = vmatpush1.msra.mxu0 0.0
    %2015 = vmatprep.subr.mxu0 0.0
    %2016 = vmatpush1.msra.mxu0 0.0
    %2017 = vmatprep.subr.mxu0 0.0
    %2018 = vmatpush1.msra.mxu0 0.0
    %2019 = vmatprep.subr.mxu0 0.0
    %2020 = vmatpush1.msra.mxu0 0.0
    %2021 = vmatprep.subr.mxu0 0.0
    %2022 = vmatpush1.msra.mxu0 0.0
    %2023 = vmatprep.mubr.f32.mxu0 0.0
    %2024 = vmatmul.mubr.f32.gmra.mrb[0].mxu0 %v1954
    %v2025 = vpop.f32.mrb[0].mxu0
    %v2026 = vadd.f32 %v1952, %v2025
    %v2027 = vpop.f32.mrb[0].mxu0
    %2028 = vmatprep.mubr.f32.mxu0 0.0
    %2029 = vmatmul.mubr.f32.gmra.mrb[0].mxu0 %v1957
    %v2030 = vpop.f32.mrb[0].mxu0
    %v2031 = vadd.f32 %v1952, %v2030
    %v2032 = vpop.f32.mrb[0].mxu0
    %2033 = vdwg.mxu0
    %2035 = vrot.lane.b32.xlu0 %v2026, 96
    %v2036 = vpop.permute.xlu0 %2035
    %v2037 = vsel %vm210, %v2026, 0
    %v2039 = vsel %vm210, %v2036, 0
    %2041 = vmatprep.subr.mxu0 0.0
    %2042 = vmatpush1.xpose.msra.mxu0 %v2039
    %2043 = vmatprep.subr.mxu0 0.0
    %2044 = vmatpush1.xpose.msra.mxu0 0.0
    %2045 = vmatprep.subr.mxu0 0.0
    %2046 = vmatpush1.xpose.msra.mxu0 0.0
    %2047 = vmatprep.subr.mxu0 0.0
    %2048 = vmatpush1.xpose.msra.mxu0 0.0
    %2049 = vmatprep.subr.mxu0 0.0
    %2050 = vmatpush1.xpose.msra.mxu0 0.0
    %2051 = vmatprep.subr.mxu0 0.0
    %2052 = vmatpush1.xpose.msra.mxu0 0.0
    %2053 = vmatprep.subr.mxu0 0.0
    %2054 = vmatpush1.xpose.msra.mxu0 0.0
    %2055 = vmatprep.subr.mxu0 0.0
    %2056 = vmatpush1.xpose.msra.mxu0 0.0
    %2057 = vmatprep.subr.mxu0 0.0
    %2058 = vmatpush1.xpose.msra.mxu0 0.0
    %2059 = vmatprep.subr.mxu0 0.0
    %2060 = vmatpush1.xpose.msra.mxu0 0.0
    %2061 = vmatprep.subr.mxu0 0.0
    %2062 = vmatpush1.xpose.msra.mxu0 0.0
    %2063 = vmatprep.subr.mxu0 0.0
    %2064 = vmatpush1.xpose.msra.mxu0 0.0
    %2065 = vmatprep.subr.mxu0 0.0
    %2066 = vmatpush1.xpose.msra.mxu0 0.0
    %2067 = vmatprep.subr.mxu0 0.0
    %2068 = vmatpush1.xpose.msra.mxu0 0.0
    %2069 = vmatprep.subr.mxu0 0.0
    %2070 = vmatpush1.xpose.msra.mxu0 0.0
    %2071 = vmatprep.subr.mxu0 0.0
    %2072 = vmatpush1.xpose.msra.mxu0 0.0
    %2073 = vmatprep.subr.mxu0 0.0
    %2074 = vmatpush1.xpose.msra.mxu0 0.0
    %2075 = vmatprep.subr.mxu0 0.0
    %2076 = vmatpush1.xpose.msra.mxu0 0.0
    %2077 = vmatprep.subr.mxu0 0.0
    %2078 = vmatpush1.xpose.msra.mxu0 0.0
    %2079 = vmatprep.subr.mxu0 0.0
    %2080 = vmatpush1.xpose.msra.mxu0 0.0
    %2081 = vmatprep.subr.mxu0 0.0
    %2082 = vmatpush1.xpose.msra.mxu0 0.0
    %2083 = vmatprep.subr.mxu0 0.0
    %2084 = vmatpush1.xpose.msra.mxu0 0.0
    %2085 = vmatprep.subr.mxu0 0.0
    %2086 = vmatpush1.xpose.msra.mxu0 0.0
    %2087 = vmatprep.subr.mxu0 0.0
    %2088 = vmatpush1.xpose.msra.mxu0 0.0
    %2089 = vmatprep.subr.mxu0 0.0
    %2090 = vmatpush1.xpose.msra.mxu0 0.0
    %2091 = vmatprep.subr.mxu0 0.0
    %2092 = vmatpush1.xpose.msra.mxu0 0.0
    %2093 = vmatprep.subr.mxu0 0.0
    %2094 = vmatpush1.xpose.msra.mxu0 0.0
    %2095 = vmatprep.subr.mxu0 0.0
    %2096 = vmatpush1.xpose.msra.mxu0 0.0
    %2097 = vmatprep.subr.mxu0 0.0
    %2098 = vmatpush1.xpose.msra.mxu0 0.0
    %2099 = vmatprep.subr.mxu0 0.0
    %2100 = vmatpush1.xpose.msra.mxu0 0.0
    %2101 = vmatprep.subr.mxu0 0.0
    %2102 = vmatpush1.xpose.msra.mxu0 0.0
    %2103 = vmatprep.subr.mxu0 0.0
    %2104 = vmatpush1.xpose.msra.mxu0 0.0
    %2105 = vmatprep.mubr.f32.mxu0 0.0
    %2106 = vmatmul.mubr.f32.gmra.mrb[0].mxu0 %v2037
    %v2107 = vpop.f32.mrb[0].mxu0
    %v2108 = vadd.f32 0.0, %v2107
    %v2109 = vpop.f32.mrb[0].mxu0
    %2110 = vdwg.mxu0
    %v2111 = vmul.f32 %v2108, 0.35355338
    %v2112 = vsel %vm210, %v2111, -inf
    %2113 = vmax.xlane.f32.xlu0 %v2112
    %v2114 = vpop.xlane.xlu0 %2113
    %v2115 = vsub.f32 %v2111, %v2114
    %v2116 = vmul.f32 %v2115, 1.442695
    %v2117 = vpow.pop %v2116
    %v2118 = vsel %vm210, %v2117, 0.0
    %2119 = vadd.xlane.f32.xlu0 %v2118
    %v2120 = vpop.xlane.xlu0 %2119
    %v2121 = vrcp.pop %v2120
    %v2122 = vmul.f32 %v2117, %v2121
    %2123 = vrot.lane.b32.xlu0 %v2026, 64
    %v2124 = vpop.permute.xlu0 %2123
    %v2127 = vsel %vm210, %v2122, 0
    %2129 = vmatprep.subr.mxu0 0.0
    %2130 = vmatpush1.msra.mxu0 %v2124
    %2131 = vmatprep.subr.mxu0 0.0
    %2132 = vmatpush1.msra.mxu0 0.0
    %2133 = vmatprep.subr.mxu0 0.0
    %2134 = vmatpush1.msra.mxu0 0.0
    %2135 = vmatprep.subr.mxu0 0.0
    %2136 = vmatpush1.msra.mxu0 0.0
    %2137 = vmatprep.subr.mxu0 0.0
    %2138 = vmatpush1.msra.mxu0 0.0
    %2139 = vmatprep.subr.mxu0 0.0
    %2140 = vmatpush1.msra.mxu0 0.0
    %2141 = vmatprep.subr.mxu0 0.0
    %2142 = vmatpush1.msra.mxu0 0.0
    %2143 = vmatprep.subr.mxu0 0.0
    %2144 = vmatpush1.msra.mxu0 0.0
    %2145 = vmatprep.subr.mxu0 0.0
    %2146 = vmatpush1.msra.mxu0 0.0
    %2147 = vmatprep.subr.mxu0 0.0
    %2148 = vmatpush1.msra.mxu0 0.0
    %2149 = vmatprep.subr.mxu0 0.0
    %2150 = vmatpush1.msra.mxu0 0.0
    %2151 = vmatprep.subr.mxu0 0.0
    %2152 = vmatpush1.msra.mxu0 0.0
    %2153 = vmatprep.subr.mxu0 0.0
    %2154 = vmatpush1.msra.mxu0 0.0
    %2155 = vmatprep.subr.mxu0 0.0
    %2156 = vmatpush1.msra.mxu0 0.0
    %2157 = vmatprep.subr.mxu0 0.0
    %2158 = vmatpush1.msra.mxu0 0.0
    %2159 = vmatprep.subr.mxu0 0.0
    %2160 = vmatpush1.msra.mxu0 0.0
    %2161 = vmatprep.subr.mxu0 0.0
    %2162 = vmatpush1.msra.mxu0 0.0
    %2163 = vmatprep.subr.mxu0 0.0
    %2164 = vmatpush1.msra.mxu0 0.0
    %2165 = vmatprep.subr.mxu0 0.0
    %2166 = vmatpush1.msra.mxu0 0.0
    %2167 = vmatprep.subr.mxu0 0.0
    %2168 = vmatpush1.msra.mxu0 0.0
    %2169 = vmatprep.subr.mxu0 0.0
    %2170 = vmatpush1.msra.mxu0 0.0
    %2171 = vmatprep.subr.mxu0 0.0
    %2172 = vmatpush1.msra.mxu0 0.0
    %2173 = vmatprep.subr.mxu0 0.0
    %2174 = vmatpush1.msra.mxu0 0.0
    %2175 = vmatprep.subr.mxu0 0.0
    %2176 = vmatpush1.msra.mxu0 0.0
    %2177 = vmatprep.subr.mxu0 0.0
    %2178 = vmatpush1.msra.mxu0 0.0
    %2179 = vmatprep.subr.mxu0 0.0
    %2180 = vmatpush1.msra.mxu0 0.0
    %2181 = vmatprep.subr.mxu0 0.0
    %2182 = vmatpush1.msra.mxu0 0.0
    %2183 = vmatprep.subr.mxu0 0.0
    %2184 = vmatpush1.msra.mxu0 0.0
    %2185 = vmatprep.subr.mxu0 0.0
    %2186 = vmatpush1.msra.mxu0 0.0
    %2187 = vmatprep.subr.mxu0 0.0
    %2188 = vmatpush1.msra.mxu0 0.0
    %2189 = vmatprep.subr.mxu0 0.0
    %2190 = vmatpush1.msra.mxu0 0.0
    %2191 = vmatprep.subr.mxu0 0.0
    %2192 = vmatpush1.msra.mxu0 0.0
    %2193 = vmatprep.mubr.f32.mxu0 0.0
    %2194 = vmatmul.mubr.f32.gmra.mrb[0].mxu0 %v2127
    %v2195 = vpop.f32.mrb[0].mxu0
    %v2196 = vadd.f32 0.0, %v2195
    %v2197 = vpop.f32.mrb[0].mxu0
    %2198 = vdwg.mxu0
    %2199 = vrot.lane.b32.xlu0 %v2026, 120
    %v2200 = vpop.permute.xlu0 %2199
    %2201 = vrot.lane.b32.xlu0 %v2026, 88
    %v2202 = vpop.permute.xlu0 %2201
    %v2203 = vsel %vm210, %v2200, 0
    %v2205 = vsel %vm210, %v2202, 0
    %2207 = vmatprep.subr.mxu0 0.0
    %2208 = vmatpush1.xpose.msra.mxu0 %v2205
    %2209 = vmatprep.subr.mxu0 0.0
    %2210 = vmatpush1.xpose.msra.mxu0 0.0
    %2211 = vmatprep.subr.mxu0 0.0
    %2212 = vmatpush1.xpose.msra.mxu0 0.0
    %2213 = vmatprep.subr.mxu0 0.0
    %2214 = vmatpush1.xpose.msra.mxu0 0.0
    %2215 = vmatprep.subr.mxu0 0.0
    %2216 = vmatpush1.xpose.msra.mxu0 0.0
    %2217 = vmatprep.subr.mxu0 0.0
    %2218 = vmatpush1.xpose.msra.mxu0 0.0
    %2219 = vmatprep.subr.mxu0 0.0
    %2220 = vmatpush1.xpose.msra.mxu0 0.0
    %2221 = vmatprep.subr.mxu0 0.0
    %2222 = vmatpush1.xpose.msra.mxu0 0.0
    %2223 = vmatprep.subr.mxu0 0.0
    %2224 = vmatpush1.xpose.msra.mxu0 0.0
    %2225 = vmatprep.subr.mxu0 0.0
    %2226 = vmatpush1.xpose.msra.mxu0 0.0
    %2227 = vmatprep.subr.mxu0 0.0
    %2228 = vmatpush1.xpose.msra.mxu0 0.0
    %2229 = vmatprep.subr.mxu0 0.0
    %2230 = vmatpush1.xpose.msra.mxu0 0.0
    %2231 = vmatprep.subr.mxu0 0.0
    %2232 = vmatpush1.xpose.msra.mxu0 0.0
    %2233 = vmatprep.subr.mxu0 0.0
    %2234 = vmatpush1.xpose.msra.mxu0 0.0
    %2235 = vmatprep.subr.mxu0 0.0
    %2236 = vmatpush1.xpose.msra.mxu0 0.0
    %2237 = vmatprep.subr.mxu0 0.0
    %2238 = vmatpush1.xpose.msra.mxu0 0.0
    %2239 = vmatprep.subr.mxu0 0.0
    %2240 = vmatpush1.xpose.msra.mxu0 0.0
    %2241 = vmatprep.subr.mxu0 0.0
    %2242 = vmatpush1.xpose.msra.mxu0 0.0
    %2243 = vmatprep.subr.mxu0 0.0
    %2244 = vmatpush1.xpose.msra.mxu0 0.0
    %2245 = vmatprep.subr.mxu0 0.0
    %2246 = vmatpush1.xpose.msra.mxu0 0.0
    %2247 = vmatprep.subr.mxu0 0.0
    %2248 = vmatpush1.xpose.msra.mxu0 0.0
    %2249 = vmatprep.subr.mxu0 0.0
    %2250 = vmatpush1.xpose.msra.mxu0 0.0
    %2251 = vmatprep.subr.mxu0 0.0
    %2252 = vmatpush1.xpose.msra.mxu0 0.0
    %2253 = vmatprep.subr.mxu0 0.0
    %2254 = vmatpush1.xpose.msra.mxu0 0.0
    %2255 = vmatprep.subr.mxu0 0.0
    %2256 = vmatpush1.xpose.msra.mxu0 0.0
    %2257 = vmatprep.subr.mxu0 0.0
    %2258 = vmatpush1.xpose.msra.mxu0 0.0
    %2259 = vmatprep.subr.mxu0 0.0
    %2260 = vmatpush1.xpose.msra.mxu0 0.0
    %2261 = vmatprep.subr.mxu0 0.0
    %2262 = vmatpush1.xpose.msra.mxu0 0.0
    %2263 = vmatprep.subr.mxu0 0.0
    %2264 = vmatpush1.xpose.msra.mxu0 0.0
    %2265 = vmatprep.subr.mxu0 0.0
    %2266 = vmatpush1.xpose.msra.mxu0 0.0
    %2267 = vmatprep.subr.mxu0 0.0
    %2268 = vmatpush1.xpose.msra.mxu0 0.0
    %2269 = vmatprep.subr.mxu0 0.0
    %2270 = vmatpush1.xpose.msra.mxu0 0.0
    %2271 = vmatprep.mubr.f32.mxu0 0.0
    %2272 = vmatmul.mubr.f32.gmra.mrb[0].mxu0 %v2203
    %v2273 = vpop.f32.mrb[0].mxu0
    %v2274 = vadd.f32 0.0, %v2273
    %v2275 = vpop.f32.mrb[0].mxu0
    %2276 = vdwg.mxu0
    %v2277 = vmul.f32 %v2274, 0.35355338
    %v2278 = vsel %vm210, %v2277, -inf
    %2279 = vmax.xlane.f32.xlu0 %v2278
    %v2280 = vpop.xlane.xlu0 %2279
    %v2281 = vsub.f32 %v2277, %v2280
    %v2282 = vmul.f32 %v2281, 1.442695
    %v2283 = vpow.pop %v2282
    %v2284 = vsel %vm210, %v2283, 0.0
    %2285 = vadd.xlane.f32.xlu0 %v2284
    %v2286 = vpop.xlane.xlu0 %2285
    %v2287 = vrcp.pop %v2286
    %v2288 = vmul.f32 %v2283, %v2287
    %2289 = vrot.lane.b32.xlu0 %v2026, 56
    %v2290 = vpop.permute.xlu0 %2289
    %v2293 = vsel %vm210, %v2288, 0
    %2295 = vmatprep.subr.mxu0 0.0
    %2296 = vmatpush1.msra.mxu0 %v2290
    %2297 = vmatprep.subr.mxu0 0.0
    %2298 = vmatpush1.msra.mxu0 0.0
    %2299 = vmatprep.subr.mxu0 0.0
    %2300 = vmatpush1.msra.mxu0 0.0
    %2301 = vmatprep.subr.mxu0 0.0
    %2302 = vmatpush1.msra.mxu0 0.0
    %2303 = vmatprep.subr.mxu0 0.0
    %2304 = vmatpush1.msra.mxu0 0.0
    %2305 = vmatprep.subr.mxu0 0.0
    %2306 = vmatpush1.msra.mxu0 0.0
    %2307 = vmatprep.subr.mxu0 0.0
    %2308 = vmatpush1.msra.mxu0 0.0
    %2309 = vmatprep.subr.mxu0 0.0
    %2310 = vmatpush1.msra.mxu0 0.0
    %2311 = vmatprep.subr.mxu0 0.0
    %2312 = vmatpush1.msra.mxu0 0.0
    %2313 = vmatprep.subr.mxu0 0.0
    %2314 = vmatpush1.msra.mxu0 0.0
    %2315 = vmatprep.subr.mxu0 0.0
    %2316 = vmatpush1.msra.mxu0 0.0
    %2317 = vmatprep.subr.mxu0 0.0
    %2318 = vmatpush1.msra.mxu0 0.0
    %2319 = vmatprep.subr.mxu0 0.0
    %2320 = vmatpush1.msra.mxu0 0.0
    %2321 = vmatprep.subr.mxu0 0.0
    %2322 = vmatpush1.msra.mxu0 0.0
    %2323 = vmatprep.subr.mxu0 0.0
    %2324 = vmatpush1.msra.mxu0 0.0
    %2325 = vmatprep.subr.mxu0 0.0
    %2326 = vmatpush1.msra.mxu0 0.0
    %2327 = vmatprep.subr.mxu0 0.0
    %2328 = vmatpush1.msra.mxu0 0.0
    %2329 = vmatprep.subr.mxu0 0.0
    %2330 = vmatpush1.msra.mxu0 0.0
    %2331 = vmatprep.subr.mxu0 0.0
    %2332 = vmatpush1.msra.mxu0 0.0
    %2333 = vmatprep.subr.mxu0 0.0
    %2334 = vmatpush1.msra.mxu0 0.0
    %2335 = vmatprep.subr.mxu0 0.0
    %2336 = vmatpush1.msra.mxu0 0.0
    %2337 = vmatprep.subr.mxu0 0.0
    %2338 = vmatpush1.msra.mxu0 0.0
    %2339 = vmatprep.subr.mxu0 0.0
    %2340 = vmatpush1.msra.mxu0 0.0
    %2341 = vmatprep.subr.mxu0 0.0
    %2342 = vmatpush1.msra.mxu0 0.0
    %2343 = vmatprep.subr.mxu0 0.0
    %2344 = vmatpush1.msra.mxu0 0.0
    %2345 = vmatprep.subr.mxu0 0.0
    %2346 = vmatpush1.msra.mxu0 0.0
    %2347 = vmatprep.subr.mxu0 0.0
    %2348 = vmatpush1.msra.mxu0 0.0
    %2349 = vmatprep.subr.mxu0 0.0
    %2350 = vmatpush1.msra.mxu0 0.0
    %2351 = vmatprep.subr.mxu0 0.0
    %2352 = vmatpush1.msra.mxu0 0.0
    %2353 = vmatprep.subr.mxu0 0.0
    %2354 = vmatpush1.msra.mxu0 0.0
    %2355 = vmatprep.subr.mxu0 0.0
    %2356 = vmatpush1.msra.mxu0 0.0
    %2357 = vmatprep.subr.mxu0 0.0
    %2358 = vmatpush1.msra.mxu0 0.0
    %2359 = vmatprep.mubr.f32.mxu0 0.0
    %2360 = vmatmul.mubr.f32.gmra.mrb[0].mxu0 %v2293
    %v2361 = vpop.f32.mrb[0].mxu0
    %v2362 = vadd.f32 0.0, %v2361
    %v2363 = vpop.f32.mrb[0].mxu0
    %2364 = vdwg.mxu0
    %2365 = vrot.lane.b32.xlu0 %v2026, 112
    %v2366 = vpop.permute.xlu0 %2365
    %2367 = vrot.lane.b32.xlu0 %v2026, 80
    %v2368 = vpop.permute.xlu0 %2367
    %v2369 = vsel %vm210, %v2366, 0
    %v2371 = vsel %vm210, %v2368, 0
    %2373 = vmatprep.subr.mxu0 0.0
    %2374 = vmatpush1.xpose.msra.mxu0 %v2371
    %2375 = vmatprep.subr.mxu0 0.0
    %2376 = vmatpush1.xpose.msra.mxu0 0.0
    %2377 = vmatprep.subr.mxu0 0.0
    %2378 = vmatpush1.xpose.msra.mxu0 0.0
    %2379 = vmatprep.subr.mxu0 0.0
    %2380 = vmatpush1.xpose.msra.mxu0 0.0
    %2381 = vmatprep.subr.mxu0 0.0
    %2382 = vmatpush1.xpose.msra.mxu0 0.0
    %2383 = vmatprep.subr.mxu0 0.0
    %2384 = vmatpush1.xpose.msra.mxu0 0.0
    %2385 = vmatprep.subr.mxu0 0.0
    %2386 = vmatpush1.xpose.msra.mxu0 0.0
    %2387 = vmatprep.subr.mxu0 0.0
    %2388 = vmatpush1.xpose.msra.mxu0 0.0
    %2389 = vmatprep.subr.mxu0 0.0
    %2390 = vmatpush1.xpose.msra.mxu0 0.0
    %2391 = vmatprep.subr.mxu0 0.0
    %2392 = vmatpush1.xpose.msra.mxu0 0.0
    %2393 = vmatprep.subr.mxu0 0.0
    %2394 = vmatpush1.xpose.msra.mxu0 0.0
    %2395 = vmatprep.subr.mxu0 0.0
    %2396 = vmatpush1.xpose.msra.mxu0 0.0
    %2397 = vmatprep.subr.mxu0 0.0
    %2398 = vmatpush1.xpose.msra.mxu0 0.0
    %2399 = vmatprep.subr.mxu0 0.0
    %2400 = vmatpush1.xpose.msra.mxu0 0.0
    %2401 = vmatprep.subr.mxu0 0.0
    %2402 = vmatpush1.xpose.msra.mxu0 0.0
    %2403 = vmatprep.subr.mxu0 0.0
    %2404 = vmatpush1.xpose.msra.mxu0 0.0
    %2405 = vmatprep.subr.mxu0 0.0
    %2406 = vmatpush1.xpose.msra.mxu0 0.0
    %2407 = vmatprep.subr.mxu0 0.0
    %2408 = vmatpush1.xpose.msra.mxu0 0.0
    %2409 = vmatprep.subr.mxu0 0.0
    %2410 = vmatpush1.xpose.msra.mxu0 0.0
    %2411 = vmatprep.subr.mxu0 0.0
    %2412 = vmatpush1.xpose.msra.mxu0 0.0
    %2413 = vmatprep.subr.mxu0 0.0
    %2414 = vmatpush1.xpose.msra.mxu0 0.0
    %2415 = vmatprep.subr.mxu0 0.0
    %2416 = vmatpush1.xpose.msra.mxu0 0.0
    %2417 = vmatprep.subr.mxu0 0.0
    %2418 = vmatpush1.xpose.msra.mxu0 0.0
    %2419 = vmatprep.subr.mxu0 0.0
    %2420 = vmatpush1.xpose.msra.mxu0 0.0
    %2421 = vmatprep.subr.mxu0 0.0
    %2422 = vmatpush1.xpose.msra.mxu0 0.0
    %2423 = vmatprep.subr.mxu0 0.0
    %2424 = vmatpush1.xpose.msra.mxu0 0.0
    %2425 = vmatprep.subr.mxu0 0.0
    %2426 = vmatpush1.xpose.msra.mxu0 0.0
    %2427 = vmatprep.subr.mxu0 0.0
    %2428 = vmatpush1.xpose.msra.mxu0 0.0
    %2429 = vmatprep.subr.mxu0 0.0
    %2430 = vmatpush1.xpose.msra.mxu0 0.0
    %2431 = vmatprep.subr.mxu0 0.0
    %2432 = vmatpush1.xpose.msra.mxu0 0.0
    %2433 = vmatprep.subr.mxu0 0.0
    %2434 = vmatpush1.xpose.msra.mxu0 0.0
    %2435 = vmatprep.subr.mxu0 0.0
    %2436 = vmatpush1.xpose.msra.mxu0 0.0
    %2437 = vmatprep.mubr.f32.mxu0 0.0
    %2438 = vmatmul.mubr.f32.gmra.mrb[0].mxu0 %v2369
    %v2439 = vpop.f32.mrb[0].mxu0
    %v2440 = vadd.f32 0.0, %v2439
    %v2441 = vpop.f32.mrb[0].mxu0
    %2442 = vdwg.mxu0
    %v2443 = vmul.f32 %v2440, 0.35355338
    %v2444 = vsel %vm210, %v2443, -inf
    %2445 = vmax.xlane.f32.xlu0 %v2444
    %v2446 = vpop.xlane.xlu0 %2445
    %v2447 = vsub.f32 %v2443, %v2446
    %v2448 = vmul.f32 %v2447, 1.442695
    %v2449 = vpow.pop %v2448
    %v2450 = vsel %vm210, %v2449, 0.0
    %2451 = vadd.xlane.f32.xlu0 %v2450
    %v2452 = vpop.xlane.xlu0 %2451
    %v2453 = vrcp.pop %v2452
    %v2454 = vmul.f32 %v2449, %v2453
    %2455 = vrot.lane.b32.xlu0 %v2026, 48
    %v2456 = vpop.permute.xlu0 %2455
    %v2459 = vsel %vm210, %v2454, 0
    %2461 = vmatprep.subr.mxu0 0.0
    %2462 = vmatpush1.msra.mxu0 %v2456
    %2463 = vmatprep.subr.mxu0 0.0
    %2464 = vmatpush1.msra.mxu0 0.0
    %2465 = vmatprep.subr.mxu0 0.0
    %2466 = vmatpush1.msra.mxu0 0.0
    %2467 = vmatprep.subr.mxu0 0.0
    %2468 = vmatpush1.msra.mxu0 0.0
    %2469 = vmatprep.subr.mxu0 0.0
    %2470 = vmatpush1.msra.mxu0 0.0
    %2471 = vmatprep.subr.mxu0 0.0
    %2472 = vmatpush1.msra.mxu0 0.0
    %2473 = vmatprep.subr.mxu0 0.0
    %2474 = vmatpush1.msra.mxu0 0.0
    %2475 = vmatprep.subr.mxu0 0.0
    %2476 = vmatpush1.msra.mxu0 0.0
    %2477 = vmatprep.subr.mxu0 0.0
    %2478 = vmatpush1.msra.mxu0 0.0
    %2479 = vmatprep.subr.mxu0 0.0
    %2480 = vmatpush1.msra.mxu0 0.0
    %2481 = vmatprep.subr.mxu0 0.0
    %2482 = vmatpush1.msra.mxu0 0.0
    %2483 = vmatprep.subr.mxu0 0.0
    %2484 = vmatpush1.msra.mxu0 0.0
    %2485 = vmatprep.subr.mxu0 0.0
    %2486 = vmatpush1.msra.mxu0 0.0
    %2487 = vmatprep.subr.mxu0 0.0
    %2488 = vmatpush1.msra.mxu0 0.0
    %2489 = vmatprep.subr.mxu0 0.0
    %2490 = vmatpush1.msra.mxu0 0.0
    %2491 = vmatprep.subr.mxu0 0.0
    %2492 = vmatpush1.msra.mxu0 0.0
    %2493 = vmatprep.subr.mxu0 0.0
    %2494 = vmatpush1.msra.mxu0 0.0
    %2495 = vmatprep.subr.mxu0 0.0
    %2496 = vmatpush1.msra.mxu0 0.0
    %2497 = vmatprep.subr.mxu0 0.0
    %2498 = vmatpush1.msra.mxu0 0.0
    %2499 = vmatprep.subr.mxu0 0.0
    %2500 = vmatpush1.msra.mxu0 0.0
    %2501 = vmatprep.subr.mxu0 0.0
    %2502 = vmatpush1.msra.mxu0 0.0
    %2503 = vmatprep.subr.mxu0 0.0
    %2504 = vmatpush1.msra.mxu0 0.0
    %2505 = vmatprep.subr.mxu0 0.0
    %2506 = vmatpush1.msra.mxu0 0.0
    %2507 = vmatprep.subr.mxu0 0.0
    %2508 = vmatpush1.msra.mxu0 0.0
    %2509 = vmatprep.subr.mxu0 0.0
    %2510 = vmatpush1.msra.mxu0 0.0
    %2511 = vmatprep.subr.mxu0 0.0
    %2512 = vmatpush1.msra.mxu0 0.0
    %2513 = vmatprep.subr.mxu0 0.0
    %2514 = vmatpush1.msra.mxu0 0.0
    %2515 = vmatprep.subr.mxu0 0.0
    %2516 = vmatpush1.msra.mxu0 0.0
    %2517 = vmatprep.subr.mxu0 0.0
    %2518 = vmatpush1.msra.mxu0 0.0
    %2519 = vmatprep.subr.mxu0 0.0
    %2520 = vmatpush1.msra.mxu0 0.0
    %2521 = vmatprep.subr.mxu0 0.0
    %2522 = vmatpush1.msra.mxu0 0.0
    %2523 = vmatprep.subr.mxu0 0.0
    %2524 = vmatpush1.msra.mxu0 0.0
    %2525 = vmatprep.mubr.f32.mxu0 0.0
    %2526 = vmatmul.mubr.f32.gmra.mrb[0].mxu0 %v2459
    %v2527 = vpop.f32.mrb[0].mxu0
    %v2528 = vadd.f32 0.0, %v2527
    %v2529 = vpop.f32.mrb[0].mxu0
    %2530 = vdwg.mxu0
    %2531 = vrot.lane.b32.xlu0 %v2026, 104
    %v2532 = vpop.permute.xlu0 %2531
    %2533 = vrot.lane.b32.xlu0 %v2026, 72
    %v2534 = vpop.permute.xlu0 %2533
    %v2535 = vsel %vm210, %v2532, 0
    %v2537 = vsel %vm210, %v2534, 0
    %2539 = vmatprep.subr.mxu0 0.0
    %2540 = vmatpush1.xpose.msra.mxu0 %v2537
    %2541 = vmatprep.subr.mxu0 0.0
    %2542 = vmatpush1.xpose.msra.mxu0 0.0
    %2543 = vmatprep.subr.mxu0 0.0
    %2544 = vmatpush1.xpose.msra.mxu0 0.0
    %2545 = vmatprep.subr.mxu0 0.0
    %2546 = vmatpush1.xpose.msra.mxu0 0.0
    %2547 = vmatprep.subr.mxu0 0.0
    %2548 = vmatpush1.xpose.msra.mxu0 0.0
    %2549 = vmatprep.subr.mxu0 0.0
    %2550 = vmatpush1.xpose.msra.mxu0 0.0
    %2551 = vmatprep.subr.mxu0 0.0
    %2552 = vmatpush1.xpose.msra.mxu0 0.0
    %2553 = vmatprep.subr.mxu0 0.0
    %2554 = vmatpush1.xpose.msra.mxu0 0.0
    %2555 = vmatprep.subr.mxu0 0.0
    %2556 = vmatpush1.xpose.msra.mxu0 0.0
    %2557 = vmatprep.subr.mxu0 0.0
    %2558 = vmatpush1.xpose.msra.mxu0 0.0
    %2559 = vmatprep.subr.mxu0 0.0
    %2560 = vmatpush1.xpose.msra.mxu0 0.0
    %2561 = vmatprep.subr.mxu0 0.0
    %2562 = vmatpush1.xpose.msra.mxu0 0.0
    %2563 = vmatprep.subr.mxu0 0.0
    %2564 = vmatpush1.xpose.msra.mxu0 0.0
    %2565 = vmatprep.subr.mxu0 0.0
    %2566 = vmatpush1.xpose.msra.mxu0 0.0
    %2567 = vmatprep.subr.mxu0 0.0
    %2568 = vmatpush1.xpose.msra.mxu0 0.0
    %2569 = vmatprep.subr.mxu0 0.0
    %2570 = vmatpush1.xpose.msra.mxu0 0.0
    %2571 = vmatprep.subr.mxu0 0.0
    %2572 = vmatpush1.xpose.msra.mxu0 0.0
    %2573 = vmatprep.subr.mxu0 0.0
    %2574 = vmatpush1.xpose.msra.mxu0 0.0
    %2575 = vmatprep.subr.mxu0 0.0
    %2576 = vmatpush1.xpose.msra.mxu0 0.0
    %2577 = vmatprep.subr.mxu0 0.0
    %2578 = vmatpush1.xpose.msra.mxu0 0.0
    %2579 = vmatprep.subr.mxu0 0.0
    %2580 = vmatpush1.xpose.msra.mxu0 0.0
    %2581 = vmatprep.subr.mxu0 0.0
    %2582 = vmatpush1.xpose.msra.mxu0 0.0
    %2583 = vmatprep.subr.mxu0 0.0
    %2584 = vmatpush1.xpose.msra.mxu0 0.0
    %2585 = vmatprep.subr.mxu0 0.0
    %2586 = vmatpush1.xpose.msra.mxu0 0.0
    %2587 = vmatprep.subr.mxu0 0.0
    %2588 = vmatpush1.xpose.msra.mxu0 0.0
    %2589 = vmatprep.subr.mxu0 0.0
    %2590 = vmatpush1.xpose.msra.mxu0 0.0
    %2591 = vmatprep.subr.mxu0 0.0
    %2592 = vmatpush1.xpose.msra.mxu0 0.0
    %2593 = vmatprep.subr.mxu0 0.0
    %2594 = vmatpush1.xpose.msra.mxu0 0.0
    %2595 = vmatprep.subr.mxu0 0.0
    %2596 = vmatpush1.xpose.msra.mxu0 0.0
    %2597 = vmatprep.subr.mxu0 0.0
    %2598 = vmatpush1.xpose.msra.mxu0 0.0
    %2599 = vmatprep.subr.mxu0 0.0
    %2600 = vmatpush1.xpose.msra.mxu0 0.0
    %2601 = vmatprep.subr.mxu0 0.0
    %2602 = vmatpush1.xpose.msra.mxu0 0.0
    %2603 = vmatprep.mubr.f32.mxu0 0.0
    %2604 = vmatmul.mubr.f32.gmra.mrb[0].mxu0 %v2535
    %v2605 = vpop.f32.mrb[0].mxu0
    %v2606 = vadd.f32 0.0, %v2605
    %v2607 = vpop.f32.mrb[0].mxu0
    %2608 = vdwg.mxu0
    %v2609 = vmul.f32 %v2606, 0.35355338
    %v2610 = vsel %vm210, %v2609, -inf
    %2611 = vmax.xlane.f32.xlu0 %v2610
    %v2612 = vpop.xlane.xlu0 %2611
    %v2613 = vsub.f32 %v2609, %v2612
    %v2614 = vmul.f32 %v2613, 1.442695
    %v2615 = vpow.pop %v2614
    %v2616 = vsel %vm210, %v2615, 0.0
    %2617 = vadd.xlane.f32.xlu0 %v2616
    %v2618 = vpop.xlane.xlu0 %2617
    %v2619 = vrcp.pop %v2618
    %v2620 = vmul.f32 %v2615, %v2619
    %2621 = vrot.lane.b32.xlu0 %v2026, 40
    %v2622 = vpop.permute.xlu0 %2621
    %v2625 = vsel %vm210, %v2620, 0
    %2627 = vmatprep.subr.mxu0 0.0
    %2628 = vmatpush1.msra.mxu0 %v2622
    %2629 = vmatprep.subr.mxu0 0.0
    %2630 = vmatpush1.msra.mxu0 0.0
    %2631 = vmatprep.subr.mxu0 0.0
    %2632 = vmatpush1.msra.mxu0 0.0
    %2633 = vmatprep.subr.mxu0 0.0
    %2634 = vmatpush1.msra.mxu0 0.0
    %2635 = vmatprep.subr.mxu0 0.0
    %2636 = vmatpush1.msra.mxu0 0.0
    %2637 = vmatprep.subr.mxu0 0.0
    %2638 = vmatpush1.msra.mxu0 0.0
    %2639 = vmatprep.subr.mxu0 0.0
    %2640 = vmatpush1.msra.mxu0 0.0
    %2641 = vmatprep.subr.mxu0 0.0
    %2642 = vmatpush1.msra.mxu0 0.0
    %2643 = vmatprep.subr.mxu0 0.0
    %2644 = vmatpush1.msra.mxu0 0.0
    %2645 = vmatprep.subr.mxu0 0.0
    %2646 = vmatpush1.msra.mxu0 0.0
    %2647 = vmatprep.subr.mxu0 0.0
    %2648 = vmatpush1.msra.mxu0 0.0
    %2649 = vmatprep.subr.mxu0 0.0
    %2650 = vmatpush1.msra.mxu0 0.0
    %2651 = vmatprep.subr.mxu0 0.0
    %2652 = vmatpush1.msra.mxu0 0.0
    %2653 = vmatprep.subr.mxu0 0.0
    %2654 = vmatpush1.msra.mxu0 0.0
    %2655 = vmatprep.subr.mxu0 0.0
    %2656 = vmatpush1.msra.mxu0 0.0
    %2657 = vmatprep.subr.mxu0 0.0
    %2658 = vmatpush1.msra.mxu0 0.0
    %2659 = vmatprep.subr.mxu0 0.0
    %2660 = vmatpush1.msra.mxu0 0.0
    %2661 = vmatprep.subr.mxu0 0.0
    %2662 = vmatpush1.msra.mxu0 0.0
    %2663 = vmatprep.subr.mxu0 0.0
    %2664 = vmatpush1.msra.mxu0 0.0
    %2665 = vmatprep.subr.mxu0 0.0
    %2666 = vmatpush1.msra.mxu0 0.0
    %2667 = vmatprep.subr.mxu0 0.0
    %2668 = vmatpush1.msra.mxu0 0.0
    %2669 = vmatprep.subr.mxu0 0.0
    %2670 = vmatpush1.msra.mxu0 0.0
    %2671 = vmatprep.subr.mxu0 0.0
    %2672 = vmatpush1.msra.mxu0 0.0
    %2673 = vmatprep.subr.mxu0 0.0
    %2674 = vmatpush1.msra.mxu0 0.0
    %2675 = vmatprep.subr.mxu0 0.0
    %2676 = vmatpush1.msra.mxu0 0.0
    %2677 = vmatprep.subr.mxu0 0.0
    %2678 = vmatpush1.msra.mxu0 0.0
    %2679 = vmatprep.subr.mxu0 0.0
    %2680 = vmatpush1.msra.mxu0 0.0
    %2681 = vmatprep.subr.mxu0 0.0
    %2682 = vmatpush1.msra.mxu0 0.0
    %2683 = vmatprep.subr.mxu0 0.0
    %2684 = vmatpush1.msra.mxu0 0.0
    %2685 = vmatprep.subr.mxu0 0.0
    %2686 = vmatpush1.msra.mxu0 0.0
    %2687 = vmatprep.subr.mxu0 0.0
    %2688 = vmatpush1.msra.mxu0 0.0
    %2689 = vmatprep.subr.mxu0 0.0
    %2690 = vmatpush1.msra.mxu0 0.0
    %2691 = vmatprep.mubr.f32.mxu0 0.0
    %2692 = vmatmul.mubr.f32.gmra.mrb[0].mxu0 %v2625
    %v2693 = vpop.f32.mrb[0].mxu0
    %v2694 = vadd.f32 0.0, %v2693
    %v2695 = vpop.f32.mrb[0].mxu0
    %2696 = vdwg.mxu0
    %2698 = vrot.lane.b32.xlu0 %v2362, 8
    %v2699 = vpop.permute.xlu0 %2698
    %2702 = vrot.lane.b32.xlu0 %v2528, 16
    %v2703 = vpop.permute.xlu0 %2702
    %2706 = vrot.lane.b32.xlu0 %v2694, 24
    %v2707 = vpop.permute.xlu0 %2706
    %v2709 = vsel %vm210, %v2196, %v2699
    %v2710 = vsel %vm884, %v2709, %v2703
    %v2711 = vsel %vm886, %v2710, %v2707
    %2713 = vrot.lane.b32.xlu0 %v2031, 96
    %v2714 = vpop.permute.xlu0 %2713
    %v2715 = vsel %vm210, %v2031, 0
    %v2717 = vsel %vm210, %v2714, 0
    %2719 = vmatprep.subr.mxu0 0.0
    %2720 = vmatpush1.xpose.msra.mxu0 %v2717
    %2721 = vmatprep.subr.mxu0 0.0
    %2722 = vmatpush1.xpose.msra.mxu0 0.0
    %2723 = vmatprep.subr.mxu0 0.0
    %2724 = vmatpush1.xpose.msra.mxu0 0.0
    %2725 = vmatprep.subr.mxu0 0.0
    %2726 = vmatpush1.xpose.msra.mxu0 0.0
    %2727 = vmatprep.subr.mxu0 0.0
    %2728 = vmatpush1.xpose.msra.mxu0 0.0
    %2729 = vmatprep.subr.mxu0 0.0
    %2730 = vmatpush1.xpose.msra.mxu0 0.0
    %2731 = vmatprep.subr.mxu0 0.0
    %2732 = vmatpush1.xpose.msra.mxu0 0.0
    %2733 = vmatprep.subr.mxu0 0.0
    %2734 = vmatpush1.xpose.msra.mxu0 0.0
    %2735 = vmatprep.subr.mxu0 0.0
    %2736 = vmatpush1.xpose.msra.mxu0 0.0
    %2737 = vmatprep.subr.mxu0 0.0
    %2738 = vmatpush1.xpose.msra.mxu0 0.0
    %2739 = vmatprep.subr.mxu0 0.0
    %2740 = vmatpush1.xpose.msra.mxu0 0.0
    %2741 = vmatprep.subr.mxu0 0.0
    %2742 = vmatpush1.xpose.msra.mxu0 0.0
    %2743 = vmatprep.subr.mxu0 0.0
    %2744 = vmatpush1.xpose.msra.mxu0 0.0
    %2745 = vmatprep.subr.mxu0 0.0
    %2746 = vmatpush1.xpose.msra.mxu0 0.0
    %2747 = vmatprep.subr.mxu0 0.0
    %2748 = vmatpush1.xpose.msra.mxu0 0.0
    %2749 = vmatprep.subr.mxu0 0.0
    %2750 = vmatpush1.xpose.msra.mxu0 0.0
    %2751 = vmatprep.subr.mxu0 0.0
    %2752 = vmatpush1.xpose.msra.mxu0 0.0
    %2753 = vmatprep.subr.mxu0 0.0
    %2754 = vmatpush1.xpose.msra.mxu0 0.0
    %2755 = vmatprep.subr.mxu0 0.0
    %2756 = vmatpush1.xpose.msra.mxu0 0.0
    %2757 = vmatprep.subr.mxu0 0.0
    %2758 = vmatpush1.xpose.msra.mxu0 0.0
    %2759 = vmatprep.subr.mxu0 0.0
    %2760 = vmatpush1.xpose.msra.mxu0 0.0
    %2761 = vmatprep.subr.mxu0 0.0
    %2762 = vmatpush1.xpose.msra.mxu0 0.0
    %2763 = vmatprep.subr.mxu0 0.0
    %2764 = vmatpush1.xpose.msra.mxu0 0.0
    %2765 = vmatprep.subr.mxu0 0.0
    %2766 = vmatpush1.xpose.msra.mxu0 0.0
    %2767 = vmatprep.subr.mxu0 0.0
    %2768 = vmatpush1.xpose.msra.mxu0 0.0
    %2769 = vmatprep.subr.mxu0 0.0
    %2770 = vmatpush1.xpose.msra.mxu0 0.0
    %2771 = vmatprep.subr.mxu0 0.0
    %2772 = vmatpush1.xpose.msra.mxu0 0.0
    %2773 = vmatprep.subr.mxu0 0.0
    %2774 = vmatpush1.xpose.msra.mxu0 0.0
    %2775 = vmatprep.subr.mxu0 0.0
    %2776 = vmatpush1.xpose.msra.mxu0 0.0
    %2777 = vmatprep.subr.mxu0 0.0
    %2778 = vmatpush1.xpose.msra.mxu0 0.0
    %2779 = vmatprep.subr.mxu0 0.0
    %2780 = vmatpush1.xpose.msra.mxu0 0.0
    %2781 = vmatprep.subr.mxu0 0.0
    %2782 = vmatpush1.xpose.msra.mxu0 0.0
    %2783 = vmatprep.mubr.f32.mxu0 0.0
    %2784 = vmatmul.mubr.f32.gmra.mrb[0].mxu0 %v2715
    %v2785 = vpop.f32.mrb[0].mxu0
    %v2786 = vadd.f32 0.0, %v2785
    %v2787 = vpop.f32.mrb[0].mxu0
    %2788 = vdwg.mxu0
    %v2789 = vmul.f32 %v2786, 0.35355338
    %v2790 = vsel %vm210, %v2789, -inf
    %2791 = vmax.xlane.f32.xlu0 %v2790
    %v2792 = vpop.xlane.xlu0 %2791
    %v2793 = vsub.f32 %v2789, %v2792
    %v2794 = vmul.f32 %v2793, 1.442695
    %v2795 = vpow.pop %v2794
    %v2796 = vsel %vm210, %v2795, 0.0
    %2797 = vadd.xlane.f32.xlu0 %v2796
    %v2798 = vpop.xlane.xlu0 %2797
    %v2799 = vrcp.pop %v2798
    %v2800 = vmul.f32 %v2795, %v2799
    %2801 = vrot.lane.b32.xlu0 %v2031, 64
    %v2802 = vpop.permute.xlu0 %2801
    %v2805 = vsel %vm210, %v2800, 0
    %2807 = vmatprep.subr.mxu0 0.0
    %2808 = vmatpush1.msra.mxu0 %v2802
    %2809 = vmatprep.subr.mxu0 0.0
    %2810 = vmatpush1.msra.mxu0 0.0
    %2811 = vmatprep.subr.mxu0 0.0
    %2812 = vmatpush1.msra.mxu0 0.0
    %2813 = vmatprep.subr.mxu0 0.0
    %2814 = vmatpush1.msra.mxu0 0.0
    %2815 = vmatprep.subr.mxu0 0.0
    %2816 = vmatpush1.msra.mxu0 0.0
    %2817 = vmatprep.subr.mxu0 0.0
    %2818 = vmatpush1.msra.mxu0 0.0
    %2819 = vmatprep.subr.mxu0 0.0
    %2820 = vmatpush1.msra.mxu0 0.0
    %2821 = vmatprep.subr.mxu0 0.0
    %2822 = vmatpush1.msra.mxu0 0.0
    %2823 = vmatprep.subr.mxu0 0.0
    %2824 = vmatpush1.msra.mxu0 0.0
    %2825 = vmatprep.subr.mxu0 0.0
    %2826 = vmatpush1.msra.mxu0 0.0
    %2827 = vmatprep.subr.mxu0 0.0
    %2828 = vmatpush1.msra.mxu0 0.0
    %2829 = vmatprep.subr.mxu0 0.0
    %2830 = vmatpush1.msra.mxu0 0.0
    %2831 = vmatprep.subr.mxu0 0.0
    %2832 = vmatpush1.msra.mxu0 0.0
    %2833 = vmatprep.subr.mxu0 0.0
    %2834 = vmatpush1.msra.mxu0 0.0
    %2835 = vmatprep.subr.mxu0 0.0
    %2836 = vmatpush1.msra.mxu0 0.0
    %2837 = vmatprep.subr.mxu0 0.0
    %2838 = vmatpush1.msra.mxu0 0.0
    %2839 = vmatprep.subr.mxu0 0.0
    %2840 = vmatpush1.msra.mxu0 0.0
    %2841 = vmatprep.subr.mxu0 0.0
    %2842 = vmatpush1.msra.mxu0 0.0
    %2843 = vmatprep.subr.mxu0 0.0
    %2844 = vmatpush1.msra.mxu0 0.0
    %2845 = vmatprep.subr.mxu0 0.0
    %2846 = vmatpush1.msra.mxu0 0.0
    %2847 = vmatprep.subr.mxu0 0.0
    %2848 = vmatpush1.msra.mxu0 0.0
    %2849 = vmatprep.subr.mxu0 0.0
    %2850 = vmatpush1.msra.mxu0 0.0
    %2851 = vmatprep.subr.mxu0 0.0
    %2852 = vmatpush1.msra.mxu0 0.0
    %2853 = vmatprep.subr.mxu0 0.0
    %2854 = vmatpush1.msra.mxu0 0.0
    %2855 = vmatprep.subr.mxu0 0.0
    %2856 = vmatpush1.msra.mxu0 0.0
    %2857 = vmatprep.subr.mxu0 0.0
    %2858 = vmatpush1.msra.mxu0 0.0
    %2859 = vmatprep.subr.mxu0 0.0
    %2860 = vmatpush1.msra.mxu0 0.0
    %2861 = vmatprep.subr.mxu0 0.0
    %2862 = vmatpush1.msra.mxu0 0.0
    %2863 = vmatprep.subr.mxu0 0.0
    %2864 = vmatpush1.msra.mxu0 0.0
    %2865 = vmatprep.subr.mxu0 0.0
    %2866 = vmatpush1.msra.mxu0 0.0
    %2867 = vmatprep.subr.mxu0 0.0
    %2868 = vmatpush1.msra.mxu0 0.0
    %2869 = vmatprep.subr.mxu0 0.0
    %2870 = vmatpush1.msra.mxu0 0.0
    %2871 = vmatprep.mubr.f32.mxu0 0.0
    %2872 = vmatmul.mubr.f32.gmra.mrb[0].mxu0 %v2805
    %v2873 = vpop.f32.mrb[0].mxu0
    %v2874 = vadd.f32 0.0, %v2873
    %v2875 = vpop.f32.mrb[0].mxu0
    %2876 = vdwg.mxu0
    %2877 = vrot.lane.b32.xlu0 %v2031, 120
    %v2878 = vpop.permute.xlu0 %2877
    %2879 = vrot.lane.b32.xlu0 %v2031, 88
    %v2880 = vpop.permute.xlu0 %2879
    %v2881 = vsel %vm210, %v2878, 0
    %v2883 = vsel %vm210, %v2880, 0
    %2885 = vmatprep.subr.mxu0 0.0
    %2886 = vmatpush1.xpose.msra.mxu0 %v2883
    %2887 = vmatprep.subr.mxu0 0.0
    %2888 = vmatpush1.xpose.msra.mxu0 0.0
    %2889 = vmatprep.subr.mxu0 0.0
    %2890 = vmatpush1.xpose.msra.mxu0 0.0
    %2891 = vmatprep.subr.mxu0 0.0
    %2892 = vmatpush1.xpose.msra.mxu0 0.0
    %2893 = vmatprep.subr.mxu0 0.0
    %2894 = vmatpush1.xpose.msra.mxu0 0.0
    %2895 = vmatprep.subr.mxu0 0.0
    %2896 = vmatpush1.xpose.msra.mxu0 0.0
    %2897 = vmatprep.subr.mxu0 0.0
    %2898 = vmatpush1.xpose.msra.mxu0 0.0
    %2899 = vmatprep.subr.mxu0 0.0
    %2900 = vmatpush1.xpose.msra.mxu0 0.0
    %2901 = vmatprep.subr.mxu0 0.0
    %2902 = vmatpush1.xpose.msra.mxu0 0.0
    %2903 = vmatprep.subr.mxu0 0.0
    %2904 = vmatpush1.xpose.msra.mxu0 0.0
    %2905 = vmatprep.subr.mxu0 0.0
    %2906 = vmatpush1.xpose.msra.mxu0 0.0
    %2907 = vmatprep.subr.mxu0 0.0
    %2908 = vmatpush1.xpose.msra.mxu0 0.0
    %2909 = vmatprep.subr.mxu0 0.0
    %2910 = vmatpush1.xpose.msra.mxu0 0.0
    %2911 = vmatprep.subr.mxu0 0.0
    %2912 = vmatpush1.xpose.msra.mxu0 0.0
    %2913 = vmatprep.subr.mxu0 0.0
    %2914 = vmatpush1.xpose.msra.mxu0 0.0
    %2915 = vmatprep.subr.mxu0 0.0
    %2916 = vmatpush1.xpose.msra.mxu0 0.0
    %2917 = vmatprep.subr.mxu0 0.0
    %2918 = vmatpush1.xpose.msra.mxu0 0.0
    %2919 = vmatprep.subr.mxu0 0.0
    %2920 = vmatpush1.xpose.msra.mxu0 0.0
    %2921 = vmatprep.subr.mxu0 0.0
    %2922 = vmatpush1.xpose.msra.mxu0 0.0
    %2923 = vmatprep.subr.mxu0 0.0
    %2924 = vmatpush1.xpose.msra.mxu0 0.0
    %2925 = vmatprep.subr.mxu0 0.0
    %2926 = vmatpush1.xpose.msra.mxu0 0.0
    %2927 = vmatprep.subr.mxu0 0.0
    %2928 = vmatpush1.xpose.msra.mxu0 0.0
    %2929 = vmatprep.subr.mxu0 0.0
    %2930 = vmatpush1.xpose.msra.mxu0 0.0
    %2931 = vmatprep.subr.mxu0 0.0
    %2932 = vmatpush1.xpose.msra.mxu0 0.0
    %2933 = vmatprep.subr.mxu0 0.0
    %2934 = vmatpush1.xpose.msra.mxu0 0.0
    %2935 = vmatprep.subr.mxu0 0.0
    %2936 = vmatpush1.xpose.msra.mxu0 0.0
    %2937 = vmatprep.subr.mxu0 0.0
    %2938 = vmatpush1.xpose.msra.mxu0 0.0
    %2939 = vmatprep.subr.mxu0 0.0
    %2940 = vmatpush1.xpose.msra.mxu0 0.0
    %2941 = vmatprep.subr.mxu0 0.0
    %2942 = vmatpush1.xpose.msra.mxu0 0.0
    %2943 = vmatprep.subr.mxu0 0.0
    %2944 = vmatpush1.xpose.msra.mxu0 0.0
    %2945 = vmatprep.subr.mxu0 0.0
    %2946 = vmatpush1.xpose.msra.mxu0 0.0
    %2947 = vmatprep.subr.mxu0 0.0
    %2948 = vmatpush1.xpose.msra.mxu0 0.0
    %2949 = vmatprep.mubr.f32.mxu0 0.0
    %2950 = vmatmul.mubr.f32.gmra.mrb[0].mxu0 %v2881
    %v2951 = vpop.f32.mrb[0].mxu0
    %v2952 = vadd.f32 0.0, %v2951
    %v2953 = vpop.f32.mrb[0].mxu0
    %2954 = vdwg.mxu0
    %v2955 = vmul.f32 %v2952, 0.35355338
    %v2956 = vsel %vm210, %v2955, -inf
    %2957 = vmax.xlane.f32.xlu0 %v2956
    %v2958 = vpop.xlane.xlu0 %2957
    %v2959 = vsub.f32 %v2955, %v2958
    %v2960 = vmul.f32 %v2959, 1.442695
    %v2961 = vpow.pop %v2960
    %v2962 = vsel %vm210, %v2961, 0.0
    %2963 = vadd.xlane.f32.xlu0 %v2962
    %v2964 = vpop.xlane.xlu0 %2963
    %v2965 = vrcp.pop %v2964
    %v2966 = vmul.f32 %v2961, %v2965
    %2967 = vrot.lane.b32.xlu0 %v2031, 56
    %v2968 = vpop.permute.xlu0 %2967
    %v2971 = vsel %vm210, %v2966, 0
    %2973 = vmatprep.subr.mxu0 0.0
    %2974 = vmatpush1.msra.mxu0 %v2968
    %2975 = vmatprep.subr.mxu0 0.0
    %2976 = vmatpush1.msra.mxu0 0.0
    %2977 = vmatprep.subr.mxu0 0.0
    %2978 = vmatpush1.msra.mxu0 0.0
    %2979 = vmatprep.subr.mxu0 0.0
    %2980 = vmatpush1.msra.mxu0 0.0
    %2981 = vmatprep.subr.mxu0 0.0
    %2982 = vmatpush1.msra.mxu0 0.0
    %2983 = vmatprep.subr.mxu0 0.0
    %2984 = vmatpush1.msra.mxu0 0.0
    %2985 = vmatprep.subr.mxu0 0.0
    %2986 = vmatpush1.msra.mxu0 0.0
    %2987 = vmatprep.subr.mxu0 0.0
    %2988 = vmatpush1.msra.mxu0 0.0
    %2989 = vmatprep.subr.mxu0 0.0
    %2990 = vmatpush1.msra.mxu0 0.0
    %2991 = vmatprep.subr.mxu0 0.0
    %2992 = vmatpush1.msra.mxu0 0.0
    %2993 = vmatprep.subr.mxu0 0.0
    %2994 = vmatpush1.msra.mxu0 0.0
    %2995 = vmatprep.subr.mxu0 0.0
    %2996 = vmatpush1.msra.mxu0 0.0
    %2997 = vmatprep.subr.mxu0 0.0
    %2998 = vmatpush1.msra.mxu0 0.0
    %2999 = vmatprep.subr.mxu0 0.0
    %3000 = vmatpush1.msra.mxu0 0.0
    %3001 = vmatprep.subr.mxu0 0.0
    %3002 = vmatpush1.msra.mxu0 0.0
    %3003 = vmatprep.subr.mxu0 0.0
    %3004 = vmatpush1.msra.mxu0 0.0
    %3005 = vmatprep.subr.mxu0 0.0
    %3006 = vmatpush1.msra.mxu0 0.0
    %3007 = vmatprep.subr.mxu0 0.0
    %3008 = vmatpush1.msra.mxu0 0.0
    %3009 = vmatprep.subr.mxu0 0.0
    %3010 = vmatpush1.msra.mxu0 0.0
    %3011 = vmatprep.subr.mxu0 0.0
    %3012 = vmatpush1.msra.mxu0 0.0
    %3013 = vmatprep.subr.mxu0 0.0
    %3014 = vmatpush1.msra.mxu0 0.0
    %3015 = vmatprep.subr.mxu0 0.0
    %3016 = vmatpush1.msra.mxu0 0.0
    %3017 = vmatprep.subr.mxu0 0.0
    %3018 = vmatpush1.msra.mxu0 0.0
    %3019 = vmatprep.subr.mxu0 0.0
    %3020 = vmatpush1.msra.mxu0 0.0
    %3021 = vmatprep.subr.mxu0 0.0
    %3022 = vmatpush1.msra.mxu0 0.0
    %3023 = vmatprep.subr.mxu0 0.0
    %3024 = vmatpush1.msra.mxu0 0.0
    %3025 = vmatprep.subr.mxu0 0.0
    %3026 = vmatpush1.msra.mxu0 0.0
    %3027 = vmatprep.subr.mxu0 0.0
    %3028 = vmatpush1.msra.mxu0 0.0
    %3029 = vmatprep.subr.mxu0 0.0
    %3030 = vmatpush1.msra.mxu0 0.0
    %3031 = vmatprep.subr.mxu0 0.0
    %3032 = vmatpush1.msra.mxu0 0.0
    %3033 = vmatprep.subr.mxu0 0.0
    %3034 = vmatpush1.msra.mxu0 0.0
    %3035 = vmatprep.subr.mxu0 0.0
    %3036 = vmatpush1.msra.mxu0 0.0
    %3037 = vmatprep.mubr.f32.mxu0 0.0
    %3038 = vmatmul.mubr.f32.gmra.mrb[0].mxu0 %v2971
    %v3039 = vpop.f32.mrb[0].mxu0
    %v3040 = vadd.f32 0.0, %v3039
    %v3041 = vpop.f32.mrb[0].mxu0
    %3042 = vdwg.mxu0
    %3043 = vrot.lane.b32.xlu0 %v2031, 112
    %v3044 = vpop.permute.xlu0 %3043
    %3045 = vrot.lane.b32.xlu0 %v2031, 80
    %v3046 = vpop.permute.xlu0 %3045
    %v3047 = vsel %vm210, %v3044, 0
    %v3049 = vsel %vm210, %v3046, 0
    %3051 = vmatprep.subr.mxu0 0.0
    %3052 = vmatpush1.xpose.msra.mxu0 %v3049
    %3053 = vmatprep.subr.mxu0 0.0
    %3054 = vmatpush1.xpose.msra.mxu0 0.0
    %3055 = vmatprep.subr.mxu0 0.0
    %3056 = vmatpush1.xpose.msra.mxu0 0.0
    %3057 = vmatprep.subr.mxu0 0.0
    %3058 = vmatpush1.xpose.msra.mxu0 0.0
    %3059 = vmatprep.subr.mxu0 0.0
    %3060 = vmatpush1.xpose.msra.mxu0 0.0
    %3061 = vmatprep.subr.mxu0 0.0
    %3062 = vmatpush1.xpose.msra.mxu0 0.0
    %3063 = vmatprep.subr.mxu0 0.0
    %3064 = vmatpush1.xpose.msra.mxu0 0.0
    %3065 = vmatprep.subr.mxu0 0.0
    %3066 = vmatpush1.xpose.msra.mxu0 0.0
    %3067 = vmatprep.subr.mxu0 0.0
    %3068 = vmatpush1.xpose.msra.mxu0 0.0
    %3069 = vmatprep.subr.mxu0 0.0
    %3070 = vmatpush1.xpose.msra.mxu0 0.0
    %3071 = vmatprep.subr.mxu0 0.0
    %3072 = vmatpush1.xpose.msra.mxu0 0.0
    %3073 = vmatprep.subr.mxu0 0.0
    %3074 = vmatpush1.xpose.msra.mxu0 0.0
    %3075 = vmatprep.subr.mxu0 0.0
    %3076 = vmatpush1.xpose.msra.mxu0 0.0
    %3077 = vmatprep.subr.mxu0 0.0
    %3078 = vmatpush1.xpose.msra.mxu0 0.0
    %3079 = vmatprep.subr.mxu0 0.0
    %3080 = vmatpush1.xpose.msra.mxu0 0.0
    %3081 = vmatprep.subr.mxu0 0.0
    %3082 = vmatpush1.xpose.msra.mxu0 0.0
    %3083 = vmatprep.subr.mxu0 0.0
    %3084 = vmatpush1.xpose.msra.mxu0 0.0
    %3085 = vmatprep.subr.mxu0 0.0
    %3086 = vmatpush1.xpose.msra.mxu0 0.0
    %3087 = vmatprep.subr.mxu0 0.0
    %3088 = vmatpush1.xpose.msra.mxu0 0.0
    %3089 = vmatprep.subr.mxu0 0.0
    %3090 = vmatpush1.xpose.msra.mxu0 0.0
    %3091 = vmatprep.subr.mxu0 0.0
    %3092 = vmatpush1.xpose.msra.mxu0 0.0
    %3093 = vmatprep.subr.mxu0 0.0
    %3094 = vmatpush1.xpose.msra.mxu0 0.0
    %3095 = vmatprep.subr.mxu0 0.0
    %3096 = vmatpush1.xpose.msra.mxu0 0.0
    %3097 = vmatprep.subr.mxu0 0.0
    %3098 = vmatpush1.xpose.msra.mxu0 0.0
    %3099 = vmatprep.subr.mxu0 0.0
    %3100 = vmatpush1.xpose.msra.mxu0 0.0
    %3101 = vmatprep.subr.mxu0 0.0
    %3102 = vmatpush1.xpose.msra.mxu0 0.0
    %3103 = vmatprep.subr.mxu0 0.0
    %3104 = vmatpush1.xpose.msra.mxu0 0.0
    %3105 = vmatprep.subr.mxu0 0.0
    %3106 = vmatpush1.xpose.msra.mxu0 0.0
    %3107 = vmatprep.subr.mxu0 0.0
    %3108 = vmatpush1.xpose.msra.mxu0 0.0
    %3109 = vmatprep.subr.mxu0 0.0
    %3110 = vmatpush1.xpose.msra.mxu0 0.0
    %3111 = vmatprep.subr.mxu0 0.0
    %3112 = vmatpush1.xpose.msra.mxu0 0.0
    %3113 = vmatprep.subr.mxu0 0.0
    %3114 = vmatpush1.xpose.msra.mxu0 0.0
    %3115 = vmatprep.mubr.f32.mxu0 0.0
    %3116 = vmatmul.mubr.f32.gmra.mrb[0].mxu0 %v3047
    %v3117 = vpop.f32.mrb[0].mxu0
    %v3118 = vadd.f32 0.0, %v3117
    %v3119 = vpop.f32.mrb[0].mxu0
    %3120 = vdwg.mxu0
    %v3121 = vmul.f32 %v3118, 0.35355338
    %v3122 = vsel %vm210, %v3121, -inf
    %3123 = vmax.xlane.f32.xlu0 %v3122
    %v3124 = vpop.xlane.xlu0 %3123
    %v3125 = vsub.f32 %v3121, %v3124
    %v3126 = vmul.f32 %v3125, 1.442695
    %v3127 = vpow.pop %v3126
    %v3128 = vsel %vm210, %v3127, 0.0
    %3129 = vadd.xlane.f32.xlu0 %v3128
    %v3130 = vpop.xlane.xlu0 %3129
    %v3131 = vrcp.pop %v3130
    %v3132 = vmul.f32 %v3127, %v3131
    %3133 = vrot.lane.b32.xlu0 %v2031, 48
    %v3134 = vpop.permute.xlu0 %3133
    %v3137 = vsel %vm210, %v3132, 0
    %3139 = vmatprep.subr.mxu0 0.0
    %3140 = vmatpush1.msra.mxu0 %v3134
    %3141 = vmatprep.subr.mxu0 0.0
    %3142 = vmatpush1.msra.mxu0 0.0
    %3143 = vmatprep.subr.mxu0 0.0
    %3144 = vmatpush1.msra.mxu0 0.0
    %3145 = vmatprep.subr.mxu0 0.0
    %3146 = vmatpush1.msra.mxu0 0.0
    %3147 = vmatprep.subr.mxu0 0.0
    %3148 = vmatpush1.msra.mxu0 0.0
    %3149 = vmatprep.subr.mxu0 0.0
    %3150 = vmatpush1.msra.mxu0 0.0
    %3151 = vmatprep.subr.mxu0 0.0
    %3152 = vmatpush1.msra.mxu0 0.0
    %3153 = vmatprep.subr.mxu0 0.0
    %3154 = vmatpush1.msra.mxu0 0.0
    %3155 = vmatprep.subr.mxu0 0.0
    %3156 = vmatpush1.msra.mxu0 0.0
    %3157 = vmatprep.subr.mxu0 0.0
    %3158 = vmatpush1.msra.mxu0 0.0
    %3159 = vmatprep.subr.mxu0 0.0
    %3160 = vmatpush1.msra.mxu0 0.0
    %3161 = vmatprep.subr.mxu0 0.0
    %3162 = vmatpush1.msra.mxu0 0.0
    %3163 = vmatprep.subr.mxu0 0.0
    %3164 = vmatpush1.msra.mxu0 0.0
    %3165 = vmatprep.subr.mxu0 0.0
    %3166 = vmatpush1.msra.mxu0 0.0
    %3167 = vmatprep.subr.mxu0 0.0
    %3168 = vmatpush1.msra.mxu0 0.0
    %3169 = vmatprep.subr.mxu0 0.0
    %3170 = vmatpush1.msra.mxu0 0.0
    %3171 = vmatprep.subr.mxu0 0.0
    %3172 = vmatpush1.msra.mxu0 0.0
    %3173 = vmatprep.subr.mxu0 0.0
    %3174 = vmatpush1.msra.mxu0 0.0
    %3175 = vmatprep.subr.mxu0 0.0
    %3176 = vmatpush1.msra.mxu0 0.0
    %3177 = vmatprep.subr.mxu0 0.0
    %3178 = vmatpush1.msra.mxu0 0.0
    %3179 = vmatprep.subr.mxu0 0.0
    %3180 = vmatpush1.msra.mxu0 0.0
    %3181 = vmatprep.subr.mxu0 0.0
    %3182 = vmatpush1.msra.mxu0 0.0
    %3183 = vmatprep.subr.mxu0 0.0
    %3184 = vmatpush1.msra.mxu0 0.0
    %3185 = vmatprep.subr.mxu0 0.0
    %3186 = vmatpush1.msra.mxu0 0.0
    %3187 = vmatprep.subr.mxu0 0.0
    %3188 = vmatpush1.msra.mxu0 0.0
    %3189 = vmatprep.subr.mxu0 0.0
    %3190 = vmatpush1.msra.mxu0 0.0
    %3191 = vmatprep.subr.mxu0 0.0
    %3192 = vmatpush1.msra.mxu0 0.0
    %3193 = vmatprep.subr.mxu0 0.0
    %3194 = vmatpush1.msra.mxu0 0.0
    %3195 = vmatprep.subr.mxu0 0.0
    %3196 = vmatpush1.msra.mxu0 0.0
    %3197 = vmatprep.subr.mxu0 0.0
    %3198 = vmatpush1.msra.mxu0 0.0
    %3199 = vmatprep.subr.mxu0 0.0
    %3200 = vmatpush1.msra.mxu0 0.0
    %3201 = vmatprep.subr.mxu0 0.0
    %3202 = vmatpush1.msra.mxu0 0.0
    %3203 = vmatprep.mubr.f32.mxu0 0.0
    %3204 = vmatmul.mubr.f32.gmra.mrb[0].mxu0 %v3137
    %v3205 = vpop.f32.mrb[0].mxu0
    %v3206 = vadd.f32 0.0, %v3205
    %v3207 = vpop.f32.mrb[0].mxu0
    %3208 = vdwg.mxu0
    %3209 = vrot.lane.b32.xlu0 %v2031, 104
    %v3210 = vpop.permute.xlu0 %3209
    %3211 = vrot.lane.b32.xlu0 %v2031, 72
    %v3212 = vpop.permute.xlu0 %3211
    %v3213 = vsel %vm210, %v3210, 0
    %v3215 = vsel %vm210, %v3212, 0
    %3217 = vmatprep.subr.mxu0 0.0
    %3218 = vmatpush1.xpose.msra.mxu0 %v3215
    %3219 = vmatprep.subr.mxu0 0.0
    %3220 = vmatpush1.xpose.msra.mxu0 0.0
    %3221 = vmatprep.subr.mxu0 0.0
    %3222 = vmatpush1.xpose.msra.mxu0 0.0
    %3223 = vmatprep.subr.mxu0 0.0
    %3224 = vmatpush1.xpose.msra.mxu0 0.0
    %3225 = vmatprep.subr.mxu0 0.0
    %3226 = vmatpush1.xpose.msra.mxu0 0.0
    %3227 = vmatprep.subr.mxu0 0.0
    %3228 = vmatpush1.xpose.msra.mxu0 0.0
    %3229 = vmatprep.subr.mxu0 0.0
    %3230 = vmatpush1.xpose.msra.mxu0 0.0
    %3231 = vmatprep.subr.mxu0 0.0
    %3232 = vmatpush1.xpose.msra.mxu0 0.0
    %3233 = vmatprep.subr.mxu0 0.0
    %3234 = vmatpush1.xpose.msra.mxu0 0.0
    %3235 = vmatprep.subr.mxu0 0.0
    %3236 = vmatpush1.xpose.msra.mxu0 0.0
    %3237 = vmatprep.subr.mxu0 0.0
    %3238 = vmatpush1.xpose.msra.mxu0 0.0
    %3239 = vmatprep.subr.mxu0 0.0
    %3240 = vmatpush1.xpose.msra.mxu0 0.0
    %3241 = vmatprep.subr.mxu0 0.0
    %3242 = vmatpush1.xpose.msra.mxu0 0.0
    %3243 = vmatprep.subr.mxu0 0.0
    %3244 = vmatpush1.xpose.msra.mxu0 0.0
    %3245 = vmatprep.subr.mxu0 0.0
    %3246 = vmatpush1.xpose.msra.mxu0 0.0
    %3247 = vmatprep.subr.mxu0 0.0
    %3248 = vmatpush1.xpose.msra.mxu0 0.0
    %3249 = vmatprep.subr.mxu0 0.0
    %3250 = vmatpush1.xpose.msra.mxu0 0.0
    %3251 = vmatprep.subr.mxu0 0.0
    %3252 = vmatpush1.xpose.msra.mxu0 0.0
    %3253 = vmatprep.subr.mxu0 0.0
    %3254 = vmatpush1.xpose.msra.mxu0 0.0
    %3255 = vmatprep.subr.mxu0 0.0
    %3256 = vmatpush1.xpose.msra.mxu0 0.0
    %3257 = vmatprep.subr.mxu0 0.0
    %3258 = vmatpush1.xpose.msra.mxu0 0.0
    %3259 = vmatprep.subr.mxu0 0.0
    %3260 = vmatpush1.xpose.msra.mxu0 0.0
    %3261 = vmatprep.subr.mxu0 0.0
    %3262 = vmatpush1.xpose.msra.mxu0 0.0
    %3263 = vmatprep.subr.mxu0 0.0
    %3264 = vmatpush1.xpose.msra.mxu0 0.0
    %3265 = vmatprep.subr.mxu0 0.0
    %3266 = vmatpush1.xpose.msra.mxu0 0.0
    %3267 = vmatprep.subr.mxu0 0.0
    %3268 = vmatpush1.xpose.msra.mxu0 0.0
    %3269 = vmatprep.subr.mxu0 0.0
    %3270 = vmatpush1.xpose.msra.mxu0 0.0
    %3271 = vmatprep.subr.mxu0 0.0
    %3272 = vmatpush1.xpose.msra.mxu0 0.0
    %3273 = vmatprep.subr.mxu0 0.0
    %3274 = vmatpush1.xpose.msra.mxu0 0.0
    %3275 = vmatprep.subr.mxu0 0.0
    %3276 = vmatpush1.xpose.msra.mxu0 0.0
    %3277 = vmatprep.subr.mxu0 0.0
    %3278 = vmatpush1.xpose.msra.mxu0 0.0
    %3279 = vmatprep.subr.mxu0 0.0
    %3280 = vmatpush1.xpose.msra.mxu0 0.0
    %3281 = vmatprep.mubr.f32.mxu0 0.0
    %3282 = vmatmul.mubr.f32.gmra.mrb[0].mxu0 %v3213
    %v3283 = vpop.f32.mrb[0].mxu0
    %v3284 = vadd.f32 0.0, %v3283
    %v3285 = vpop.f32.mrb[0].mxu0
    %3286 = vdwg.mxu0
    %v3287 = vmul.f32 %v3284, 0.35355338
    %v3288 = vsel %vm210, %v3287, -inf
    %3289 = vmax.xlane.f32.xlu0 %v3288
    %v3290 = vpop.xlane.xlu0 %3289
    %v3291 = vsub.f32 %v3287, %v3290
    %v3292 = vmul.f32 %v3291, 1.442695
    %v3293 = vpow.pop %v3292
    %v3294 = vsel %vm210, %v3293, 0.0
    %3295 = vadd.xlane.f32.xlu0 %v3294
    %v3296 = vpop.xlane.xlu0 %3295
    %v3297 = vrcp.pop %v3296
    %v3298 = vmul.f32 %v3293, %v3297
    %3299 = vrot.lane.b32.xlu0 %v2031, 40
    %v3300 = vpop.permute.xlu0 %3299
    %v3303 = vsel %vm210, %v3298, 0
    %3305 = vmatprep.subr.mxu0 0.0
    %3306 = vmatpush1.msra.mxu0 %v3300
    %3307 = vmatprep.subr.mxu0 0.0
    %3308 = vmatpush1.msra.mxu0 0.0
    %3309 = vmatprep.subr.mxu0 0.0
    %3310 = vmatpush1.msra.mxu0 0.0
    %3311 = vmatprep.subr.mxu0 0.0
    %3312 = vmatpush1.msra.mxu0 0.0
    %3313 = vmatprep.subr.mxu0 0.0
    %3314 = vmatpush1.msra.mxu0 0.0
    %3315 = vmatprep.subr.mxu0 0.0
    %3316 = vmatpush1.msra.mxu0 0.0
    %3317 = vmatprep.subr.mxu0 0.0
    %3318 = vmatpush1.msra.mxu0 0.0
    %3319 = vmatprep.subr.mxu0 0.0
    %3320 = vmatpush1.msra.mxu0 0.0
    %3321 = vmatprep.subr.mxu0 0.0
    %3322 = vmatpush1.msra.mxu0 0.0
    %3323 = vmatprep.subr.mxu0 0.0
    %3324 = vmatpush1.msra.mxu0 0.0
    %3325 = vmatprep.subr.mxu0 0.0
    %3326 = vmatpush1.msra.mxu0 0.0
    %3327 = vmatprep.subr.mxu0 0.0
    %3328 = vmatpush1.msra.mxu0 0.0
    %3329 = vmatprep.subr.mxu0 0.0
    %3330 = vmatpush1.msra.mxu0 0.0
    %3331 = vmatprep.subr.mxu0 0.0
    %3332 = vmatpush1.msra.mxu0 0.0
    %3333 = vmatprep.subr.mxu0 0.0
    %3334 = vmatpush1.msra.mxu0 0.0
    %3335 = vmatprep.subr.mxu0 0.0
    %3336 = vmatpush1.msra.mxu0 0.0
    %3337 = vmatprep.subr.mxu0 0.0
    %3338 = vmatpush1.msra.mxu0 0.0
    %3339 = vmatprep.subr.mxu0 0.0
    %3340 = vmatpush1.msra.mxu0 0.0
    %3341 = vmatprep.subr.mxu0 0.0
    %3342 = vmatpush1.msra.mxu0 0.0
    %3343 = vmatprep.subr.mxu0 0.0
    %3344 = vmatpush1.msra.mxu0 0.0
    %3345 = vmatprep.subr.mxu0 0.0
    %3346 = vmatpush1.msra.mxu0 0.0
    %3347 = vmatprep.subr.mxu0 0.0
    %3348 = vmatpush1.msra.mxu0 0.0
    %3349 = vmatprep.subr.mxu0 0.0
    %3350 = vmatpush1.msra.mxu0 0.0
    %3351 = vmatprep.subr.mxu0 0.0
    %3352 = vmatpush1.msra.mxu0 0.0
    %3353 = vmatprep.subr.mxu0 0.0
    %3354 = vmatpush1.msra.mxu0 0.0
    %3355 = vmatprep.subr.mxu0 0.0
    %3356 = vmatpush1.msra.mxu0 0.0
    %3357 = vmatprep.subr.mxu0 0.0
    %3358 = vmatpush1.msra.mxu0 0.0
    %3359 = vmatprep.subr.mxu0 0.0
    %3360 = vmatpush1.msra.mxu0 0.0
    %3361 = vmatprep.subr.mxu0 0.0
    %3362 = vmatpush1.msra.mxu0 0.0
    %3363 = vmatprep.subr.mxu0 0.0
    %3364 = vmatpush1.msra.mxu0 0.0
    %3365 = vmatprep.subr.mxu0 0.0
    %3366 = vmatpush1.msra.mxu0 0.0
    %3367 = vmatprep.subr.mxu0 0.0
    %3368 = vmatpush1.msra.mxu0 0.0
    %3369 = vmatprep.mubr.f32.mxu0 0.0
    %3370 = vmatmul.mubr.f32.gmra.mrb[0].mxu0 %v3303
    %v3371 = vpop.f32.mrb[0].mxu0
    %v3372 = vadd.f32 0.0, %v3371
    %v3373 = vpop.f32.mrb[0].mxu0
    %3374 = vdwg.mxu0
    %3376 = vrot.lane.b32.xlu0 %v3040, 8
    %v3377 = vpop.permute.xlu0 %3376
    %3380 = vrot.lane.b32.xlu0 %v3206, 16
    %v3381 = vpop.permute.xlu0 %3380
    %3384 = vrot.lane.b32.xlu0 %v3372, 24
    %v3385 = vpop.permute.xlu0 %3384
    %v3387 = vsel %vm210, %v2874, %v3377
    %v3388 = vsel %vm884, %v3387, %v3381
    %v3389 = vsel %vm886, %v3388, %v3385
    %s3390 = scalar_lea.vmem %s6, 32
    %v3391 = vld [vmem:[%s3390] sm:$0xff]
    %v3392 = vld [vmem:[%s3390 + $0x8] sm:$0xff]
    %v3393 = vld [vmem:[%s3390 + $0x10] sm:$0xff]
    %v3394 = vld [vmem:[%s3390 + $0x18] sm:$0xff]
    %v3395 = vld [vmem:[%s7 + $0x1] sm:$0x1]
    %v3396 = vlaneseq
    %v3397 = vshrl.u32 %v3396, 7
    %v3398 = vsub.s32 0, %v3397
    %v3399 = vrot.slane %v3395, %v3398
    %v3401 = vsel %vm73, %v2711, 0
    %v3404 = vsel %vm73, %v3389, 0
    %3406 = vmatprep.subr.mxu0 0.0
    %3407 = vmatpush1.msra.mxu0 %v3391
    %3408 = vmatprep.subr.mxu0 0.0
    %3409 = vmatpush1.msra.mxu0 %v3392
    %3410 = vmatprep.subr.mxu0 0.0
    %3411 = vmatpush1.msra.mxu0 %v3393
    %3412 = vmatprep.subr.mxu0 0.0
    %3413 = vmatpush1.msra.mxu0 %v3394
    %3414 = vmatprep.subr.mxu0 0.0
    %3415 = vmatpush1.msra.mxu0 0.0
    %3416 = vmatprep.subr.mxu0 0.0
    %3417 = vmatpush1.msra.mxu0 0.0
    %3418 = vmatprep.subr.mxu0 0.0
    %3419 = vmatpush1.msra.mxu0 0.0
    %3420 = vmatprep.subr.mxu0 0.0
    %3421 = vmatpush1.msra.mxu0 0.0
    %3422 = vmatprep.subr.mxu0 0.0
    %3423 = vmatpush1.msra.mxu0 0.0
    %3424 = vmatprep.subr.mxu0 0.0
    %3425 = vmatpush1.msra.mxu0 0.0
    %3426 = vmatprep.subr.mxu0 0.0
    %3427 = vmatpush1.msra.mxu0 0.0
    %3428 = vmatprep.subr.mxu0 0.0
    %3429 = vmatpush1.msra.mxu0 0.0
    %3430 = vmatprep.subr.mxu0 0.0
    %3431 = vmatpush1.msra.mxu0 0.0
    %3432 = vmatprep.subr.mxu0 0.0
    %3433 = vmatpush1.msra.mxu0 0.0
    %3434 = vmatprep.subr.mxu0 0.0
    %3435 = vmatpush1.msra.mxu0 0.0
    %3436 = vmatprep.subr.mxu0 0.0
    %3437 = vmatpush1.msra.mxu0 0.0
    %3438 = vmatprep.subr.mxu0 0.0
    %3439 = vmatpush1.msra.mxu0 0.0
    %3440 = vmatprep.subr.mxu0 0.0
    %3441 = vmatpush1.msra.mxu0 0.0
    %3442 = vmatprep.subr.mxu0 0.0
    %3443 = vmatpush1.msra.mxu0 0.0
    %3444 = vmatprep.subr.mxu0 0.0
    %3445 = vmatpush1.msra.mxu0 0.0
    %3446 = vmatprep.subr.mxu0 0.0
    %3447 = vmatpush1.msra.mxu0 0.0
    %3448 = vmatprep.subr.mxu0 0.0
    %3449 = vmatpush1.msra.mxu0 0.0
    %3450 = vmatprep.subr.mxu0 0.0
    %3451 = vmatpush1.msra.mxu0 0.0
    %3452 = vmatprep.subr.mxu0 0.0
    %3453 = vmatpush1.msra.mxu0 0.0
    %3454 = vmatprep.subr.mxu0 0.0
    %3455 = vmatpush1.msra.mxu0 0.0
    %3456 = vmatprep.subr.mxu0 0.0
    %3457 = vmatpush1.msra.mxu0 0.0
    %3458 = vmatprep.subr.mxu0 0.0
    %3459 = vmatpush1.msra.mxu0 0.0
    %3460 = vmatprep.subr.mxu0 0.0
    %3461 = vmatpush1.msra.mxu0 0.0
    %3462 = vmatprep.subr.mxu0 0.0
    %3463 = vmatpush1.msra.mxu0 0.0
    %3464 = vmatprep.subr.mxu0 0.0
    %3465 = vmatpush1.msra.mxu0 0.0
    %3466 = vmatprep.subr.mxu0 0.0
    %3467 = vmatpush1.msra.mxu0 0.0
    %3468 = vmatprep.subr.mxu0 0.0
    %3469 = vmatpush1.msra.mxu0 0.0
    %3470 = vmatprep.mubr.f32.mxu0 0.0
    %3471 = vmatmul.mubr.f32.gmra.mrb[0].mxu0 %v3401
    %v3472 = vpop.f32.mrb[0].mxu0
    %v3473 = vadd.f32 %v3399, %v3472
    %v3474 = vpop.f32.mrb[0].mxu0
    %3475 = vmatprep.mubr.f32.mxu0 0.0
    %3476 = vmatmul.mubr.f32.gmra.mrb[0].mxu0 %v3404
    %v3477 = vpop.f32.mrb[0].mxu0
    %v3478 = vadd.f32 %v3399, %v3477
    %v3479 = vpop.f32.mrb[0].mxu0
    %3480 = vdwg.mxu0
    %v3481 = vadd.f32 %v1941, %v3473
    %v3482 = vadd.f32 %v1942, %v3478
    %v3483 = vld [vmem:[%s8 + $0x1] sm:$0x1]
    %v3484 = vld [vmem:[%s9 + $0x1] sm:$0x1]
    %v3485 = vsel %vm73, %v3481, 0.0
    %3486 = vadd.xlane.f32.xlu0 %v3485
    %v3487 = vpop.xlane.xlu0 %3486
    %v3488 = vsel %vm73, %v3482, 0.0
    %3489 = vadd.xlane.f32.xlu0 %v3488
    %v3490 = vpop.xlane.xlu0 %3489
    %v3491 = vmul.f32 %v3487, %v80
    %v3492 = vmul.f32 %v3490, %v80
    %v3493 = vsub.f32 %v3481, %v3491
    %v3494 = vsub.f32 %v3482, %v3492
    %v3495 = vmul.f32 %v3493, %v3493
    %v3496 = vmul.f32 %v3494, %v3494
    %v3497 = vsel %vm73, %v3495, 0.0
    %3498 = vadd.xlane.f32.xlu0 %v3497
    %v3499 = vpop.xlane.xlu0 %3498
    %v3500 = vsel %vm73, %v3496, 0.0
    %3501 = vadd.xlane.f32.xlu0 %v3500
    %v3502 = vpop.xlane.xlu0 %3501
    %v3503 = vmul.f32 %v3499, %v80
    %v3504 = vmul.f32 %v3502, %v80
    %v3505 = vadd.f32 %v3503, 1e-12
    %v3506 = vadd.f32 %v3504, 1e-12
    %v3507 = vrsqrt.pop %v3505
    %v3508 = vrsqrt.pop %v3506
    %v3509 = vmul.f32 %v3493, %v3507
    %v3510 = vmul.f32 %v3494, %v3508
    %v3511 = vlaneseq
    %v3512 = vshrl.u32 %v3511, 7
    %v3513 = vsub.s32 0, %v3512
    %v3514 = vrot.slane %v3483, %v3513
    %v3515 = vmul.f32 %v3509, %v3514
    %v3516 = vmul.f32 %v3510, %v3514
    %v3517 = vlaneseq
    %v3518 = vshrl.u32 %v3517, 7
    %v3519 = vsub.s32 0, %v3518
    %v3520 = vrot.slane %v3484, %v3519
    %v3521 = vadd.f32 %v3515, %v3520
    %v3522 = vadd.f32 %v3516, %v3520
    %s3523 = scalar_lea.vmem %s10, 32
    %v3524 = vld [vmem:[%s3523] sm:$0xff]
    %v3525 = vld [vmem:[%s3523 + $0x8] sm:$0xff]
    %v3526 = vld [vmem:[%s3523 + $0x10] sm:$0xff]
    %v3527 = vld [vmem:[%s3523 + $0x18] sm:$0xff]
    %v3528 = vld [vmem:[%s11 + $0x1] sm:$0x1]
    %v3529 = vlaneseq
    %v3530 = vshrl.u32 %v3529, 7
    %v3531 = vsub.s32 0, %v3530
    %v3532 = vrot.slane %v3528, %v3531
    %v3534 = vsel %vm73, %v3521, 0
    %v3537 = vsel %vm73, %v3522, 0
    %3539 = vmatprep.subr.mxu0 0.0
    %3540 = vmatpush1.msra.mxu0 %v3524
    %3541 = vmatprep.subr.mxu0 0.0
    %3542 = vmatpush1.msra.mxu0 %v3525
    %3543 = vmatprep.subr.mxu0 0.0
    %3544 = vmatpush1.msra.mxu0 %v3526
    %3545 = vmatprep.subr.mxu0 0.0
    %3546 = vmatpush1.msra.mxu0 %v3527
    %3547 = vmatprep.subr.mxu0 0.0
    %3548 = vmatpush1.msra.mxu0 0.0
    %3549 = vmatprep.subr.mxu0 0.0
    %3550 = vmatpush1.msra.mxu0 0.0
    %3551 = vmatprep.subr.mxu0 0.0
    %3552 = vmatpush1.msra.mxu0 0.0
    %3553 = vmatprep.subr.mxu0 0.0
    %3554 = vmatpush1.msra.mxu0 0.0
    %3555 = vmatprep.subr.mxu0 0.0
    %3556 = vmatpush1.msra.mxu0 0.0
    %3557 = vmatprep.subr.mxu0 0.0
    %3558 = vmatpush1.msra.mxu0 0.0
    %3559 = vmatprep.subr.mxu0 0.0
    %3560 = vmatpush1.msra.mxu0 0.0
    %3561 = vmatprep.subr.mxu0 0.0
    %3562 = vmatpush1.msra.mxu0 0.0
    %3563 = vmatprep.subr.mxu0 0.0
    %3564 = vmatpush1.msra.mxu0 0.0
    %3565 = vmatprep.subr.mxu0 0.0
    %3566 = vmatpush1.msra.mxu0 0.0
    %3567 = vmatprep.subr.mxu0 0.0
    %3568 = vmatpush1.msra.mxu0 0.0
    %3569 = vmatprep.subr.mxu0 0.0
    %3570 = vmatpush1.msra.mxu0 0.0
    %3571 = vmatprep.subr.mxu0 0.0
    %3572 = vmatpush1.msra.mxu0 0.0
    %3573 = vmatprep.subr.mxu0 0.0
    %3574 = vmatpush1.msra.mxu0 0.0
    %3575 = vmatprep.subr.mxu0 0.0
    %3576 = vmatpush1.msra.mxu0 0.0
    %3577 = vmatprep.subr.mxu0 0.0
    %3578 = vmatpush1.msra.mxu0 0.0
    %3579 = vmatprep.subr.mxu0 0.0
    %3580 = vmatpush1.msra.mxu0 0.0
    %3581 = vmatprep.subr.mxu0 0.0
    %3582 = vmatpush1.msra.mxu0 0.0
    %3583 = vmatprep.subr.mxu0 0.0
    %3584 = vmatpush1.msra.mxu0 0.0
    %3585 = vmatprep.subr.mxu0 0.0
    %3586 = vmatpush1.msra.mxu0 0.0
    %3587 = vmatprep.subr.mxu0 0.0
    %3588 = vmatpush1.msra.mxu0 0.0
    %3589 = vmatprep.subr.mxu0 0.0
    %3590 = vmatpush1.msra.mxu0 0.0
    %3591 = vmatprep.subr.mxu0 0.0
    %3592 = vmatpush1.msra.mxu0 0.0
    %3593 = vmatprep.subr.mxu0 0.0
    %3594 = vmatpush1.msra.mxu0 0.0
    %3595 = vmatprep.subr.mxu0 0.0
    %3596 = vmatpush1.msra.mxu0 0.0
    %3597 = vmatprep.subr.mxu0 0.0
    %3598 = vmatpush1.msra.mxu0 0.0
    %3599 = vmatprep.subr.mxu0 0.0
    %3600 = vmatpush1.msra.mxu0 0.0
    %3601 = vmatprep.subr.mxu0 0.0
    %3602 = vmatpush1.msra.mxu0 0.0
    %3603 = vmatprep.mubr.f32.mxu0 0.0
    %3604 = vmatmul.mubr.f32.gmra.mrb[0].mxu0 %v3534
    %v3605 = vpop.f32.mrb[0].mxu0
    %v3606 = vadd.f32 %v3532, %v3605
    %v3607 = vpop.f32.mrb[0].mxu0
    %3608 = vmatprep.mubr.f32.mxu0 0.0
    %3609 = vmatmul.mubr.f32.gmra.mrb[0].mxu0 %v3537
    %v3610 = vpop.f32.mrb[0].mxu0
    %v3611 = vadd.f32 %v3532, %v3610
    %v3612 = vpop.f32.mrb[0].mxu0
    %3613 = vdwg.mxu0
    %v3614 = vmul.f32 %v3606, 0.5
    %v3615 = vmul.f32 %v3611, 0.5
    %v3616 = vmul.f32 %v3606, 0.044715
    %v3617 = vmul.f32 %v3611, 0.044715
    %v3618 = vmul.f32 %v3616, %v3606
    %v3619 = vmul.f32 %v3617, %v3611
    %v3620 = vmul.f32 %v3618, %v3606
    %v3621 = vmul.f32 %v3619, %v3611
    %v3622 = vadd.f32 %v3606, %v3620
    %v3623 = vadd.f32 %v3611, %v3621
    %v3624 = vmul.f32 %v3622, 0.7978846
    %v3625 = vmul.f32 %v3623, 0.7978846
    %v3626 = vtanh.pop %v3624
    %v3627 = vtanh.pop %v3625
    %v3628 = vadd.f32 %v3626, 1.0
    %v3629 = vadd.f32 %v3627, 1.0
    %v3630 = vmul.f32 %v3614, %v3628
    %v3631 = vmul.f32 %v3615, %v3629
    %s3632 = scalar_lea.vmem %s12, 64
    %v3633 = vld [vmem:[%s3632] sm:$0xff]
    %v3634 = vld [vmem:[%s3632 + $0x8] sm:$0xff]
    %v3635 = vld [vmem:[%s3632 + $0x10] sm:$0xff]
    %v3636 = vld [vmem:[%s3632 + $0x18] sm:$0xff]
    %v3637 = vld [vmem:[%s3632 + $0x20] sm:$0xff]
    %v3638 = vld [vmem:[%s3632 + $0x28] sm:$0xff]
    %v3639 = vld [vmem:[%s3632 + $0x30] sm:$0xff]
    %v3640 = vld [vmem:[%s3632 + $0x38] sm:$0xff]
    %v3641 = vld [vmem:[%s13 + $0x1] sm:$0x1]
    %v3642 = vlaneseq
    %v3643 = vshrl.u32 %v3642, 7
    %v3644 = vsub.s32 0, %v3643
    %v3645 = vrot.slane %v3641, %v3644
    %v3647 = vsel %vm1819, %v3630, 0
    %v3650 = vsel %vm1819, %v3631, 0
    %3652 = vmatprep.subr.mxu0 0.0
    %3653 = vmatpush1.msra.mxu0 %v3633
    %3654 = vmatprep.subr.mxu0 0.0
    %3655 = vmatpush1.msra.mxu0 %v3634
    %3656 = vmatprep.subr.mxu0 0.0
    %3657 = vmatpush1.msra.mxu0 %v3635
    %3658 = vmatprep.subr.mxu0 0.0
    %3659 = vmatpush1.msra.mxu0 %v3636
    %3660 = vmatprep.subr.mxu0 0.0
    %3661 = vmatpush1.msra.mxu0 %v3637
    %3662 = vmatprep.subr.mxu0 0.0
    %3663 = vmatpush1.msra.mxu0 %v3638
    %3664 = vmatprep.subr.mxu0 0.0
    %3665 = vmatpush1.msra.mxu0 %v3639
    %3666 = vmatprep.subr.mxu0 0.0
    %3667 = vmatpush1.msra.mxu0 %v3640
    %3668 = vmatprep.subr.mxu0 0.0
    %3669 = vmatpush1.msra.mxu0 0.0
    %3670 = vmatprep.subr.mxu0 0.0
    %3671 = vmatpush1.msra.mxu0 0.0
    %3672 = vmatprep.subr.mxu0 0.0
    %3673 = vmatpush1.msra.mxu0 0.0
    %3674 = vmatprep.subr.mxu0 0.0
    %3675 = vmatpush1.msra.mxu0 0.0
    %3676 = vmatprep.subr.mxu0 0.0
    %3677 = vmatpush1.msra.mxu0 0.0
    %3678 = vmatprep.subr.mxu0 0.0
    %3679 = vmatpush1.msra.mxu0 0.0
    %3680 = vmatprep.subr.mxu0 0.0
    %3681 = vmatpush1.msra.mxu0 0.0
    %3682 = vmatprep.subr.mxu0 0.0
    %3683 = vmatpush1.msra.mxu0 0.0
    %3684 = vmatprep.subr.mxu0 0.0
    %3685 = vmatpush1.msra.mxu0 0.0
    %3686 = vmatprep.subr.mxu0 0.0
    %3687 = vmatpush1.msra.mxu0 0.0
    %3688 = vmatprep.subr.mxu0 0.0
    %3689 = vmatpush1.msra.mxu0 0.0
    %3690 = vmatprep.subr.mxu0 0.0
    %3691 = vmatpush1.msra.mxu0 0.0
    %3692 = vmatprep.subr.mxu0 0.0
    %3693 = vmatpush1.msra.mxu0 0.0
    %3694 = vmatprep.subr.mxu0 0.0
    %3695 = vmatpush1.msra.mxu0 0.0
    %3696 = vmatprep.subr.mxu0 0.0
    %3697 = vmatpush1.msra.mxu0 0.0
    %3698 = vmatprep.subr.mxu0 0.0
    %3699 = vmatpush1.msra.mxu0 0.0
    %3700 = vmatprep.subr.mxu0 0.0
    %3701 = vmatpush1.msra.mxu0 0.0
    %3702 = vmatprep.subr.mxu0 0.0
    %3703 = vmatpush1.msra.mxu0 0.0
    %3704 = vmatprep.subr.mxu0 0.0
    %3705 = vmatpush1.msra.mxu0 0.0
    %3706 = vmatprep.subr.mxu0 0.0
    %3707 = vmatpush1.msra.mxu0 0.0
    %3708 = vmatprep.subr.mxu0 0.0
    %3709 = vmatpush1.msra.mxu0 0.0
    %3710 = vmatprep.subr.mxu0 0.0
    %3711 = vmatpush1.msra.mxu0 0.0
    %3712 = vmatprep.subr.mxu0 0.0
    %3713 = vmatpush1.msra.mxu0 0.0
    %3714 = vmatprep.subr.mxu0 0.0
    %3715 = vmatpush1.msra.mxu0 0.0
    %3716 = vmatprep.mubr.f32.mxu0 0.0
    %3717 = vmatmul.mubr.f32.gmra.mrb[0].mxu0 %v3647
    %v3718 = vpop.f32.mrb[0].mxu0
    %v3719 = vadd.f32 %v3645, %v3718
    %v3720 = vpop.f32.mrb[0].mxu0
    %3721 = vmatprep.mubr.f32.mxu0 0.0
    %3722 = vmatmul.mubr.f32.gmra.mrb[0].mxu0 %v3650
    %v3723 = vpop.f32.mrb[0].mxu0
    %v3724 = vadd.f32 %v3645, %v3723
    %v3725 = vpop.f32.mrb[0].mxu0
    %3726 = vdwg.mxu0
    %v3727 = vadd.f32 %v3521, %v3719
    %v3728 = vadd.f32 %v3522, %v3724
    %v3729 = vld [vmem:[%s14 + $0x1] sm:$0x1]
    %v3730 = vld [vmem:[%s15 + $0x1] sm:$0x1]
    %v3731 = vsel %vm73, %v3727, 0.0
    %3732 = vadd.xlane.f32.xlu0 %v3731
    %v3733 = vpop.xlane.xlu0 %3732
    %v3734 = vsel %vm73, %v3728, 0.0
    %3735 = vadd.xlane.f32.xlu0 %v3734
    %v3736 = vpop.xlane.xlu0 %3735
    %v3737 = vmul.f32 %v3733, %v80
    %v3738 = vmul.f32 %v3736, %v80
    %v3739 = vsub.f32 %v3727, %v3737
    %v3740 = vsub.f32 %v3728, %v3738
    %v3741 = vmul.f32 %v3739, %v3739
    %v3742 = vmul.f32 %v3740, %v3740
    %v3743 = vsel %vm73, %v3741, 0.0
    %3744 = vadd.xlane.f32.xlu0 %v3743
    %v3745 = vpop.xlane.xlu0 %3744
    %v3746 = vsel %vm73, %v3742, 0.0
    %3747 = vadd.xlane.f32.xlu0 %v3746
    %v3748 = vpop.xlane.xlu0 %3747
    %v3749 = vmul.f32 %v3745, %v80
    %v3750 = vmul.f32 %v3748, %v80
    %v3751 = vadd.f32 %v3749, 1e-12
    %v3752 = vadd.f32 %v3750, 1e-12
    %v3753 = vrsqrt.pop %v3751
    %v3754 = vrsqrt.pop %v3752
    %v3755 = vmul.f32 %v3739, %v3753
    %v3756 = vmul.f32 %v3740, %v3754
    %v3757 = vlaneseq
    %v3758 = vshrl.u32 %v3757, 7
    %v3759 = vsub.s32 0, %v3758
    %v3760 = vrot.slane %v3729, %v3759
    %v3761 = vmul.f32 %v3755, %v3760
    %v3762 = vmul.f32 %v3756, %v3760
    %v3763 = vlaneseq
    %v3764 = vshrl.u32 %v3763, 7
    %v3765 = vsub.s32 0, %v3764
    %v3766 = vrot.slane %v3730, %v3765
    %v3767 = vadd.f32 %v3761, %v3766
    %v3768 = vadd.f32 %v3762, %v3766
    %v3770 = vrot.slane %v3768, 7
    %vm3772 = vcmask 1040384
    %v3773 = vsel %vm3772, %v3767, %v3770
    %v3774 = vld [vmem:[%s16] sm:$0xff]
    %v3775 = vld [vmem:[%s16 + $0x8] sm:$0xff]
    %v3776 = vld [vmem:[%s16 + $0x10] sm:$0xff]
    %v3777 = vld [vmem:[%s16 + $0x18] sm:$0xff]
    %v3778 = vld [vmem:[%s17] sm:$0x1]
    %v3780 = vlaneseq
    %v3781 = vshrl.u32 %v3780, 7
    %v3782 = vsub.s32 0, %v3781
    %v3783 = vrot.slane %v3778, %v3782
    %v3786 = vsel %vm73, %v3773, 0
    %3788 = vmatprep.subr.mxu0 0.0
    %3789 = vmatpush1.msra.mxu0 %v3774
    %3790 = vmatprep.subr.mxu0 0.0
    %3791 = vmatpush1.msra.mxu0 %v3775
    %3792 = vmatprep.subr.mxu0 0.0
    %3793 = vmatpush1.msra.mxu0 %v3776
    %3794 = vmatprep.subr.mxu0 0.0
    %3795 = vmatpush1.msra.mxu0 %v3777
    %3796 = vmatprep.subr.mxu0 0.0
    %3797 = vmatpush1.msra.mxu0 0.0
    %3798 = vmatprep.subr.mxu0 0.0
    %3799 = vmatpush1.msra.mxu0 0.0
    %3800 = vmatprep.subr.mxu0 0.0
    %3801 = vmatpush1.msra.mxu0 0.0
    %3802 = vmatprep.subr.mxu0 0.0
    %3803 = vmatpush1.msra.mxu0 0.0
    %3804 = vmatprep.subr.mxu0 0.0
    %3805 = vmatpush1.msra.mxu0 0.0
    %3806 = vmatprep.subr.mxu0 0.0
    %3807 = vmatpush1.msra.mxu0 0.0
    %3808 = vmatprep.subr.mxu0 0.0
    %3809 = vmatpush1.msra.mxu0 0.0
    %3810 = vmatprep.subr.mxu0 0.0
    %3811 = vmatpush1.msra.mxu0 0.0
    %3812 = vmatprep.subr.mxu0 0.0
    %3813 = vmatpush1.msra.mxu0 0.0
    %3814 = vmatprep.subr.mxu0 0.0
    %3815 = vmatpush1.msra.mxu0 0.0
    %3816 = vmatprep.subr.mxu0 0.0
    %3817 = vmatpush1.msra.mxu0 0.0
    %3818 = vmatprep.subr.mxu0 0.0
    %3819 = vmatpush1.msra.mxu0 0.0
    %3820 = vmatprep.subr.mxu0 0.0
    %3821 = vmatpush1.msra.mxu0 0.0
    %3822 = vmatprep.subr.mxu0 0.0
    %3823 = vmatpush1.msra.mxu0 0.0
    %3824 = vmatprep.subr.mxu0 0.0
    %3825 = vmatpush1.msra.mxu0 0.0
    %3826 = vmatprep.subr.mxu0 0.0
    %3827 = vmatpush1.msra.mxu0 0.0
    %3828 = vmatprep.subr.mxu0 0.0
    %3829 = vmatpush1.msra.mxu0 0.0
    %3830 = vmatprep.subr.mxu0 0.0
    %3831 = vmatpush1.msra.mxu0 0.0
    %3832 = vmatprep.subr.mxu0 0.0
    %3833 = vmatpush1.msra.mxu0 0.0
    %3834 = vmatprep.subr.mxu0 0.0
    %3835 = vmatpush1.msra.mxu0 0.0
    %3836 = vmatprep.subr.mxu0 0.0
    %3837 = vmatpush1.msra.mxu0 0.0
    %3838 = vmatprep.subr.mxu0 0.0
    %3839 = vmatpush1.msra.mxu0 0.0
    %3840 = vmatprep.subr.mxu0 0.0
    %3841 = vmatpush1.msra.mxu0 0.0
    %3842 = vmatprep.subr.mxu0 0.0
    %3843 = vmatpush1.msra.mxu0 0.0
    %3844 = vmatprep.subr.mxu0 0.0
    %3845 = vmatpush1.msra.mxu0 0.0
    %3846 = vmatprep.subr.mxu0 0.0
    %3847 = vmatpush1.msra.mxu0 0.0
    %3848 = vmatprep.subr.mxu0 0.0
    %3849 = vmatpush1.msra.mxu0 0.0
    %3850 = vmatprep.subr.mxu0 0.0
    %3851 = vmatpush1.msra.mxu0 0.0
    %3852 = vmatprep.mubr.f32.mxu0 0.0
    %3853 = vmatmul.mubr.f32.gmra.mrb[0].mxu0 %v3786
    %v3854 = vpop.f32.mrb[0].mxu0
    %v3855 = vadd.f32 %v3783, %v3854
    %v3856 = vpop.f32.mrb[0].mxu0
    %3857 = vdwg.mxu0
    %v3858 = vtanh.pop %v3855
    %v3859 = vld [vmem:[%s18] sm:$0xff]
    %v3860 = vld [vmem:[%s18 + $0x8] sm:$0xff]
    %v3861 = vld [vmem:[%s18 + $0x10] sm:$0xff]
    %v3862 = vld [vmem:[%s18 + $0x18] sm:$0xff]
    %v3863 = vld [vmem:[%s19] sm:$0x1]
    %v3865 = vlaneseq
    %v3866 = vshrl.u32 %v3865, 7
    %v3867 = vsub.s32 0, %v3866
    %v3868 = vrot.slane %v3863, %v3867
    %v3871 = vsel %vm73, %v3858, 0
    %3873 = vmatprep.subr.mxu0 0.0
    %3874 = vmatpush1.msra.mxu0 %v3859
    %3875 = vmatprep.subr.mxu0 0.0
    %3876 = vmatpush1.msra.mxu0 %v3860
    %3877 = vmatprep.subr.mxu0 0.0
    %3878 = vmatpush1.msra.mxu0 %v3861
    %3879 = vmatprep.subr.mxu0 0.0
    %3880 = vmatpush1.msra.mxu0 %v3862
    %3881 = vmatprep.subr.mxu0 0.0
    %3882 = vmatpush1.msra.mxu0 0.0
    %3883 = vmatprep.subr.mxu0 0.0
    %3884 = vmatpush1.msra.mxu0 0.0
    %3885 = vmatprep.subr.mxu0 0.0
    %3886 = vmatpush1.msra.mxu0 0.0
    %3887 = vmatprep.subr.mxu0 0.0
    %3888 = vmatpush1.msra.mxu0 0.0
    %3889 = vmatprep.subr.mxu0 0.0
    %3890 = vmatpush1.msra.mxu0 0.0
    %3891 = vmatprep.subr.mxu0 0.0
    %3892 = vmatpush1.msra.mxu0 0.0
    %3893 = vmatprep.subr.mxu0 0.0
    %3894 = vmatpush1.msra.mxu0 0.0
    %3895 = vmatprep.subr.mxu0 0.0
    %3896 = vmatpush1.msra.mxu0 0.0
    %3897 = vmatprep.subr.mxu0 0.0
    %3898 = vmatpush1.msra.mxu0 0.0
    %3899 = vmatprep.subr.mxu0 0.0
    %3900 = vmatpush1.msra.mxu0 0.0
    %3901 = vmatprep.subr.mxu0 0.0
    %3902 = vmatpush1.msra.mxu0 0.0
    %3903 = vmatprep.subr.mxu0 0.0
    %3904 = vmatpush1.msra.mxu0 0.0
    %3905 = vmatprep.subr.mxu0 0.0
    %3906 = vmatpush1.msra.mxu0 0.0
    %3907 = vmatprep.subr.mxu0 0.0
    %3908 = vmatpush1.msra.mxu0 0.0
    %3909 = vmatprep.subr.mxu0 0.0
    %3910 = vmatpush1.msra.mxu0 0.0
    %3911 = vmatprep.subr.mxu0 0.0
    %3912 = vmatpush1.msra.mxu0 0.0
    %3913 = vmatprep.subr.mxu0 0.0
    %3914 = vmatpush1.msra.mxu0 0.0
    %3915 = vmatprep.subr.mxu0 0.0
    %3916 = vmatpush1.msra.mxu0 0.0
    %3917 = vmatprep.subr.mxu0 0.0
    %3918 = vmatpush1.msra.mxu0 0.0
    %3919 = vmatprep.subr.mxu0 0.0
    %3920 = vmatpush1.msra.mxu0 0.0
    %3921 = vmatprep.subr.mxu0 0.0
    %3922 = vmatpush1.msra.mxu0 0.0
    %3923 = vmatprep.subr.mxu0 0.0
    %3924 = vmatpush1.msra.mxu0 0.0
    %3925 = vmatprep.subr.mxu0 0.0
    %3926 = vmatpush1.msra.mxu0 0.0
    %3927 = vmatprep.subr.mxu0 0.0
    %3928 = vmatpush1.msra.mxu0 0.0
    %3929 = vmatprep.subr.mxu0 0.0
    %3930 = vmatpush1.msra.mxu0 0.0
    %3931 = vmatprep.subr.mxu0 0.0
    %3932 = vmatpush1.msra.mxu0 0.0
    %3933 = vmatprep.subr.mxu0 0.0
    %3934 = vmatpush1.msra.mxu0 0.0
    %3935 = vmatprep.subr.mxu0 0.0
    %3936 = vmatpush1.msra.mxu0 0.0
    %3937 = vmatprep.mubr.f32.mxu0 0.0
    %3938 = vmatmul.mubr.f32.gmra.mrb[0].mxu0 %v3871
    %v3939 = vpop.f32.mrb[0].mxu0
    %v3940 = vadd.f32 %v3868, %v3939
    %v3941 = vpop.f32.mrb[0].mxu0
    %3942 = vdwg.mxu0
    %v3943 = vxor.u32 %v3940, 2147483648
    %v3944 = vmul.f32 %v3943, 1.442695
    %v3945 = vpow.pop %v3944
    %v3946 = vadd.f32 %v3945, 1.0
    %v3947 = vrcp.pop %v3946
    %v3948 = vmul.f32 1.0, %v3947
    %vm3949 = vcmask 17408
    %3950 = vst.msk [vmem:[#allocation2] sm:$0x3] %vm3949, %v3948
    // Predicated region
    $region82: #{torch_model_forward.1} parent=1 // pred_check
      _
    $region83: #{torch_model_forward.1} parent=1 // pred_check_branch
      %3952 = sbr.rel (0) target = $region85
    $region84: #{torch_model_forward.1} parent=1 // pred_region
      %s3954 = ssub.s32 32, 32
      %3955 = vsyncadd [#allocation3], %s3954
      %s3957 = sshll.u32 [#allocation2], 4
      %s3958 = int_to_ptr.vmem [resolvable:$true] %s3957
      %3960 = dma.vmem_to_hbm [thread:$0]  %s3958, 32, %s20, [#allocation3]
    $region85: #{torch_model_forward.1} parent=1 // pred_fallthru
      _
    // Predicated region
    $region86: #{torch_model_forward.1} parent=1 // pred_check
      _
    $region87: #{torch_model_forward.1} parent=1 // pred_check_branch
      %3962 = sbr.rel (0) target = $region89
    $region88: #{torch_model_forward.1} parent=1 // pred_region
      %3963 = dma.done [#allocation3], 32
    $region89: #{torch_model_forward.1} parent=1 // pred_fallthru
      _
    %3964 = vsyncpa [#allocation3], 1

</llo_original>
